<compile_context>
chip_gen: v7x
topology: tpu7x:2x2x1
jax: 0.10.0
libtpu: 0.0.40
codegen_flags: <defaults>
</compile_context>

<pallas_src>
import functools

import jax
import jax.numpy as jnp
from jax.experimental import pallas as pl
from jax.experimental.pallas import tpu as pltpu


# ----------------------------------------------------------------------------
# Pallas kernels
# ----------------------------------------------------------------------------
def _mm_kernel(a_ref, b_ref, scale_ref, shift_ref, o_ref, *, relu, l2norm):
    """bf16 MXU matmul, f32 accumulate, fused per-channel affine (+ReLU, +L2-norm)."""
    acc = jnp.dot(a_ref[...], b_ref[...], preferred_element_type=jnp.float32)
    r = acc * scale_ref[...] + shift_ref[...]
    if relu:
        r = jnp.maximum(r, 0.0)
    if l2norm:
        # Requires the N block to cover the full (padded) output width.
        norm = jnp.sqrt(jnp.sum(r * r, axis=-1, keepdims=True))
        r = r / jnp.maximum(norm, 1e-12)
    o_ref[...] = r.astype(o_ref.dtype)


def _mm_resid_kernel(a_ref, b_ref, scale_ref, shift_ref, res_ref, o_ref, *, res_scale):
    """Matmul + affine, then Inception-ResNet residual: relu(res + res_scale * r)."""
    acc = jnp.dot(a_ref[...], b_ref[...], preferred_element_type=jnp.float32)
    r = acc * scale_ref[...] + shift_ref[...]
    r = res_ref[...].astype(jnp.float32) + res_scale * r
    o_ref[...] = jnp.maximum(r, 0.0).astype(o_ref.dtype)


def _max_reduce_kernel(x_ref, o_ref, *, num):
    """Max over the leading axis (pooling-window reduction), f32 compare path."""
    r = x_ref[0].astype(jnp.float32)
    for i in range(1, num):
        r = jnp.maximum(r, x_ref[i].astype(jnp.float32))
    o_ref[...] = r.astype(o_ref.dtype)


def _avgpool_kernel(x_ref, o_ref):
    """Adaptive average pool to 1x1: mean over the spatial axis of [N, HW, C]."""
    o_ref[...] = jnp.mean(x_ref[...].astype(jnp.float32), axis=1).astype(o_ref.dtype)


# ----------------------------------------------------------------------------
# Pallas wrappers
# ----------------------------------------------------------------------------
def _round_up(x, m):
    return ((x + m - 1) // m) * m


def matmul_affine(a, b, scale=None, shift=None, relu=False,
                  residual=None, res_scale=1.0, l2norm=False,
                  out_dtype=jnp.bfloat16):
    """out = epilogue((a @ b) * scale + shift) on the MXU (bf16 operands, f32 acc)."""
    M, K = a.shape
    K2, N = b.shape
    assert K == K2
    if scale is None:
        scale = jnp.ones((N,), jnp.float32)
    if shift is None:
        shift = jnp.zeros((N,), jnp.float32)

    # Single full-K block (no k grid axis); 16-align for bf16 sublane packing.
    Kp = _round_up(K, 16)
    if l2norm:
        tn = _round_up(N, 128)            # whole row in one block -> norm in-kernel
    else:
        tn = 256 if _round_up(N, 128) >= 256 else 128
    Np = _round_up(N, tn)
    tm = min(512, _round_up(M, 8))
    Mp = _round_up(M, tm)

    ap = jnp.pad(a.astype(jnp.bfloat16), ((0, Mp - M), (0, Kp - K)))
    bp = jnp.pad(b.astype(jnp.bfloat16), ((0, Kp - K), (0, Np - N)))
    sc = jnp.pad(scale.reshape(1, N).astype(jnp.float32), ((0, 0), (0, Np - N)))
    sh = jnp.pad(shift.reshape(1, N).astype(jnp.float32), ((0, 0), (0, Np - N)))

    in_specs = [
        pl.BlockSpec((tm, Kp), lambda i, j: (i, 0)),
        pl.BlockSpec((Kp, tn), lambda i, j: (0, j)),
        pl.BlockSpec((1, tn), lambda i, j: (0, j)),
        pl.BlockSpec((1, tn), lambda i, j: (0, j)),
    ]
    args = [ap, bp, sc, sh]
    if residual is not None:
        assert residual.shape == (M, N)
        rp = jnp.pad(residual.astype(jnp.bfloat16), ((0, Mp - M), (0, Np - N)))
        in_specs.append(pl.BlockSpec((tm, tn), lambda i, j: (i, j)))
        args.append(rp)
        kernel = functools.partial(_mm_resid_kernel, res_scale=res_scale)
    else:
        kernel = functools.partial(_mm_kernel, relu=relu, l2norm=l2norm)

    out = pl.pallas_call(
        kernel,
        out_shape=jax.ShapeDtypeStruct((Mp, Np), out_dtype),
        grid_spec=pltpu.PrefetchScalarGridSpec(
            num_scalar_prefetch=0,
            grid=(Mp // tm, Np // tn),
            in_specs=in_specs,
            out_specs=pl.BlockSpec((tm, tn), lambda i, j: (i, j)),
        ),
        compiler_params=pltpu.CompilerParams(
            dimension_semantics=("parallel", "parallel")),
    )(*args)
    return out[:M, :N]


def _full_block_call(kernel, out_shape, *args):
    """grid=() full-VMEM call — only used for the tiny post-trunk average pool."""
    return pl.pallas_call(
        kernel,
        out_shape=out_shape,
        in_specs=[pl.BlockSpec(memory_space=pltpu.MemorySpace.VMEM) for _ in args],
        out_specs=pl.BlockSpec(memory_space=pltpu.MemorySpace.VMEM),
    )(*args)


# ----------------------------------------------------------------------------
# Layer glue (im2col, pooling views) — plain JAX reshapes; compute stays in Pallas
# ----------------------------------------------------------------------------
def conv_bn_relu(x, p, stride=1, padding=0, relu=True):
    """BasicConv2d: Conv2d(bias=False) -> BatchNorm2d(eps=1e-3, eval) -> ReLU."""
    w = p["w"]  # PyTorch layout [Cout, Cin, KH, KW]
    cout, cin, kh, kw = w.shape
    x = x.astype(jnp.bfloat16)
    if padding:
        x = jnp.pad(x, ((0, 0), (padding, padding), (padding, padding), (0, 0)))
    N, H, W, C = x.shape
    OH = (H - kh) // stride + 1
    OW = (W - kw) // stride + 1
    views = []
    for i in range(kh):
        for j in range(kw):
            views.append(x[:, i:i + stride * OH:stride, j:j + stride * OW:stride, :])
    patches = jnp.stack(views, axis=3)                     # [N, OH, OW, KH*KW, C] bf16
    a = patches.reshape(N * OH * OW, kh * kw * C)
    wmat = jnp.transpose(w, (2, 3, 1, 0)).reshape(kh * kw * cin, cout)

    inv = 1.0 / jnp.sqrt(p["var"] + 1e-3)
    scale = p["gamma"] * inv
    shift = p["beta"] - p["mean"] * scale
    y = matmul_affine(a, wmat, scale, shift, relu=relu, out_dtype=jnp.bfloat16)
    return y.reshape(N, OH, OW, cout)


def maxpool_3x3_s2(x):
    x = x.astype(jnp.bfloat16)
    N, H, W, C = x.shape
    OH = (H - 3) // 2 + 1
    OW = (W - 3) // 2 + 1
    views = []
    for i in range(3):
        for j in range(3):
            views.append(x[:, i:i + 2 * OH:2, j:j + 2 * OW:2, :])
    R = N * OH * OW
    stacked = jnp.stack(views, axis=0).reshape(9, R, C)

    tr = min(1024, _round_up(R, 8))
    Rp = _round_up(R, tr)
    stacked = jnp.pad(stacked, ((0, 0), (0, Rp - R), (0, 0)))
    out = pl.pallas_call(
        functools.partial(_max_reduce_kernel, num=9),
        out_shape=jax.ShapeDtypeStruct((Rp, C), jnp.bfloat16),
        grid_spec=pltpu.PrefetchScalarGridSpec(
            num_scalar_prefetch=0,
            grid=(Rp // tr,),
            in_specs=[pl.BlockSpec((9, tr, C), lambda i: (0, i, 0))],
            out_specs=pl.BlockSpec((tr, C), lambda i: (i, 0)),
        ),
        compiler_params=pltpu.CompilerParams(dimension_semantics=("parallel",)),
    )(stacked)
    return out[:R].reshape(N, OH, OW, C)


def block35(x, p, scale=0.17):
    """Inception-ResNet-A block: 3 conv branches -> concat -> 1x1 up -> fused
    scaled-residual + ReLU in the 'up' matmul epilogue."""
    b0 = conv_bn_relu(x, p["b0"])
    b1 = conv_bn_relu(x, p["b1_0"])
    b1 = conv_bn_relu(b1, p["b1_1"], padding=1)
    b2 = conv_bn_relu(x, p["b2_0"])
    b2 = conv_bn_relu(b2, p["b2_1"], padding=1)
    b2 = conv_bn_relu(b2, p["b2_2"], padding=1)
    cat = jnp.concatenate([b0, b1, b2], axis=-1)           # bf16

    N, H, W, Cc = cat.shape
    C = x.shape[-1]
    xf = x.reshape(N * H * W, C)
    out = matmul_affine(cat.reshape(N * H * W, Cc), p["up_w"], None, p["up_b"],
                        residual=xf, res_scale=scale, out_dtype=jnp.bfloat16)
    return out.reshape(x.shape)


# ----------------------------------------------------------------------------
# Deterministic parameter init (synthetic; no checkpoint load)
# ----------------------------------------------------------------------------
def _conv_bn_init(key, cin, cout, k):
    kw, kg, kb, km, kv = jax.random.split(key, 5)
    fan_in = cin * k * k
    return dict(
        w=jax.random.normal(kw, (cout, cin, k, k), jnp.float32) / jnp.sqrt(float(fan_in)),
        gamma=1.0 + 0.1 * jax.random.normal(kg, (cout,), jnp.float32),
        beta=0.1 * jax.random.normal(kb, (cout,), jnp.float32),
        mean=0.1 * jax.random.normal(km, (cout,), jnp.float32),
        var=jnp.abs(jax.random.normal(kv, (cout,), jnp.float32)) + 1.0,
    )


def _bn1d_init(key, c):
    kg, kb, km, kv = jax.random.split(key, 4)
    return dict(
        gamma=1.0 + 0.1 * jax.random.normal(kg, (c,), jnp.float32),
        beta=0.1 * jax.random.normal(kb, (c,), jnp.float32),
        mean=0.1 * jax.random.normal(km, (c,), jnp.float32),
        var=jnp.abs(jax.random.normal(kv, (c,), jnp.float32)) + 1.0,
    )


def init_encoder_params(key):
    ks = jax.random.split(key, 17)
    return dict(
        conv1a=_conv_bn_init(ks[0], 3, 8, 3),
        conv2a=_conv_bn_init(ks[1], 8, 8, 3),
        conv2b=_conv_bn_init(ks[2], 8, 16, 3),
        conv3b=_conv_bn_init(ks[3], 16, 24, 1),
        conv4a=_conv_bn_init(ks[4], 24, 48, 3),
        conv4b=_conv_bn_init(ks[5], 48, 64, 3),
        block35=dict(
            b0=_conv_bn_init(ks[6], 64, 8, 1),
            b1_0=_conv_bn_init(ks[7], 64, 8, 1),
            b1_1=_conv_bn_init(ks[8], 8, 8, 3),
            b2_0=_conv_bn_init(ks[9], 64, 8, 1),
            b2_1=_conv_bn_init(ks[10], 8, 8, 3),
            b2_2=_conv_bn_init(ks[11], 8, 8, 3),
            up_w=0.1 * jax.random.normal(ks[12], (24, 64), jnp.float32),   # 1x1 conv (with bias)
            up_b=0.01 * jax.random.normal(ks[13], (64,), jnp.float32),
        ),
        last_linear_w=jax.random.normal(ks[14], (64, 512), jnp.float32) / 8.0,  # bias=False
        last_bn=_bn1d_init(ks[15], 512),
    )


# ----------------------------------------------------------------------------
# FaceNetModel
# ----------------------------------------------------------------------------
def encoder_forward(params, x_nchw):
    x = jnp.transpose(x_nchw, (0, 2, 3, 1)).astype(jnp.bfloat16)  # NCHW -> NHWC
    x = conv_bn_relu(x, params["conv1a"], stride=2)
    x = conv_bn_relu(x, params["conv2a"], stride=1)
    x = conv_bn_relu(x, params["conv2b"], stride=1, padding=1)
    x = maxpool_3x3_s2(x)
    x = conv_bn_relu(x, params["conv3b"], stride=1)
    x = conv_bn_relu(x, params["conv4a"], stride=1)
    x = conv_bn_relu(x, params["conv4b"], stride=2)
    x = block35(x, params["block35"], scale=0.17)

    N, H, W, C = x.shape
    pooled = _full_block_call(_avgpool_kernel,
                              jax.ShapeDtypeStruct((N, C), jnp.bfloat16),
                              x.reshape(N, H * W, C))
    # dropout: eval mode -> identity
    bn = params["last_bn"]
    inv = 1.0 / jnp.sqrt(bn["var"] + 1e-3)
    bn_scale = bn["gamma"] * inv
    bn_shift = bn["beta"] - bn["mean"] * bn_scale
    # last_linear (bias=False) + BatchNorm1d + L2-normalize fused in one kernel epilogue.
    emb = matmul_affine(pooled, params["last_linear_w"], bn_scale, bn_shift,
                        relu=False, l2norm=True, out_dtype=jnp.float32)
    return emb


class FaceNetModelPallas:
    def __init__(self, classify=False, num_classes=None, key=None):
        key = jax.random.PRNGKey(0) if key is None else key
        k_enc, k_head = jax.random.split(key)
        self.params = init_encoder_params(k_enc)
        self.classify = classify
        self._encode = jax.jit(encoder_forward)
        if classify:
            assert num_classes is not None
            kw, kb = jax.random.split(k_head)
            # nn.Linear(512, num_classes): y = x @ W.T + b
            w_torch = jax.random.normal(kw, (num_classes, 512), jnp.float32) / jnp.sqrt(512.0)
            self.head_w = w_torch.T
            self.head_b = 0.01 * jax.random.normal(kb, (num_classes,), jnp.float32)

    def __call__(self, x_nchw):
        emb = self._encode(self.params, x_nchw)
        if self.classify:
            return matmul_affine(emb, self.head_w, None, self.head_b,
                                 relu=False, out_dtype=jnp.float32)
        return emb


# ----------------------------------------------------------------------------
if __name__ == "__main__":
    key = jax.random.PRNGKey(0)
    x = jax.random.normal(key, (2, 3, 48, 48), jnp.float32)  # NCHW like PyTorch

    # Default FaceNetModel: returns L2-normalized 512-d embedding.
    model = FaceNetModelPallas(classify=False)
    emb = model(x)
    emb = jax.block_until_ready(emb)
    assert emb.shape == (2, 512)
    norms = jnp.sqrt(jnp.sum(emb.astype(jnp.float32) ** 2, axis=-1))
    assert bool(jnp.all(jnp.abs(norms - 1.0) < 1e-3))

    # classify=True path: Linear(512, num_classes) on top of the embedding.
    clf = FaceNetModelPallas(classify=True, num_classes=16)
    logits = jax.block_until_ready(clf(x))
    assert logits.shape == (2, 16)

    print("KERNEL_OK")
</pallas_src>

<mosaic_0001>
module attributes {stable_mosaic.version = 11 : i64} {
  func.func @_mm_kernel(%arg0: i32, %arg1: i32, %arg2: memref<512x32xbf16, #tpu.memory_space<vmem>>, %arg3: memref<32x128xbf16, #tpu.memory_space<vmem>>, %arg4: memref<1x128xf32, #tpu.memory_space<vmem>>, %arg5: memref<1x128xf32, #tpu.memory_space<vmem>>, %arg6: memref<512x128xbf16, #tpu.memory_space<vmem>>) attributes {dimension_semantics = [#tpu.dimension_semantics<parallel>, #tpu.dimension_semantics<parallel>], iteration_bounds = array<i64: 3, 1>, scalar_prefetch = 0 : i64, scratch_operands = 0 : i64, tpu.core_type = #tpu.core_type<tc>, window_params = [{transform_indices = @transform_0, window_bounds = array<i64: 512, 32>}, {transform_indices = @transform_1, window_bounds = array<i64: 32, 128>}, {transform_indices = @transform_2, window_bounds = array<i64: 1, 128>}, {transform_indices = @transform_3, window_bounds = array<i64: 1, 128>}, {transform_indices = @transform_4, window_bounds = array<i64: 512, 128>}]} {
    %c0 = arith.constant 0 : index
    %c0_0 = arith.constant 0 : index
    %0 = vector.load %arg2[%c0, %c0_0] : memref<512x32xbf16, #tpu.memory_space<vmem>>, vector<512x32xbf16>
    %c0_1 = arith.constant 0 : index
    %c0_2 = arith.constant 0 : index
    %1 = vector.load %arg3[%c0_1, %c0_2] : memref<32x128xbf16, #tpu.memory_space<vmem>>, vector<32x128xbf16>
    %cst = arith.constant dense<0.000000e+00> : vector<512x128xf32>
    %2 = tpu.matmul %0, %1, %cst {dimension_numbers = #tpu.dot_dimension_numbers<[1], [0], [0], [1], [0, 0, 1, 1], [], []>} : vector<512x32xbf16>, vector<32x128xbf16>, vector<512x128xf32> -> vector<512x128xf32>
    %c0_3 = arith.constant 0 : index
    %c0_4 = arith.constant 0 : index
    %3 = vector.load %arg4[%c0_3, %c0_4] : memref<1x128xf32, #tpu.memory_space<vmem>>, vector<1x128xf32>
    %4 = vector.broadcast %3 : vector<1x128xf32> to vector<512x128xf32>
    %5 = arith.mulf %2, %4 : vector<512x128xf32>
    %c0_5 = arith.constant 0 : index
    %c0_6 = arith.constant 0 : index
    %6 = vector.load %arg5[%c0_5, %c0_6] : memref<1x128xf32, #tpu.memory_space<vmem>>, vector<1x128xf32>
    %7 = vector.broadcast %6 : vector<1x128xf32> to vector<512x128xf32>
    %8 = arith.addf %5, %7 : vector<512x128xf32>
    %cst_7 = arith.constant 0.000000e+00 : f32
    %9 = vector.broadcast %cst_7 : f32 to vector<512x128xf32>
    %10 = arith.maximumf %8, %9 : vector<512x128xf32>
    %11 = arith.truncf %10 : vector<512x128xf32> to vector<512x128xbf16>
    %c0_8 = arith.constant 0 : index
    %c0_9 = arith.constant 0 : index
    %12 = vector.load %arg6[%c0_8, %c0_9] : memref<512x128xbf16, #tpu.memory_space<vmem>>, vector<512x128xbf16>
    tpu.vector_store %arg6[%c0_8, %c0_9], %11 {strides = array<i32>} : memref<512x128xbf16, #tpu.memory_space<vmem>>, vector<512x128xbf16>,
    return
  }
  func.func @transform_0(%arg0: i32, %arg1: i32) -> (i32, i32) {
    %c0_i32 = arith.constant 0 : i32
    %c0_i32_0 = arith.constant 0 : i32
    return %arg0, %c0_i32 : i32, i32
  }
  func.func @transform_1(%arg0: i32, %arg1: i32) -> (i32, i32) {
    %c0_i32 = arith.constant 0 : i32
    %c0_i32_0 = arith.constant 0 : i32
    return %c0_i32, %arg1 : i32, i32
  }
  func.func @transform_2(%arg0: i32, %arg1: i32) -> (i32, i32) {
    %c0_i32 = arith.constant 0 : i32
    %c0_i32_0 = arith.constant 0 : i32
    return %c0_i32, %arg1 : i32, i32
  }
  func.func @transform_3(%arg0: i32, %arg1: i32) -> (i32, i32) {
    %c0_i32 = arith.constant 0 : i32
    %c0_i32_0 = arith.constant 0 : i32
    return %c0_i32, %arg1 : i32, i32
  }
  func.func @transform_4(%arg0: i32, %arg1: i32) -> (i32, i32) {
    %c0_i32 = arith.constant 0 : i32
    return %arg0, %arg1 : i32, i32
  }
}

module attributes {stable_mosaic.version = 11 : i64} {
  func.func @_mm_kernel(%arg0: i32, %arg1: i32, %arg2: memref<512x80xbf16, #tpu.memory_space<vmem>>, %arg3: memref<80x128xbf16, #tpu.memory_space<vmem>>, %arg4: memref<1x128xf32, #tpu.memory_space<vmem>>, %arg5: memref<1x128xf32, #tpu.memory_space<vmem>>, %arg6: memref<512x128xbf16, #tpu.memory_space<vmem>>) attributes {dimension_semantics = [#tpu.dimension_semantics<parallel>, #tpu.dimension_semantics<parallel>], iteration_bounds = array<i64: 2, 1>, scalar_prefetch = 0 : i64, scratch_operands = 0 : i64, tpu.core_type = #tpu.core_type<tc>, window_params = [{transform_indices = @transform_0, window_bounds = array<i64: 512, 80>}, {transform_indices = @transform_1, window_bounds = array<i64: 80, 128>}, {transform_indices = @transform_2, window_bounds = array<i64: 1, 128>}, {transform_indices = @transform_3, window_bounds = array<i64: 1, 128>}, {transform_indices = @transform_4, window_bounds = array<i64: 512, 128>}]} {
    %c0 = arith.constant 0 : index
    %c0_0 = arith.constant 0 : index
    %0 = vector.load %arg2[%c0, %c0_0] : memref<512x80xbf16, #tpu.memory_space<vmem>>, vector<512x80xbf16>
    %c0_1 = arith.constant 0 : index
    %c0_2 = arith.constant 0 : index
    %1 = vector.load %arg3[%c0_1, %c0_2] : memref<80x128xbf16, #tpu.memory_space<vmem>>, vector<80x128xbf16>
    %cst = arith.constant dense<0.000000e+00> : vector<512x128xf32>
    %2 = tpu.matmul %0, %1, %cst {dimension_numbers = #tpu.dot_dimension_numbers<[1], [0], [0], [1], [0, 0, 1, 1], [], []>} : vector<512x80xbf16>, vector<80x128xbf16>, vector<512x128xf32> -> vector<512x128xf32>
    %c0_3 = arith.constant 0 : index
    %c0_4 = arith.constant 0 : index
    %3 = vector.load %arg4[%c0_3, %c0_4] : memref<1x128xf32, #tpu.memory_space<vmem>>, vector<1x128xf32>
    %4 = vector.broadcast %3 : vector<1x128xf32> to vector<512x128xf32>
    %5 = arith.mulf %2, %4 : vector<512x128xf32>
    %c0_5 = arith.constant 0 : index
    %c0_6 = arith.constant 0 : index
    %6 = vector.load %arg5[%c0_5, %c0_6] : memref<1x128xf32, #tpu.memory_space<vmem>>, vector<1x128xf32>
    %7 = vector.broadcast %6 : vector<1x128xf32> to vector<512x128xf32>
    %8 = arith.addf %5, %7 : vector<512x128xf32>
    %cst_7 = arith.constant 0.000000e+00 : f32
    %9 = vector.broadcast %cst_7 : f32 to vector<512x128xf32>
    %10 = arith.maximumf %8, %9 : vector<512x128xf32>
    %11 = arith.truncf %10 : vector<512x128xf32> to vector<512x128xbf16>
    %c0_8 = arith.constant 0 : index
    %c0_9 = arith.constant 0 : index
    %12 = vector.load %arg6[%c0_8, %c0_9] : memref<512x128xbf16, #tpu.memory_space<vmem>>, vector<512x128xbf16>
    tpu.vector_store %arg6[%c0_8, %c0_9], %11 {strides = array<i32>} : memref<512x128xbf16, #tpu.memory_space<vmem>>, vector<512x128xbf16>,
    return
  }
  func.func @transform_0(%arg0: i32, %arg1: i32) -> (i32, i32) {
    %c0_i32 = arith.constant 0 : i32
    %c0_i32_0 = arith.constant 0 : i32
    return %arg0, %c0_i32 : i32, i32
  }
  func.func @transform_1(%arg0: i32, %arg1: i32) -> (i32, i32) {
    %c0_i32 = arith.constant 0 : i32
    %c0_i32_0 = arith.constant 0 : i32
    return %c0_i32, %arg1 : i32, i32
  }
  func.func @transform_2(%arg0: i32, %arg1: i32) -> (i32, i32) {
    %c0_i32 = arith.constant 0 : i32
    %c0_i32_0 = arith.constant 0 : i32
    return %c0_i32, %arg1 : i32, i32
  }
  func.func @transform_3(%arg0: i32, %arg1: i32) -> (i32, i32) {
    %c0_i32 = arith.constant 0 : i32
    %c0_i32_0 = arith.constant 0 : i32
    return %c0_i32, %arg1 : i32, i32
  }
  func.func @transform_4(%arg0: i32, %arg1: i32) -> (i32, i32) {
    %c0_i32 = arith.constant 0 : i32
    return %arg0, %arg1 : i32, i32
  }
}

module attributes {stable_mosaic.version = 11 : i64} {
  func.func @_max_reduce_kernel(%arg0: i32, %arg1: memref<9x200x16xbf16, #tpu.memory_space<vmem>>, %arg2: memref<200x16xbf16, #tpu.memory_space<vmem>>) attributes {dimension_semantics = [#tpu.dimension_semantics<parallel>], iteration_bounds = array<i64: 1>, scalar_prefetch = 0 : i64, scratch_operands = 0 : i64, tpu.core_type = #tpu.core_type<tc>, window_params = [{transform_indices = @transform_0, window_bounds = array<i64: 9, 200, 16>}, {transform_indices = @transform_1, window_bounds = array<i64: 200, 16>}]} {
    %c0 = arith.constant 0 : index
    %c0_0 = arith.constant 0 : index
    %c0_1 = arith.constant 0 : index
    %0 = vector.load %arg1[%c0, %c0_0, %c0_1] : memref<9x200x16xbf16, #tpu.memory_space<vmem>>, vector<1x200x16xbf16>
    %1 = vector.shape_cast %0 : vector<1x200x16xbf16> to vector<200x16xbf16>
    %2 = arith.extf %1 : vector<200x16xbf16> to vector<200x16xf32>
    %c1 = arith.constant 1 : index
    %c0_2 = arith.constant 0 : index
    %c0_3 = arith.constant 0 : index
    %3 = vector.load %arg1[%c1, %c0_2, %c0_3] : memref<9x200x16xbf16, #tpu.memory_space<vmem>>, vector<1x200x16xbf16>
    %4 = vector.shape_cast %3 : vector<1x200x16xbf16> to vector<200x16xbf16>
    %5 = arith.extf %4 : vector<200x16xbf16> to vector<200x16xf32>
    %6 = arith.maximumf %2, %5 : vector<200x16xf32>
    %c2 = arith.constant 2 : index
    %c0_4 = arith.constant 0 : index
    %c0_5 = arith.constant 0 : index
    %7 = vector.load %arg1[%c2, %c0_4, %c0_5] : memref<9x200x16xbf16, #tpu.memory_space<vmem>>, vector<1x200x16xbf16>
    %8 = vector.shape_cast %7 : vector<1x200x16xbf16> to vector<200x16xbf16>
    %9 = arith.extf %8 : vector<200x16xbf16> to vector<200x16xf32>
    %10 = arith.maximumf %6, %9 : vector<200x16xf32>
    %c3 = arith.constant 3 : index
    %c0_6 = arith.constant 0 : index
    %c0_7 = arith.constant 0 : index
    %11 = vector.load %arg1[%c3, %c0_6, %c0_7] : memref<9x200x16xbf16, #tpu.memory_space<vmem>>, vector<1x200x16xbf16>
    %12 = vector.shape_cast %11 : vector<1x200x16xbf16> to vector<200x16xbf16>
    %13 = arith.extf %12 : vector<200x16xbf16> to vector<200x16xf32>
    %14 = arith.maximumf %10, %13 : vector<200x16xf32>
    %c4 = arith.constant 4 : index
    %c0_8 = arith.constant 0 : index
    %c0_9 = arith.constant 0 : index
    %15 = vector.load %arg1[%c4, %c0_8, %c0_9] : memref<9x200x16xbf16, #tpu.memory_space<vmem>>, vector<1x200x16xbf16>
    %16 = vector.shape_cast %15 : vector<1x200x16xbf16> to vector<200x16xbf16>
    %17 = arith.extf %16 : vector<200x16xbf16> to vector<200x16xf32>
    %18 = arith.maximumf %14, %17 : vector<200x16xf32>
    %c5 = arith.constant 5 : index
    %c0_10 = arith.constant 0 : index
    %c0_11 = arith.constant 0 : index
    %19 = vector.load %arg1[%c5, %c0_10, %c0_11] : memref<9x200x16xbf16, #tpu.memory_space<vmem>>, vector<1x200x16xbf16>
    %20 = vector.shape_cast %19 : vector<1x200x16xbf16> to vector<200x16xbf16>
    %21 = arith.extf %20 : vector<200x16xbf16> to vector<200x16xf32>
    %22 = arith.maximumf %18, %21 : vector<200x16xf32>
    %c6 = arith.constant 6 : index
    %c0_12 = arith.constant 0 : index
    %c0_13 = arith.constant 0 : index
    %23 = vector.load %arg1[%c6, %c0_12, %c0_13] : memref<9x200x16xbf16, #tpu.memory_space<vmem>>, vector<1x200x16xbf16>
    %24 = vector.shape_cast %23 : vector<1x200x16xbf16> to vector<200x16xbf16>
    %25 = arith.extf %24 : vector<200x16xbf16> to vector<200x16xf32>
    %26 = arith.maximumf %22, %25 : vector<200x16xf32>
    %c7 = arith.constant 7 : index
    %c0_14 = arith.constant 0 : index
    %c0_15 = arith.constant 0 : index
    %27 = vector.load %arg1[%c7, %c0_14, %c0_15] : memref<9x200x16xbf16, #tpu.memory_space<vmem>>, vector<1x200x16xbf16>
    %28 = vector.shape_cast %27 : vector<1x200x16xbf16> to vector<200x16xbf16>
    %29 = arith.extf %28 : vector<200x16xbf16> to vector<200x16xf32>
    %30 = arith.maximumf %26, %29 : vector<200x16xf32>
    %c8 = arith.constant 8 : index
    %c0_16 = arith.constant 0 : index
    %c0_17 = arith.constant 0 : index
    %31 = vector.load %arg1[%c8, %c0_16, %c0_17] : memref<9x200x16xbf16, #tpu.memory_space<vmem>>, vector<1x200x16xbf16>
    %32 = vector.shape_cast %31 : vector<1x200x16xbf16> to vector<200x16xbf16>
    %33 = arith.extf %32 : vector<200x16xbf16> to vector<200x16xf32>
    %34 = arith.maximumf %30, %33 : vector<200x16xf32>
    %35 = arith.truncf %34 : vector<200x16xf32> to vector<200x16xbf16>
    %c0_18 = arith.constant 0 : index
    %c0_19 = arith.constant 0 : index
    %36 = vector.load %arg2[%c0_18, %c0_19] : memref<200x16xbf16, #tpu.memory_space<vmem>>, vector<200x16xbf16>
    tpu.vector_store %arg2[%c0_18, %c0_19], %35 {strides = array<i32>} : memref<200x16xbf16, #tpu.memory_space<vmem>>, vector<200x16xbf16>,
    return
  }
  func.func @transform_0(%arg0: i32) -> (i32, i32, i32) {
    %c0_i32 = arith.constant 0 : i32
    %c0_i32_0 = arith.constant 0 : i32
    %c0_i32_1 = arith.constant 0 : i32
    return %c0_i32, %arg0, %c0_i32_0 : i32, i32, i32
  }
  func.func @transform_1(%arg0: i32) -> (i32, i32) {
    %c0_i32 = arith.constant 0 : i32
    %c0_i32_0 = arith.constant 0 : i32
    return %arg0, %c0_i32 : i32, i32
  }
}

module attributes {stable_mosaic.version = 11 : i64} {
  func.func @_mm_kernel(%arg0: i32, %arg1: i32, %arg2: memref<200x16xbf16, #tpu.memory_space<vmem>>, %arg3: memref<16x128xbf16, #tpu.memory_space<vmem>>, %arg4: memref<1x128xf32, #tpu.memory_space<vmem>>, %arg5: memref<1x128xf32, #tpu.memory_space<vmem>>, %arg6: memref<200x128xbf16, #tpu.memory_space<vmem>>) attributes {dimension_semantics = [#tpu.dimension_semantics<parallel>, #tpu.dimension_semantics<parallel>], iteration_bounds = array<i64: 1, 1>, scalar_prefetch = 0 : i64, scratch_operands = 0 : i64, tpu.core_type = #tpu.core_type<tc>, window_params = [{transform_indices = @transform_0, window_bounds = array<i64: 200, 16>}, {transform_indices = @transform_1, window_bounds = array<i64: 16, 128>}, {transform_indices = @transform_2, window_bounds = array<i64: 1, 128>}, {transform_indices = @transform_3, window_bounds = array<i64: 1, 128>}, {transform_indices = @transform_4, window_bounds = array<i64: 200, 128>}]} {
    %c0 = arith.constant 0 : index
    %c0_0 = arith.constant 0 : index
    %0 = vector.load %arg2[%c0, %c0_0] : memref<200x16xbf16, #tpu.memory_space<vmem>>, vector<200x16xbf16>
    %c0_1 = arith.constant 0 : index
    %c0_2 = arith.constant 0 : index
    %1 = vector.load %arg3[%c0_1, %c0_2] : memref<16x128xbf16, #tpu.memory_space<vmem>>, vector<16x128xbf16>
    %cst = arith.constant dense<0.000000e+00> : vector<200x128xf32>
    %2 = tpu.matmul %0, %1, %cst {dimension_numbers = #tpu.dot_dimension_numbers<[1], [0], [0], [1], [0, 0, 1, 1], [], []>} : vector<200x16xbf16>, vector<16x128xbf16>, vector<200x128xf32> -> vector<200x128xf32>
    %c0_3 = arith.constant 0 : index
    %c0_4 = arith.constant 0 : index
    %3 = vector.load %arg4[%c0_3, %c0_4] : memref<1x128xf32, #tpu.memory_space<vmem>>, vector<1x128xf32>
    %4 = vector.broadcast %3 : vector<1x128xf32> to vector<200x128xf32>
    %5 = arith.mulf %2, %4 : vector<200x128xf32>
    %c0_5 = arith.constant 0 : index
    %c0_6 = arith.constant 0 : index
    %6 = vector.load %arg5[%c0_5, %c0_6] : memref<1x128xf32, #tpu.memory_space<vmem>>, vector<1x128xf32>
    %7 = vector.broadcast %6 : vector<1x128xf32> to vector<200x128xf32>
    %8 = arith.addf %5, %7 : vector<200x128xf32>
    %cst_7 = arith.constant 0.000000e+00 : f32
    %9 = vector.broadcast %cst_7 : f32 to vector<200x128xf32>
    %10 = arith.maximumf %8, %9 : vector<200x128xf32>
    %11 = arith.truncf %10 : vector<200x128xf32> to vector<200x128xbf16>
    %c0_8 = arith.constant 0 : index
    %c0_9 = arith.constant 0 : index
    %12 = vector.load %arg6[%c0_8, %c0_9] : memref<200x128xbf16, #tpu.memory_space<vmem>>, vector<200x128xbf16>
    tpu.vector_store %arg6[%c0_8, %c0_9], %11 {strides = array<i32>} : memref<200x128xbf16, #tpu.memory_space<vmem>>, vector<200x128xbf16>,
    return
  }
  func.func @transform_0(%arg0: i32, %arg1: i32) -> (i32, i32) {
    %c0_i32 = arith.constant 0 : i32
    %c0_i32_0 = arith.constant 0 : i32
    return %arg0, %c0_i32 : i32, i32
  }
  func.func @transform_1(%arg0: i32, %arg1: i32) -> (i32, i32) {
    %c0_i32 = arith.constant 0 : i32
    %c0_i32_0 = arith.constant 0 : i32
    return %c0_i32, %arg1 : i32, i32
  }
  func.func @transform_2(%arg0: i32, %arg1: i32) -> (i32, i32) {
    %c0_i32 = arith.constant 0 : i32
    %c0_i32_0 = arith.constant 0 : i32
    return %c0_i32, %arg1 : i32, i32
  }
  func.func @transform_3(%arg0: i32, %arg1: i32) -> (i32, i32) {
    %c0_i32 = arith.constant 0 : i32
    %c0_i32_0 = arith.constant 0 : i32
    return %c0_i32, %arg1 : i32, i32
  }
  func.func @transform_4(%arg0: i32, %arg1: i32) -> (i32, i32) {
    %c0_i32 = arith.constant 0 : i32
    return %arg0, %arg1 : i32, i32
  }
}

module attributes {stable_mosaic.version = 11 : i64} {
  func.func @_mm_kernel(%arg0: i32, %arg1: i32, %arg2: memref<128x224xbf16, #tpu.memory_space<vmem>>, %arg3: memref<224x128xbf16, #tpu.memory_space<vmem>>, %arg4: memref<1x128xf32, #tpu.memory_space<vmem>>, %arg5: memref<1x128xf32, #tpu.memory_space<vmem>>, %arg6: memref<128x128xbf16, #tpu.memory_space<vmem>>) attributes {dimension_semantics = [#tpu.dimension_semantics<parallel>, #tpu.dimension_semantics<parallel>], iteration_bounds = array<i64: 1, 1>, scalar_prefetch = 0 : i64, scratch_operands = 0 : i64, tpu.core_type = #tpu.core_type<tc>, window_params = [{transform_indices = @transform_0, window_bounds = array<i64: 128, 224>}, {transform_indices = @transform_1, window_bounds = array<i64: 224, 128>}, {transform_indices = @transform_2, window_bounds = array<i64: 1, 128>}, {transform_indices = @transform_3, window_bounds = array<i64: 1, 128>}, {transform_indices = @transform_4, window_bounds = array<i64: 128, 128>}]} {
    %c0 = arith.constant 0 : index
    %c0_0 = arith.constant 0 : index
    %0 = vector.load %arg2[%c0, %c0_0] : memref<128x224xbf16, #tpu.memory_space<vmem>>, vector<128x224xbf16>
    %c0_1 = arith.constant 0 : index
    %c0_2 = arith.constant 0 : index
    %1 = vector.load %arg3[%c0_1, %c0_2] : memref<224x128xbf16, #tpu.memory_space<vmem>>, vector<224x128xbf16>
    %cst = arith.constant dense<0.000000e+00> : vector<128x128xf32>
    %2 = tpu.matmul %0, %1, %cst {dimension_numbers = #tpu.dot_dimension_numbers<[1], [0], [0], [1], [0, 0, 1, 1], [], []>} : vector<128x224xbf16>, vector<224x128xbf16>, vector<128x128xf32> -> vector<128x128xf32>
    %c0_3 = arith.constant 0 : index
    %c0_4 = arith.constant 0 : index
    %3 = vector.load %arg4[%c0_3, %c0_4] : memref<1x128xf32, #tpu.memory_space<vmem>>, vector<1x128xf32>
    %4 = vector.broadcast %3 : vector<1x128xf32> to vector<128x128xf32>
    %5 = arith.mulf %2, %4 : vector<128x128xf32>
    %c0_5 = arith.constant 0 : index
    %c0_6 = arith.constant 0 : index
    %6 = vector.load %arg5[%c0_5, %c0_6] : memref<1x128xf32, #tpu.memory_space<vmem>>, vector<1x128xf32>
    %7 = vector.broadcast %6 : vector<1x128xf32> to vector<128x128xf32>
    %8 = arith.addf %5, %7 : vector<128x128xf32>
    %cst_7 = arith.constant 0.000000e+00 : f32
    %9 = vector.broadcast %cst_7 : f32 to vector<128x128xf32>
    %10 = arith.maximumf %8, %9 : vector<128x128xf32>
    %11 = arith.truncf %10 : vector<128x128xf32> to vector<128x128xbf16>
    %c0_8 = arith.constant 0 : index
    %c0_9 = arith.constant 0 : index
    %12 = vector.load %arg6[%c0_8, %c0_9] : memref<128x128xbf16, #tpu.memory_space<vmem>>, vector<128x128xbf16>
    tpu.vector_store %arg6[%c0_8, %c0_9], %11 {strides = array<i32>} : memref<128x128xbf16, #tpu.memory_space<vmem>>, vector<128x128xbf16>,
    return
  }
  func.func @transform_0(%arg0: i32, %arg1: i32) -> (i32, i32) {
    %c0_i32 = arith.constant 0 : i32
    %c0_i32_0 = arith.constant 0 : i32
    return %arg0, %c0_i32 : i32, i32
  }
  func.func @transform_1(%arg0: i32, %arg1: i32) -> (i32, i32) {
    %c0_i32 = arith.constant 0 : i32
    %c0_i32_0 = arith.constant 0 : i32
    return %c0_i32, %arg1 : i32, i32
  }
  func.func @transform_2(%arg0: i32, %arg1: i32) -> (i32, i32) {
    %c0_i32 = arith.constant 0 : i32
    %c0_i32_0 = arith.constant 0 : i32
    return %c0_i32, %arg1 : i32, i32
  }
  func.func @transform_3(%arg0: i32, %arg1: i32) -> (i32, i32) {
    %c0_i32 = arith.constant 0 : i32
    %c0_i32_0 = arith.constant 0 : i32
    return %c0_i32, %arg1 : i32, i32
  }
  func.func @transform_4(%arg0: i32, %arg1: i32) -> (i32, i32) {
    %c0_i32 = arith.constant 0 : i32
    return %arg0, %arg1 : i32, i32
  }
}

module attributes {stable_mosaic.version = 11 : i64} {
  func.func @_mm_kernel(%arg0: i32, %arg1: i32, %arg2: memref<24x432xbf16, #tpu.memory_space<vmem>>, %arg3: memref<432x128xbf16, #tpu.memory_space<vmem>>, %arg4: memref<1x128xf32, #tpu.memory_space<vmem>>, %arg5: memref<1x128xf32, #tpu.memory_space<vmem>>, %arg6: memref<24x128xbf16, #tpu.memory_space<vmem>>) attributes {dimension_semantics = [#tpu.dimension_semantics<parallel>, #tpu.dimension_semantics<parallel>], iteration_bounds = array<i64: 1, 1>, scalar_prefetch = 0 : i64, scratch_operands = 0 : i64, tpu.core_type = #tpu.core_type<tc>, window_params = [{transform_indices = @transform_0, window_bounds = array<i64: 24, 432>}, {transform_indices = @transform_1, window_bounds = array<i64: 432, 128>}, {transform_indices = @transform_2, window_bounds = array<i64: 1, 128>}, {transform_indices = @transform_3, window_bounds = array<i64: 1, 128>}, {transform_indices = @transform_4, window_bounds = array<i64: 24, 128>}]} {
    %c0 = arith.constant 0 : index
    %c0_0 = arith.constant 0 : index
    %0 = vector.load %arg2[%c0, %c0_0] : memref<24x432xbf16, #tpu.memory_space<vmem>>, vector<24x432xbf16>
    %c0_1 = arith.constant 0 : index
    %c0_2 = arith.constant 0 : index
    %1 = vector.load %arg3[%c0_1, %c0_2] : memref<432x128xbf16, #tpu.memory_space<vmem>>, vector<432x128xbf16>
    %cst = arith.constant dense<0.000000e+00> : vector<24x128xf32>
    %2 = tpu.matmul %0, %1, %cst {dimension_numbers = #tpu.dot_dimension_numbers<[1], [0], [0], [1], [0, 0, 1, 1], [], []>} : vector<24x432xbf16>, vector<432x128xbf16>, vector<24x128xf32> -> vector<24x128xf32>
    %c0_3 = arith.constant 0 : index
    %c0_4 = arith.constant 0 : index
    %3 = vector.load %arg4[%c0_3, %c0_4] : memref<1x128xf32, #tpu.memory_space<vmem>>, vector<1x128xf32>
    %4 = vector.broadcast %3 : vector<1x128xf32> to vector<24x128xf32>
    %5 = arith.mulf %2, %4 : vector<24x128xf32>
    %c0_5 = arith.constant 0 : index
    %c0_6 = arith.constant 0 : index
    %6 = vector.load %arg5[%c0_5, %c0_6] : memref<1x128xf32, #tpu.memory_space<vmem>>, vector<1x128xf32>
    %7 = vector.broadcast %6 : vector<1x128xf32> to vector<24x128xf32>
    %8 = arith.addf %5, %7 : vector<24x128xf32>
    %cst_7 = arith.constant 0.000000e+00 : f32
    %9 = vector.broadcast %cst_7 : f32 to vector<24x128xf32>
    %10 = arith.maximumf %8, %9 : vector<24x128xf32>
    %11 = arith.truncf %10 : vector<24x128xf32> to vector<24x128xbf16>
    %c0_8 = arith.constant 0 : index
    %c0_9 = arith.constant 0 : index
    %12 = vector.load %arg6[%c0_8, %c0_9] : memref<24x128xbf16, #tpu.memory_space<vmem>>, vector<24x128xbf16>
    tpu.vector_store %arg6[%c0_8, %c0_9], %11 {strides = array<i32>} : memref<24x128xbf16, #tpu.memory_space<vmem>>, vector<24x128xbf16>,
    return
  }
  func.func @transform_0(%arg0: i32, %arg1: i32) -> (i32, i32) {
    %c0_i32 = arith.constant 0 : i32
    %c0_i32_0 = arith.constant 0 : i32
    return %arg0, %c0_i32 : i32, i32
  }
  func.func @transform_1(%arg0: i32, %arg1: i32) -> (i32, i32) {
    %c0_i32 = arith.constant 0 : i32
    %c0_i32_0 = arith.constant 0 : i32
    return %c0_i32, %arg1 : i32, i32
  }
  func.func @transform_2(%arg0: i32, %arg1: i32) -> (i32, i32) {
    %c0_i32 = arith.constant 0 : i32
    %c0_i32_0 = arith.constant 0 : i32
    return %c0_i32, %arg1 : i32, i32
  }
  func.func @transform_3(%arg0: i32, %arg1: i32) -> (i32, i32) {
    %c0_i32 = arith.constant 0 : i32
    %c0_i32_0 = arith.constant 0 : i32
    return %c0_i32, %arg1 : i32, i32
  }
  func.func @transform_4(%arg0: i32, %arg1: i32) -> (i32, i32) {
    %c0_i32 = arith.constant 0 : i32
    return %arg0, %arg1 : i32, i32
  }
}

module attributes {stable_mosaic.version = 11 : i64} {
  func.func @_mm_kernel(%arg0: i32, %arg1: i32, %arg2: memref<24x64xbf16, #tpu.memory_space<vmem>>, %arg3: memref<64x128xbf16, #tpu.memory_space<vmem>>, %arg4: memref<1x128xf32, #tpu.memory_space<vmem>>, %arg5: memref<1x128xf32, #tpu.memory_space<vmem>>, %arg6: memref<24x128xbf16, #tpu.memory_space<vmem>>) attributes {dimension_semantics = [#tpu.dimension_semantics<parallel>, #tpu.dimension_semantics<parallel>], iteration_bounds = array<i64: 1, 1>, scalar_prefetch = 0 : i64, scratch_operands = 0 : i64, tpu.core_type = #tpu.core_type<tc>, window_params = [{transform_indices = @transform_0, window_bounds = array<i64: 24, 64>}, {transform_indices = @transform_1, window_bounds = array<i64: 64, 128>}, {transform_indices = @transform_2, window_bounds = array<i64: 1, 128>}, {transform_indices = @transform_3, window_bounds = array<i64: 1, 128>}, {transform_indices = @transform_4, window_bounds = array<i64: 24, 128>}]} {
    %c0 = arith.constant 0 : index
    %c0_0 = arith.constant 0 : index
    %0 = vector.load %arg2[%c0, %c0_0] : memref<24x64xbf16, #tpu.memory_space<vmem>>, vector<24x64xbf16>
    %c0_1 = arith.constant 0 : index
    %c0_2 = arith.constant 0 : index
    %1 = vector.load %arg3[%c0_1, %c0_2] : memref<64x128xbf16, #tpu.memory_space<vmem>>, vector<64x128xbf16>
    %cst = arith.constant dense<0.000000e+00> : vector<24x128xf32>
    %2 = tpu.matmul %0, %1, %cst {dimension_numbers = #tpu.dot_dimension_numbers<[1], [0], [0], [1], [0, 0, 1, 1], [], []>} : vector<24x64xbf16>, vector<64x128xbf16>, vector<24x128xf32> -> vector<24x128xf32>
    %c0_3 = arith.constant 0 : index
    %c0_4 = arith.constant 0 : index
    %3 = vector.load %arg4[%c0_3, %c0_4] : memref<1x128xf32, #tpu.memory_space<vmem>>, vector<1x128xf32>
    %4 = vector.broadcast %3 : vector<1x128xf32> to vector<24x128xf32>
    %5 = arith.mulf %2, %4 : vector<24x128xf32>
    %c0_5 = arith.constant 0 : index
    %c0_6 = arith.constant 0 : index
    %6 = vector.load %arg5[%c0_5, %c0_6] : memref<1x128xf32, #tpu.memory_space<vmem>>, vector<1x128xf32>
    %7 = vector.broadcast %6 : vector<1x128xf32> to vector<24x128xf32>
    %8 = arith.addf %5, %7 : vector<24x128xf32>
    %cst_7 = arith.constant 0.000000e+00 : f32
    %9 = vector.broadcast %cst_7 : f32 to vector<24x128xf32>
    %10 = arith.maximumf %8, %9 : vector<24x128xf32>
    %11 = arith.truncf %10 : vector<24x128xf32> to vector<24x128xbf16>
    %c0_8 = arith.constant 0 : index
    %c0_9 = arith.constant 0 : index
    %12 = vector.load %arg6[%c0_8, %c0_9] : memref<24x128xbf16, #tpu.memory_space<vmem>>, vector<24x128xbf16>
    tpu.vector_store %arg6[%c0_8, %c0_9], %11 {strides = array<i32>} : memref<24x128xbf16, #tpu.memory_space<vmem>>, vector<24x128xbf16>,
    return
  }
  func.func @transform_0(%arg0: i32, %arg1: i32) -> (i32, i32) {
    %c0_i32 = arith.constant 0 : i32
    %c0_i32_0 = arith.constant 0 : i32
    return %arg0, %c0_i32 : i32, i32
  }
  func.func @transform_1(%arg0: i32, %arg1: i32) -> (i32, i32) {
    %c0_i32 = arith.constant 0 : i32
    %c0_i32_0 = arith.constant 0 : i32
    return %c0_i32, %arg1 : i32, i32
  }
  func.func @transform_2(%arg0: i32, %arg1: i32) -> (i32, i32) {
    %c0_i32 = arith.constant 0 : i32
    %c0_i32_0 = arith.constant 0 : i32
    return %c0_i32, %arg1 : i32, i32
  }
  func.func @transform_3(%arg0: i32, %arg1: i32) -> (i32, i32) {
    %c0_i32 = arith.constant 0 : i32
    %c0_i32_0 = arith.constant 0 : i32
    return %c0_i32, %arg1 : i32, i32
  }
  func.func @transform_4(%arg0: i32, %arg1: i32) -> (i32, i32) {
    %c0_i32 = arith.constant 0 : i32
    return %arg0, %arg1 : i32, i32
  }
}

module attributes {stable_mosaic.version = 11 : i64} {
  func.func @_mm_kernel(%arg0: i32, %arg1: i32, %arg2: memref<24x80xbf16, #tpu.memory_space<vmem>>, %arg3: memref<80x128xbf16, #tpu.memory_space<vmem>>, %arg4: memref<1x128xf32, #tpu.memory_space<vmem>>, %arg5: memref<1x128xf32, #tpu.memory_space<vmem>>, %arg6: memref<24x128xbf16, #tpu.memory_space<vmem>>) attributes {dimension_semantics = [#tpu.dimension_semantics<parallel>, #tpu.dimension_semantics<parallel>], iteration_bounds = array<i64: 1, 1>, scalar_prefetch = 0 : i64, scratch_operands = 0 : i64, tpu.core_type = #tpu.core_type<tc>, window_params = [{transform_indices = @transform_0, window_bounds = array<i64: 24, 80>}, {transform_indices = @transform_1, window_bounds = array<i64: 80, 128>}, {transform_indices = @transform_2, window_bounds = array<i64: 1, 128>}, {transform_indices = @transform_3, window_bounds = array<i64: 1, 128>}, {transform_indices = @transform_4, window_bounds = array<i64: 24, 128>}]} {
    %c0 = arith.constant 0 : index
    %c0_0 = arith.constant 0 : index
    %0 = vector.load %arg2[%c0, %c0_0] : memref<24x80xbf16, #tpu.memory_space<vmem>>, vector<24x80xbf16>
    %c0_1 = arith.constant 0 : index
    %c0_2 = arith.constant 0 : index
    %1 = vector.load %arg3[%c0_1, %c0_2] : memref<80x128xbf16, #tpu.memory_space<vmem>>, vector<80x128xbf16>
    %cst = arith.constant dense<0.000000e+00> : vector<24x128xf32>
    %2 = tpu.matmul %0, %1, %cst {dimension_numbers = #tpu.dot_dimension_numbers<[1], [0], [0], [1], [0, 0, 1, 1], [], []>} : vector<24x80xbf16>, vector<80x128xbf16>, vector<24x128xf32> -> vector<24x128xf32>
    %c0_3 = arith.constant 0 : index
    %c0_4 = arith.constant 0 : index
    %3 = vector.load %arg4[%c0_3, %c0_4] : memref<1x128xf32, #tpu.memory_space<vmem>>, vector<1x128xf32>
    %4 = vector.broadcast %3 : vector<1x128xf32> to vector<24x128xf32>
    %5 = arith.mulf %2, %4 : vector<24x128xf32>
    %c0_5 = arith.constant 0 : index
    %c0_6 = arith.constant 0 : index
    %6 = vector.load %arg5[%c0_5, %c0_6] : memref<1x128xf32, #tpu.memory_space<vmem>>, vector<1x128xf32>
    %7 = vector.broadcast %6 : vector<1x128xf32> to vector<24x128xf32>
    %8 = arith.addf %5, %7 : vector<24x128xf32>
    %cst_7 = arith.constant 0.000000e+00 : f32
    %9 = vector.broadcast %cst_7 : f32 to vector<24x128xf32>
    %10 = arith.maximumf %8, %9 : vector<24x128xf32>
    %11 = arith.truncf %10 : vector<24x128xf32> to vector<24x128xbf16>
    %c0_8 = arith.constant 0 : index
    %c0_9 = arith.constant 0 : index
    %12 = vector.load %arg6[%c0_8, %c0_9] : memref<24x128xbf16, #tpu.memory_space<vmem>>, vector<24x128xbf16>
    tpu.vector_store %arg6[%c0_8, %c0_9], %11 {strides = array<i32>} : memref<24x128xbf16, #tpu.memory_space<vmem>>, vector<24x128xbf16>,
    return
  }
  func.func @transform_0(%arg0: i32, %arg1: i32) -> (i32, i32) {
    %c0_i32 = arith.constant 0 : i32
    %c0_i32_0 = arith.constant 0 : i32
    return %arg0, %c0_i32 : i32, i32
  }
  func.func @transform_1(%arg0: i32, %arg1: i32) -> (i32, i32) {
    %c0_i32 = arith.constant 0 : i32
    %c0_i32_0 = arith.constant 0 : i32
    return %c0_i32, %arg1 : i32, i32
  }
  func.func @transform_2(%arg0: i32, %arg1: i32) -> (i32, i32) {
    %c0_i32 = arith.constant 0 : i32
    %c0_i32_0 = arith.constant 0 : i32
    return %c0_i32, %arg1 : i32, i32
  }
  func.func @transform_3(%arg0: i32, %arg1: i32) -> (i32, i32) {
    %c0_i32 = arith.constant 0 : i32
    %c0_i32_0 = arith.constant 0 : i32
    return %c0_i32, %arg1 : i32, i32
  }
  func.func @transform_4(%arg0: i32, %arg1: i32) -> (i32, i32) {
    %c0_i32 = arith.constant 0 : i32
    return %arg0, %arg1 : i32, i32
  }
}

module attributes {stable_mosaic.version = 11 : i64} {
  func.func @_mm_resid_kernel(%arg0: i32, %arg1: i32, %arg2: memref<24x32xbf16, #tpu.memory_space<vmem>>, %arg3: memref<32x128xbf16, #tpu.memory_space<vmem>>, %arg4: memref<1x128xf32, #tpu.memory_space<vmem>>, %arg5: memref<1x128xf32, #tpu.memory_space<vmem>>, %arg6: memref<24x128xbf16, #tpu.memory_space<vmem>>, %arg7: memref<24x128xbf16, #tpu.memory_space<vmem>>) attributes {dimension_semantics = [#tpu.dimension_semantics<parallel>, #tpu.dimension_semantics<parallel>], iteration_bounds = array<i64: 1, 1>, scalar_prefetch = 0 : i64, scratch_operands = 0 : i64, tpu.core_type = #tpu.core_type<tc>, window_params = [{transform_indices = @transform_0, window_bounds = array<i64: 24, 32>}, {transform_indices = @transform_1, window_bounds = array<i64: 32, 128>}, {transform_indices = @transform_2, window_bounds = array<i64: 1, 128>}, {transform_indices = @transform_3, window_bounds = array<i64: 1, 128>}, {transform_indices = @transform_4, window_bounds = array<i64: 24, 128>}, {transform_indices = @transform_5, window_bounds = array<i64: 24, 128>}]} {
    %c0 = arith.constant 0 : index
    %c0_0 = arith.constant 0 : index
    %0 = vector.load %arg2[%c0, %c0_0] : memref<24x32xbf16, #tpu.memory_space<vmem>>, vector<24x32xbf16>
    %c0_1 = arith.constant 0 : index
    %c0_2 = arith.constant 0 : index
    %1 = vector.load %arg3[%c0_1, %c0_2] : memref<32x128xbf16, #tpu.memory_space<vmem>>, vector<32x128xbf16>
    %cst = arith.constant dense<0.000000e+00> : vector<24x128xf32>
    %2 = tpu.matmul %0, %1, %cst {dimension_numbers = #tpu.dot_dimension_numbers<[1], [0], [0], [1], [0, 0, 1, 1], [], []>} : vector<24x32xbf16>, vector<32x128xbf16>, vector<24x128xf32> -> vector<24x128xf32>
    %c0_3 = arith.constant 0 : index
    %c0_4 = arith.constant 0 : index
    %3 = vector.load %arg4[%c0_3, %c0_4] : memref<1x128xf32, #tpu.memory_space<vmem>>, vector<1x128xf32>
    %4 = vector.broadcast %3 : vector<1x128xf32> to vector<24x128xf32>
    %5 = arith.mulf %2, %4 : vector<24x128xf32>
    %c0_5 = arith.constant 0 : index
    %c0_6 = arith.constant 0 : index
    %6 = vector.load %arg5[%c0_5, %c0_6] : memref<1x128xf32, #tpu.memory_space<vmem>>, vector<1x128xf32>
    %7 = vector.broadcast %6 : vector<1x128xf32> to vector<24x128xf32>
    %8 = arith.addf %5, %7 : vector<24x128xf32>
    %c0_7 = arith.constant 0 : index
    %c0_8 = arith.constant 0 : index
    %9 = vector.load %arg6[%c0_7, %c0_8] : memref<24x128xbf16, #tpu.memory_space<vmem>>, vector<24x128xbf16>
    %10 = arith.extf %9 : vector<24x128xbf16> to vector<24x128xf32>
    %cst_9 = arith.constant 1.700000e-01 : f32
    %11 = vector.broadcast %cst_9 : f32 to vector<24x128xf32>
    %12 = arith.mulf %11, %8 : vector<24x128xf32>
    %13 = arith.addf %10, %12 : vector<24x128xf32>
    %cst_10 = arith.constant 0.000000e+00 : f32
    %14 = vector.broadcast %cst_10 : f32 to vector<24x128xf32>
    %15 = arith.maximumf %13, %14 : vector<24x128xf32>
    %16 = arith.truncf %15 : vector<24x128xf32> to vector<24x128xbf16>
    %c0_11 = arith.constant 0 : index
    %c0_12 = arith.constant 0 : index
    %17 = vector.load %arg7[%c0_11, %c0_12] : memref<24x128xbf16, #tpu.memory_space<vmem>>, vector<24x128xbf16>
    tpu.vector_store %arg7[%c0_11, %c0_12], %16 {strides = array<i32>} : memref<24x128xbf16, #tpu.memory_space<vmem>>, vector<24x128xbf16>,
    return
  }
  func.func @transform_0(%arg0: i32, %arg1: i32) -> (i32, i32) {
    %c0_i32 = arith.constant 0 : i32
    %c0_i32_0 = arith.constant 0 : i32
    return %arg0, %c0_i32 : i32, i32
  }
  func.func @transform_1(%arg0: i32, %arg1: i32) -> (i32, i32) {
    %c0_i32 = arith.constant 0 : i32
    %c0_i32_0 = arith.constant 0 : i32
    return %c0_i32, %arg1 : i32, i32
  }
  func.func @transform_2(%arg0: i32, %arg1: i32) -> (i32, i32) {
    %c0_i32 = arith.constant 0 : i32
    %c0_i32_0 = arith.constant 0 : i32
    return %c0_i32, %arg1 : i32, i32
  }
  func.func @transform_3(%arg0: i32, %arg1: i32) -> (i32, i32) {
    %c0_i32 = arith.constant 0 : i32
    %c0_i32_0 = arith.constant 0 : i32
    return %c0_i32, %arg1 : i32, i32
  }
  func.func @transform_4(%arg0: i32, %arg1: i32) -> (i32, i32) {
    %c0_i32 = arith.constant 0 : i32
    return %arg0, %arg1 : i32, i32
  }
  func.func @transform_5(%arg0: i32, %arg1: i32) -> (i32, i32) {
    %c0_i32 = arith.constant 0 : i32
    return %arg0, %arg1 : i32, i32
  }
}

module attributes {stable_mosaic.version = 11 : i64} {
  func.func @_mm_kernel(%arg0: i32, %arg1: i32, %arg2: memref<8x64xbf16, #tpu.memory_space<vmem>>, %arg3: memref<64x512xbf16, #tpu.memory_space<vmem>>, %arg4: memref<1x512xf32, #tpu.memory_space<vmem>>, %arg5: memref<1x512xf32, #tpu.memory_space<vmem>>, %arg6: memref<8x512xf32, #tpu.memory_space<vmem>>) attributes {dimension_semantics = [#tpu.dimension_semantics<parallel>, #tpu.dimension_semantics<parallel>], iteration_bounds = array<i64: 1, 1>, scalar_prefetch = 0 : i64, scratch_operands = 0 : i64, tpu.core_type = #tpu.core_type<tc>, window_params = [{transform_indices = @transform_0, window_bounds = array<i64: 8, 64>}, {transform_indices = @transform_1, window_bounds = array<i64: 64, 512>}, {transform_indices = @transform_2, window_bounds = array<i64: 1, 512>}, {transform_indices = @transform_3, window_bounds = array<i64: 1, 512>}, {transform_indices = @transform_4, window_bounds = array<i64: 8, 512>}]} {
    %c0 = arith.constant 0 : index
    %c0_0 = arith.constant 0 : index
    %0 = vector.load %arg2[%c0, %c0_0] : memref<8x64xbf16, #tpu.memory_space<vmem>>, vector<8x64xbf16>
    %c0_1 = arith.constant 0 : index
    %c0_2 = arith.constant 0 : index
    %1 = vector.load %arg3[%c0_1, %c0_2] : memref<64x512xbf16, #tpu.memory_space<vmem>>, vector<64x512xbf16>
    %cst = arith.constant dense<0.000000e+00> : vector<8x512xf32>
    %2 = tpu.matmul %0, %1, %cst {dimension_numbers = #tpu.dot_dimension_numbers<[1], [0], [0], [1], [0, 0, 1, 1], [], []>} : vector<8x64xbf16>, vector<64x512xbf16>, vector<8x512xf32> -> vector<8x512xf32>
    %c0_3 = arith.constant 0 : index
    %c0_4 = arith.constant 0 : index
    %3 = vector.load %arg4[%c0_3, %c0_4] : memref<1x512xf32, #tpu.memory_space<vmem>>, vector<1x512xf32>
    %4 = vector.broadcast %3 : vector<1x512xf32> to vector<8x512xf32>
    %5 = arith.mulf %2, %4 : vector<8x512xf32>
    %c0_5 = arith.constant 0 : index
    %c0_6 = arith.constant 0 : index
    %6 = vector.load %arg5[%c0_5, %c0_6] : memref<1x512xf32, #tpu.memory_space<vmem>>, vector<1x512xf32>
    %7 = vector.broadcast %6 : vector<1x512xf32> to vector<8x512xf32>
    %8 = arith.addf %5, %7 : vector<8x512xf32>
    %9 = arith.mulf %8, %8 : vector<8x512xf32>
    %cst_7 = arith.constant dense<0.000000e+00> : vector<8xf32>
    %10 = vector.multi_reduction <add>, %9, %cst_7 [1] : vector<8x512xf32> to vector<8xf32>
    %11 = vector.shape_cast %10 : vector<8xf32> to vector<8x1xf32>
    %12 = math.sqrt %11 : vector<8x1xf32>
    %cst_8 = arith.constant 9.99999996E-13 : f32
    %13 = vector.broadcast %cst_8 : f32 to vector<8x1xf32>
    %14 = arith.maximumf %12, %13 : vector<8x1xf32>
    %15 = vector.broadcast %14 : vector<8x1xf32> to vector<8x512xf32>
    %16 = arith.divf %8, %15 : vector<8x512xf32>
    %c0_9 = arith.constant 0 : index
    %c0_10 = arith.constant 0 : index
    %17 = vector.load %arg6[%c0_9, %c0_10] : memref<8x512xf32, #tpu.memory_space<vmem>>, vector<8x512xf32>
    tpu.vector_store %arg6[%c0_9, %c0_10], %16 {strides = array<i32>} : memref<8x512xf32, #tpu.memory_space<vmem>>, vector<8x512xf32>,
    return
  }
  func.func @transform_0(%arg0: i32, %arg1: i32) -> (i32, i32) {
    %c0_i32 = arith.constant 0 : i32
    %c0_i32_0 = arith.constant 0 : i32
    return %arg0, %c0_i32 : i32, i32
  }
  func.func @transform_1(%arg0: i32, %arg1: i32) -> (i32, i32) {
    %c0_i32 = arith.constant 0 : i32
    %c0_i32_0 = arith.constant 0 : i32
    return %c0_i32, %arg1 : i32, i32
  }
  func.func @transform_2(%arg0: i32, %arg1: i32) -> (i32, i32) {
    %c0_i32 = arith.constant 0 : i32
    %c0_i32_0 = arith.constant 0 : i32
    return %c0_i32, %arg1 : i32, i32
  }
  func.func @transform_3(%arg0: i32, %arg1: i32) -> (i32, i32) {
    %c0_i32 = arith.constant 0 : i32
    %c0_i32_0 = arith.constant 0 : i32
    return %c0_i32, %arg1 : i32, i32
  }
  func.func @transform_4(%arg0: i32, %arg1: i32) -> (i32, i32) {
    %c0_i32 = arith.constant 0 : i32
    return %arg0, %arg1 : i32, i32
  }
}

module attributes {stable_mosaic.version = 11 : i64} {
  func.func @_avgpool_kernel(%arg0: memref<2x9x64xbf16, #tpu.memory_space<vmem>>, %arg1: memref<2x64xbf16, #tpu.memory_space<vmem>>) attributes {dimension_semantics = [], scalar_prefetch = 0 : i64, scratch_operands = 0 : i64, tpu.core_type = #tpu.core_type<tc>} {
    %c0 = arith.constant 0 : index
    %c0_0 = arith.constant 0 : index
    %c0_1 = arith.constant 0 : index
    %0 = vector.load %arg0[%c0, %c0_0, %c0_1] : memref<2x9x64xbf16, #tpu.memory_space<vmem>>, vector<2x9x64xbf16>
    %1 = arith.extf %0 : vector<2x9x64xbf16> to vector<2x9x64xf32>
    %cst = arith.constant dense<0.000000e+00> : vector<2x64xf32>
    %2 = vector.multi_reduction <add>, %1, %cst [1] : vector<2x9x64xf32> to vector<2x64xf32>
    %cst_2 = arith.constant 9.000000e+00 : f32
    %3 = vector.broadcast %cst_2 : f32 to vector<2x64xf32>
    %4 = arith.divf %2, %3 : vector<2x64xf32>
    %5 = arith.truncf %4 : vector<2x64xf32> to vector<2x64xbf16>
    %c0_3 = arith.constant 0 : index
    %c0_4 = arith.constant 0 : index
    %6 = vector.load %arg1[%c0_3, %c0_4] : memref<2x64xbf16, #tpu.memory_space<vmem>>, vector<2x64xbf16>
    tpu.vector_store %arg1[%c0_3, %c0_4], %5 {strides = array<i32>} : memref<2x64xbf16, #tpu.memory_space<vmem>>, vector<2x64xbf16>,
    return
  }
}

</mosaic_0001>

<llo_original>
// kernel: encoder_forward.16
$region0: #{encoder_forward.16}
  #allocation0 [shape = 'u32[]', space=smem, size = 0x4, offset = 0x4, fixed_abs, tag = 'smem constant byte address 0x4 - core index']
  #allocation1 [shape = 'u32[144,128]{1,0:T(1,128)}', space=vmem, size = 0x12000, scoped, tag = 'internal scratch']
  %s0 = inlined_call_operand.vmem [shape: bf16[1536,32], index: 0, kind: input, shape index: {}]
  %s1 = inlined_call_operand.vmem [shape: bf16[32,128], index: 1, kind: input, shape index: {}]
  %s2 = inlined_call_operand.vmem [shape: f32[1,128], index: 2, kind: input, shape index: {}]
  %s3 = inlined_call_operand.vmem [shape: f32[1,128], index: 3, kind: input, shape index: {}]
  %s4 = inlined_call_operand.vmem [shape: bf16[1536,128], index: 4, kind: output, shape index: {}]
  %s5 = sld [smem:[#allocation0]]
  $region49: #{encoder_forward.16} parent=0
    _
  %s7 = ssub.s32 1, %s5
  %s8 = scalar_select 0, %s7, %s5
  loop: start=0, step=1, limit=5
  $region2: #{encoder_forward.16} parent=0 // loop_pre_header
    _
  $region3: #{encoder_forward.16} parent=0 // loop_header
    %s10 = sphi 0, %s14
    %p11 = scmp.ge.s32.totalorder %s10, 5
    %s17 = sphi 0, %s29
    %s18 = sphi 0, %s25
    %s19 = sphi 0, %s17
    %s20 = sphi 0, %s18
    %s21 = sphi 0, %s19
    %s22 = sphi 0, %s20
    %s32 = sphi 0, %s34
    %s35 = sphi 0, %s32
    %s36 = sphi 0, %s35
    %s52 = sphi 0, %s36
    %s58 = sphi 0, %s60
    %s61 = sphi 0, %s58
    %s62 = sphi 0, %s61
    %s78 = sphi 0, %s62
    %s84 = sphi 0, %s86
    %s87 = sphi 0, %s84
    %s88 = sphi 0, %s87
    %s104 = sphi 0, %s88
    %s110 = sphi 0, %s112
    %s113 = sphi 0, %s110
    %s114 = sphi 0, %s113
    %s130 = sphi 0, %s114
    %s138 = sphi 0, %s140
    %s141 = sphi 0, %s138
    %s142 = sphi 0, %s141
    %s158 = sphi 0, %s142
  $region4: #{encoder_forward.16} parent=0 // loop_header_branch
    %13 = sbr.rel (%p11) target = $region8
  $region5: #{encoder_forward.16} parent=0 // loop_body
    %s15 = ssub.s32 %s10, 1
    %s16 = ssub.s32 %s10, 2
    %s23 = sadd.s32 1, %s18
    %p24 = scmp.ge.s32.totalorder %s23, 1
    %s25 = scalar_select %p24, 0, %s23
    %s26 = sadd.s32 1, %s17
    %s27 = scalar_select %p24, %s26, %s17
    %p28 = scmp.ge.s32.totalorder %s27, 3
    %s29 = scalar_select %p28, 0, %s27
    %s30 = ssub.s32 %s17, %s29
    %p31 = scmp.eq.s32.totalorder %s30, 0
    %s33 = sadd.s32 %s32, 1
    %s34 = scalar_select %p31, %s32, %s33
    %p37 = pneg %p31
    %p38 = scmp.eq.s32.totalorder %s10, 2
    %p39 = por %p37, %p38
    %p40 = scmp.ne.s32.totalorder %s32, %s35
    %p41 = scmp.eq.s32.totalorder %s10, 0
    %p42 = por %p40, %p41
    %p43 = scmp.ne.s32.totalorder %s32, %s35
    %p44 = scmp.eq.s32.totalorder %s15, 2
    %p45 = por %p43, %p44
    %p46 = scmp.ne.s32.totalorder %s35, %s36
    %p47 = scmp.eq.s32.totalorder %s15, 0
    %p48 = por %p46, %p47
    %p49 = scmp.ne.s32.totalorder %s35, %s36
    %p50 = scmp.eq.s32.totalorder %s16, 2
    %p51 = por %p49, %p50
    %p53 = scmp.ne.s32.totalorder %s36, %s52
    %p54 = scmp.eq.s32.totalorder %s16, 0
    %p55 = por %p53, %p54
    %s56 = ssub.s32 %s18, %s25
    %p57 = scmp.eq.s32.totalorder %s56, 0
    %s59 = sadd.s32 %s58, 1
    %s60 = scalar_select %p57, %s58, %s59
    %p63 = pneg %p57
    %p64 = scmp.eq.s32.totalorder %s10, 2
    %p65 = por %p63, %p64
    %p66 = scmp.ne.s32.totalorder %s58, %s61
    %p67 = scmp.eq.s32.totalorder %s10, 0
    %p68 = por %p66, %p67
    %p69 = scmp.ne.s32.totalorder %s58, %s61
    %p70 = scmp.eq.s32.totalorder %s15, 2
    %p71 = por %p69, %p70
    %p72 = scmp.ne.s32.totalorder %s61, %s62
    %p73 = scmp.eq.s32.totalorder %s15, 0
    %p74 = por %p72, %p73
    %p75 = scmp.ne.s32.totalorder %s61, %s62
    %p76 = scmp.eq.s32.totalorder %s16, 2
    %p77 = por %p75, %p76
    %p79 = scmp.ne.s32.totalorder %s62, %s78
    %p80 = scmp.eq.s32.totalorder %s16, 0
    %p81 = por %p79, %p80
    %s82 = ssub.s32 %s18, %s25
    %p83 = scmp.eq.s32.totalorder %s82, 0
    %s85 = sadd.s32 %s84, 1
    %s86 = scalar_select %p83, %s84, %s85
    %p89 = pneg %p83
    %p90 = scmp.eq.s32.totalorder %s10, 2
    %p91 = por %p89, %p90
    %p92 = scmp.ne.s32.totalorder %s84, %s87
    %p93 = scmp.eq.s32.totalorder %s10, 0
    %p94 = por %p92, %p93
    %p95 = scmp.ne.s32.totalorder %s84, %s87
    %p96 = scmp.eq.s32.totalorder %s15, 2
    %p97 = por %p95, %p96
    %p98 = scmp.ne.s32.totalorder %s87, %s88
    %p99 = scmp.eq.s32.totalorder %s15, 0
    %p100 = por %p98, %p99
    %p101 = scmp.ne.s32.totalorder %s87, %s88
    %p102 = scmp.eq.s32.totalorder %s16, 2
    %p103 = por %p101, %p102
    %p105 = scmp.ne.s32.totalorder %s88, %s104
    %p106 = scmp.eq.s32.totalorder %s16, 0
    %p107 = por %p105, %p106
    %s108 = ssub.s32 %s18, %s25
    %p109 = scmp.eq.s32.totalorder %s108, 0
    %s111 = sadd.s32 %s110, 1
    %s112 = scalar_select %p109, %s110, %s111
    %p115 = pneg %p109
    %p116 = scmp.eq.s32.totalorder %s10, 2
    %p117 = por %p115, %p116
    %p118 = scmp.ne.s32.totalorder %s110, %s113
    %p119 = scmp.eq.s32.totalorder %s10, 0
    %p120 = por %p118, %p119
    %p121 = scmp.ne.s32.totalorder %s110, %s113
    %p122 = scmp.eq.s32.totalorder %s15, 2
    %p123 = por %p121, %p122
    %p124 = scmp.ne.s32.totalorder %s113, %s114
    %p125 = scmp.eq.s32.totalorder %s15, 0
    %p126 = por %p124, %p125
    %p127 = scmp.ne.s32.totalorder %s113, %s114
    %p128 = scmp.eq.s32.totalorder %s16, 2
    %p129 = por %p127, %p128
    %p131 = scmp.ne.s32.totalorder %s114, %s130
    %p132 = scmp.eq.s32.totalorder %s16, 0
    %p133 = por %p131, %p132
    %s134 = ssub.s32 %s17, %s29
    %s135 = ssub.s32 %s18, %s25
    %s136 = sor.u32 %s134, %s135
    %p137 = scmp.eq.s32.totalorder %s136, 0
    %s139 = sadd.s32 %s138, 1
    %s140 = scalar_select %p137, %s138, %s139
    %p143 = pneg %p137
    %p144 = scmp.eq.s32.totalorder %s10, 2
    %p145 = por %p143, %p144
    %p146 = scmp.ne.s32.totalorder %s138, %s141
    %p147 = scmp.eq.s32.totalorder %s10, 0
    %p148 = por %p146, %p147
    %p149 = scmp.ne.s32.totalorder %s138, %s141
    %p150 = scmp.eq.s32.totalorder %s15, 2
    %p151 = por %p149, %p150
    %p152 = scmp.ne.s32.totalorder %s141, %s142
    %p153 = scmp.eq.s32.totalorder %s15, 0
    %p154 = por %p152, %p153
    %p155 = scmp.ne.s32.totalorder %s141, %s142
    %p156 = scmp.eq.s32.totalorder %s16, 2
    %p157 = por %p155, %p156
    %p159 = scmp.ne.s32.totalorder %s142, %s158
    %p160 = scmp.eq.s32.totalorder %s16, 0
    %p161 = por %p159, %p160
    %p162 = scmp.le.s32.totalorder 1, %s10
    %p163 = scmp.lt.s32.totalorder %s10, 4
    %p164 = pnand %p162, %p163
    %p165 = pneg %p164
    // Predicated region
    $region9: #{encoder_forward.16} parent=5 // pred_check
      _
    $region10: #{encoder_forward.16} parent=5 // pred_check_branch
      %167 = sbr.rel (%p164) target = $region12
    $region11: #{encoder_forward.16} parent=5 // pred_region
      %s168 = ssub.s32 %s10, 1
      // Predicated region
      $region13: #{encoder_forward.16} parent=11 // pred_check
        %p169 = pneg %p74
      $region14: #{encoder_forward.16} parent=11 // pred_check_branch
        %171 = sbr.rel (%p169) target = $region16
      $region15: #{encoder_forward.16} parent=11 // pred_region
        %p172 = scmp.lt.s32.totalorder %s20, 0
        %s173 = scalar_select %p172, %s20, 0
        %s174 = smul.addr %s173, 4
        %s175 = scalar_lea.vmem %s1, %s174
      $region16: #{encoder_forward.16} parent=11 // pred_fallthru
        _
      // Predicated region
      $region17: #{encoder_forward.16} parent=11 // pred_check
        %p176 = pneg %p100
      $region18: #{encoder_forward.16} parent=11 // pred_check_branch
        %178 = sbr.rel (%p176) target = $region20
      $region19: #{encoder_forward.16} parent=11 // pred_region
        %p179 = scmp.lt.s32.totalorder %s20, 0
        %s180 = scalar_select %p179, %s20, 0
        %s181 = scalar_lea.vmem %s2, %s180
      $region20: #{encoder_forward.16} parent=11 // pred_fallthru
        _
      // Predicated region
      $region21: #{encoder_forward.16} parent=11 // pred_check
        %p182 = pneg %p126
      $region22: #{encoder_forward.16} parent=11 // pred_check_branch
        %184 = sbr.rel (%p182) target = $region24
      $region23: #{encoder_forward.16} parent=11 // pred_region
        %p185 = scmp.lt.s32.totalorder %s20, 0
        %s186 = scalar_select %p185, %s20, 0
        %s187 = scalar_lea.vmem %s3, %s186
      $region24: #{encoder_forward.16} parent=11 // pred_fallthru
        _
    $region12: #{encoder_forward.16} parent=5 // pred_fallthru
      _
    %p188 = scmp.lt.s32.totalorder %s10, 3
    // Predicated region
    $region25: #{encoder_forward.16} parent=5 // pred_check
      %p189 = pneg %p188
    $region26: #{encoder_forward.16} parent=5 // pred_check_branch
      %191 = sbr.rel (%p189) target = $region28
    $region27: #{encoder_forward.16} parent=5 // pred_region
      // Predicated region
      $region29: #{encoder_forward.16} parent=27 // pred_check
        %p192 = pneg %p42
      $region30: #{encoder_forward.16} parent=27 // pred_check_branch
        %194 = sbr.rel (%p192) target = $region32
      $region31: #{encoder_forward.16} parent=27 // pred_region
        %s195 = smul.u32 64, %s17
        %p196 = scmp.lt.s32.totalorder %s195, 191
        %s197 = scalar_select %p196, %s195, 191
        %s198 = smul.addr %s197, 4
        %s199 = scalar_lea.vmem %s0, %s198
        %s200 = smul.u32 64, %s17
      $region32: #{encoder_forward.16} parent=27 // pred_fallthru
        _
    $region28: #{encoder_forward.16} parent=5 // pred_fallthru
      _
    %p201 = scmp.le.s32.totalorder 1, %s10
    %p202 = scmp.lt.s32.totalorder %s10, 4
    %p203 = pnand %p201, %p202
    %p204 = pneg %p203
    // Predicated region
    $region33: #{encoder_forward.16} parent=5 // pred_check
      _
    $region34: #{encoder_forward.16} parent=5 // pred_check_branch
      %206 = sbr.rel (%p203) target = $region36
    $region35: #{encoder_forward.16} parent=5 // pred_region
      %s207 = ssub.s32 %s10, 1
      %s208 = smul.u32 64, %s19
      %p209 = scmp.lt.s32.totalorder %s208, 191
      %s210 = scalar_select %p209, %s208, 191
      %s211 = smul.addr %s210, 4
      %s212 = scalar_lea.vmem %s0, %s211
      %p213 = pneg %p48
      %p214 = pneg %p45
      %p215 = scmp.lt.s32.totalorder %s20, 0
      %s216 = scalar_select %p215, %s20, 0
      %s217 = smul.addr %s216, 4
      %s218 = scalar_lea.vmem %s1, %s217
      %p219 = pneg %p74
      %p220 = pneg %p71
      %p221 = scmp.lt.s32.totalorder %s20, 0
      %s222 = scalar_select %p221, %s20, 0
      %s223 = scalar_lea.vmem %s2, %s222
      %p224 = pneg %p100
      %p225 = pneg %p97
      %p226 = scmp.lt.s32.totalorder %s20, 0
      %s227 = scalar_select %p226, %s20, 0
      %s228 = scalar_lea.vmem %s3, %s227
      %p229 = pneg %p126
      %p230 = pneg %p123
      %p231 = pneg %p154
      %p232 = pneg %p151
      %s233 = smul.u32 64, %s19
      %p234 = scmp.lt.s32.totalorder %s233, 191
      %s235 = scalar_select %p234, %s233, 191
      %p236 = scmp.lt.s32.totalorder %s20, 0
      %s237 = scalar_select %p236, %s20, 0
      %s238 = sadd.s32 %s237, %s235
      %s239 = smul.addr %s238, 4
      %s240 = scalar_lea.vmem %s4, %s239
      %s241 = smul.u32 64, %s19
      %p242 = scmp.lt.s32.totalorder %s241, 191
      %s243 = scalar_select %p242, %s241, 191
      %s244 = smul.addr %s243, 4
      %s245 = scalar_lea.vmem %s0, %s244
      %s246 = smul.u32 64, %s19
      %p247 = scmp.lt.s32.totalorder %s20, 0
      %s248 = scalar_select %p247, %s20, 0
      %s249 = smul.addr %s248, 4
      %s250 = scalar_lea.vmem %s1, %s249
      %p251 = scmp.lt.s32.totalorder %s20, 0
      %s252 = scalar_select %p251, %s20, 0
      %s253 = scalar_lea.vmem %s2, %s252
      %p254 = scmp.lt.s32.totalorder %s20, 0
      %s255 = scalar_select %p254, %s20, 0
      %s256 = scalar_lea.vmem %s3, %s255
      %s257 = smul.u32 64, %s19
      %p258 = scmp.lt.s32.totalorder %s257, 191
      %s259 = scalar_select %p258, %s257, 191
      %p260 = scmp.lt.s32.totalorder %s20, 0
      %s261 = scalar_select %p260, %s20, 0
      %s262 = sadd.s32 %s261, %s259
      %s263 = smul.addr %s262, 4
      %s264 = scalar_lea.vmem %s4, %s263
      %s265 = smul.u32 64, %s19
      %v267 = vld [vmem:[%s245] sm:$0xf]
      %v268 = vld [vmem:[%s245 + $0x4] sm:$0xf]
      %v269 = vld [vmem:[%s245 + $0x8] sm:$0xf]
      %v270 = vld [vmem:[%s245 + $0xc] sm:$0xf]
      %v271 = vld [vmem:[%s245 + $0x10] sm:$0xf]
      %v272 = vld [vmem:[%s245 + $0x14] sm:$0xf]
      %v273 = vld [vmem:[%s245 + $0x18] sm:$0xf]
      %v274 = vld [vmem:[%s245 + $0x1c] sm:$0xf]
      %v275 = vld [vmem:[%s245 + $0x20] sm:$0xf]
      %v276 = vld [vmem:[%s245 + $0x24] sm:$0xf]
      %v277 = vld [vmem:[%s245 + $0x28] sm:$0xf]
      %v278 = vld [vmem:[%s245 + $0x2c] sm:$0xf]
      %v279 = vld [vmem:[%s245 + $0x30] sm:$0xf]
      %v280 = vld [vmem:[%s245 + $0x34] sm:$0xf]
      %v281 = vld [vmem:[%s245 + $0x38] sm:$0xf]
      %v282 = vld [vmem:[%s245 + $0x3c] sm:$0xf]
      %v283 = vld [vmem:[%s245 + $0x40] sm:$0xf]
      %v284 = vld [vmem:[%s245 + $0x44] sm:$0xf]
      %v285 = vld [vmem:[%s245 + $0x48] sm:$0xf]
      %v286 = vld [vmem:[%s245 + $0x4c] sm:$0xf]
      %v287 = vld [vmem:[%s245 + $0x50] sm:$0xf]
      %v288 = vld [vmem:[%s245 + $0x54] sm:$0xf]
      %v289 = vld [vmem:[%s245 + $0x58] sm:$0xf]
      %v290 = vld [vmem:[%s245 + $0x5c] sm:$0xf]
      %v291 = vld [vmem:[%s245 + $0x60] sm:$0xf]
      %v292 = vld [vmem:[%s245 + $0x64] sm:$0xf]
      %v293 = vld [vmem:[%s245 + $0x68] sm:$0xf]
      %v294 = vld [vmem:[%s245 + $0x6c] sm:$0xf]
      %v295 = vld [vmem:[%s245 + $0x70] sm:$0xf]
      %v296 = vld [vmem:[%s245 + $0x74] sm:$0xf]
      %v297 = vld [vmem:[%s245 + $0x78] sm:$0xf]
      %v298 = vld [vmem:[%s245 + $0x7c] sm:$0xf]
      %v299 = vld [vmem:[%s245 + $0x80] sm:$0xf]
      %v300 = vld [vmem:[%s245 + $0x84] sm:$0xf]
      %v301 = vld [vmem:[%s245 + $0x88] sm:$0xf]
      %v302 = vld [vmem:[%s245 + $0x8c] sm:$0xf]
      %v303 = vld [vmem:[%s245 + $0x90] sm:$0xf]
      %v304 = vld [vmem:[%s245 + $0x94] sm:$0xf]
      %v305 = vld [vmem:[%s245 + $0x98] sm:$0xf]
      %v306 = vld [vmem:[%s245 + $0x9c] sm:$0xf]
      %v307 = vld [vmem:[%s245 + $0xa0] sm:$0xf]
      %v308 = vld [vmem:[%s245 + $0xa4] sm:$0xf]
      %v309 = vld [vmem:[%s245 + $0xa8] sm:$0xf]
      %v310 = vld [vmem:[%s245 + $0xac] sm:$0xf]
      %v311 = vld [vmem:[%s245 + $0xb0] sm:$0xf]
      %v312 = vld [vmem:[%s245 + $0xb4] sm:$0xf]
      %v313 = vld [vmem:[%s245 + $0xb8] sm:$0xf]
      %v314 = vld [vmem:[%s245 + $0xbc] sm:$0xf]
      %v315 = vld [vmem:[%s245 + $0xc0] sm:$0xf]
      %v316 = vld [vmem:[%s245 + $0xc4] sm:$0xf]
      %v317 = vld [vmem:[%s245 + $0xc8] sm:$0xf]
      %v318 = vld [vmem:[%s245 + $0xcc] sm:$0xf]
      %v319 = vld [vmem:[%s245 + $0xd0] sm:$0xf]
      %v320 = vld [vmem:[%s245 + $0xd4] sm:$0xf]
      %v321 = vld [vmem:[%s245 + $0xd8] sm:$0xf]
      %v322 = vld [vmem:[%s245 + $0xdc] sm:$0xf]
      %v323 = vld [vmem:[%s245 + $0xe0] sm:$0xf]
      %v324 = vld [vmem:[%s245 + $0xe4] sm:$0xf]
      %v325 = vld [vmem:[%s245 + $0xe8] sm:$0xf]
      %v326 = vld [vmem:[%s245 + $0xec] sm:$0xf]
      %v327 = vld [vmem:[%s245 + $0xf0] sm:$0xf]
      %v328 = vld [vmem:[%s245 + $0xf4] sm:$0xf]
      %v329 = vld [vmem:[%s245 + $0xf8] sm:$0xf]
      %v330 = vld [vmem:[%s245 + $0xfc] sm:$0xf]
      %v331 = vld [vmem:[%s250] sm:$0xf]
      %v332 = vld [vmem:[%s250 + $0x4] sm:$0xf]
      %v333 = vld [vmem:[%s250 + $0x8] sm:$0xf]
      %v334 = vld [vmem:[%s250 + $0xc] sm:$0xf]
      %v399 = vunpack.c.l.b16 %v267
      %v400 = vunpack.c.l.b16 %v268
      %v401 = vunpack.c.l.b16 %v269
      %v402 = vunpack.c.l.b16 %v270
      %v403 = vunpack.c.l.b16 %v271
      %v404 = vunpack.c.l.b16 %v272
      %v405 = vunpack.c.l.b16 %v273
      %v406 = vunpack.c.l.b16 %v274
      %v407 = vunpack.c.l.b16 %v275
      %v408 = vunpack.c.l.b16 %v276
      %v409 = vunpack.c.l.b16 %v277
      %v410 = vunpack.c.l.b16 %v278
      %v411 = vunpack.c.l.b16 %v279
      %v412 = vunpack.c.l.b16 %v280
      %v413 = vunpack.c.l.b16 %v281
      %v414 = vunpack.c.l.b16 %v282
      %v415 = vunpack.c.l.b16 %v283
      %v416 = vunpack.c.l.b16 %v284
      %v417 = vunpack.c.l.b16 %v285
      %v418 = vunpack.c.l.b16 %v286
      %v419 = vunpack.c.l.b16 %v287
      %v420 = vunpack.c.l.b16 %v288
      %v421 = vunpack.c.l.b16 %v289
      %v422 = vunpack.c.l.b16 %v290
      %v423 = vunpack.c.l.b16 %v291
      %v424 = vunpack.c.l.b16 %v292
      %v425 = vunpack.c.l.b16 %v293
      %v426 = vunpack.c.l.b16 %v294
      %v427 = vunpack.c.l.b16 %v295
      %v428 = vunpack.c.l.b16 %v296
      %v429 = vunpack.c.l.b16 %v297
      %v430 = vunpack.c.l.b16 %v298
      %v431 = vunpack.c.l.b16 %v299
      %v432 = vunpack.c.l.b16 %v300
      %v433 = vunpack.c.l.b16 %v301
      %v434 = vunpack.c.l.b16 %v302
      %v435 = vunpack.c.l.b16 %v303
      %v436 = vunpack.c.l.b16 %v304
      %v437 = vunpack.c.l.b16 %v305
      %v438 = vunpack.c.l.b16 %v306
      %v439 = vunpack.c.l.b16 %v307
      %v440 = vunpack.c.l.b16 %v308
      %v441 = vunpack.c.l.b16 %v309
      %v442 = vunpack.c.l.b16 %v310
      %v443 = vunpack.c.l.b16 %v311
      %v444 = vunpack.c.l.b16 %v312
      %v445 = vunpack.c.l.b16 %v313
      %v446 = vunpack.c.l.b16 %v314
      %v447 = vunpack.c.l.b16 %v315
      %v448 = vunpack.c.l.b16 %v316
      %v449 = vunpack.c.l.b16 %v317
      %v450 = vunpack.c.l.b16 %v318
      %v451 = vunpack.c.l.b16 %v319
      %v452 = vunpack.c.l.b16 %v320
      %v453 = vunpack.c.l.b16 %v321
      %v454 = vunpack.c.l.b16 %v322
      %v455 = vunpack.c.l.b16 %v323
      %v456 = vunpack.c.l.b16 %v324
      %v457 = vunpack.c.l.b16 %v325
      %v458 = vunpack.c.l.b16 %v326
      %v459 = vunpack.c.l.b16 %v327
      %v460 = vunpack.c.l.b16 %v328
      %v461 = vunpack.c.l.b16 %v329
      %v462 = vunpack.c.l.b16 %v330
      %v463 = vpack.c.b16 %v400, %v399
      %v464 = vpack.c.b16 %v402, %v401
      %v465 = vpack.c.b16 %v404, %v403
      %v466 = vpack.c.b16 %v406, %v405
      %v467 = vpack.c.b16 %v408, %v407
      %v468 = vpack.c.b16 %v410, %v409
      %v469 = vpack.c.b16 %v412, %v411
      %v470 = vpack.c.b16 %v414, %v413
      %v471 = vpack.c.b16 %v416, %v415
      %v472 = vpack.c.b16 %v418, %v417
      %v473 = vpack.c.b16 %v420, %v419
      %v474 = vpack.c.b16 %v422, %v421
      %v475 = vpack.c.b16 %v424, %v423
      %v476 = vpack.c.b16 %v426, %v425
      %v477 = vpack.c.b16 %v428, %v427
      %v478 = vpack.c.b16 %v430, %v429
      %v479 = vpack.c.b16 %v432, %v431
      %v480 = vpack.c.b16 %v434, %v433
      %v481 = vpack.c.b16 %v436, %v435
      %v482 = vpack.c.b16 %v438, %v437
      %v483 = vpack.c.b16 %v440, %v439
      %v484 = vpack.c.b16 %v442, %v441
      %v485 = vpack.c.b16 %v444, %v443
      %v486 = vpack.c.b16 %v446, %v445
      %v487 = vpack.c.b16 %v448, %v447
      %v488 = vpack.c.b16 %v450, %v449
      %v489 = vpack.c.b16 %v452, %v451
      %v490 = vpack.c.b16 %v454, %v453
      %v491 = vpack.c.b16 %v456, %v455
      %v492 = vpack.c.b16 %v458, %v457
      %v493 = vpack.c.b16 %v460, %v459
      %v494 = vpack.c.b16 %v462, %v461
      %v499 = vunpack.c.l.b16 %v331
      %v500 = vunpack.c.l.b16 %v332
      %v501 = vunpack.c.l.b16 %v333
      %v502 = vunpack.c.l.b16 %v334
      %v503 = vpack.c.b16 %v500, %v499
      %v504 = vpack.c.b16 %v502, %v501
      %vm507 = vcmask 261120
      %v509 = vsel %vm507, %v463, 0
      %v512 = vsel %vm507, %v464, 0
      %v515 = vsel %vm507, %v465, 0
      %v518 = vsel %vm507, %v466, 0
      %v521 = vsel %vm507, %v467, 0
      %v524 = vsel %vm507, %v468, 0
      %v527 = vsel %vm507, %v469, 0
      %v530 = vsel %vm507, %v470, 0
      %v533 = vsel %vm507, %v471, 0
      %v536 = vsel %vm507, %v472, 0
      %v539 = vsel %vm507, %v473, 0
      %v542 = vsel %vm507, %v474, 0
      %v545 = vsel %vm507, %v475, 0
      %v548 = vsel %vm507, %v476, 0
      %v551 = vsel %vm507, %v477, 0
      %v554 = vsel %vm507, %v478, 0
      %v557 = vsel %vm507, %v479, 0
      %v560 = vsel %vm507, %v480, 0
      %v563 = vsel %vm507, %v481, 0
      %v566 = vsel %vm507, %v482, 0
      %v569 = vsel %vm507, %v483, 0
      %v572 = vsel %vm507, %v484, 0
      %v575 = vsel %vm507, %v485, 0
      %v578 = vsel %vm507, %v486, 0
      %v581 = vsel %vm507, %v487, 0
      %v584 = vsel %vm507, %v488, 0
      %v587 = vsel %vm507, %v489, 0
      %v590 = vsel %vm507, %v490, 0
      %v593 = vsel %vm507, %v491, 0
      %v596 = vsel %vm507, %v492, 0
      %v599 = vsel %vm507, %v493, 0
      %v602 = vsel %vm507, %v494, 0
      %604 = vmatprep.subr.bf16.mxu0 0
      %605 = vmatpush1.bf16.msra.mxu0 %v503
      %606 = vmatprep.subr.bf16.mxu0 0
      %607 = vmatpush1.bf16.msra.mxu0 %v504
      %608 = vmatprep.subr.bf16.mxu0 0
      %609 = vmatpush1.bf16.msra.mxu0 0
      %610 = vmatprep.subr.bf16.mxu0 0
      %611 = vmatpush1.bf16.msra.mxu0 0
      %612 = vmatprep.subr.bf16.mxu0 0
      %613 = vmatpush1.bf16.msra.mxu0 0
      %614 = vmatprep.subr.bf16.mxu0 0
      %615 = vmatpush1.bf16.msra.mxu0 0
      %616 = vmatprep.subr.bf16.mxu0 0
      %617 = vmatpush1.bf16.msra.mxu0 0
      %618 = vmatprep.subr.bf16.mxu0 0
      %619 = vmatpush1.bf16.msra.mxu0 0
      %620 = vmatprep.subr.bf16.mxu0 0
      %621 = vmatpush1.bf16.msra.mxu0 0
      %622 = vmatprep.subr.bf16.mxu0 0
      %623 = vmatpush1.bf16.msra.mxu0 0
      %624 = vmatprep.subr.bf16.mxu0 0
      %625 = vmatpush1.bf16.msra.mxu0 0
      %626 = vmatprep.subr.bf16.mxu0 0
      %627 = vmatpush1.bf16.msra.mxu0 0
      %628 = vmatprep.subr.bf16.mxu0 0
      %629 = vmatpush1.bf16.msra.mxu0 0
      %630 = vmatprep.subr.bf16.mxu0 0
      %631 = vmatpush1.bf16.msra.mxu0 0
      %632 = vmatprep.subr.bf16.mxu0 0
      %633 = vmatpush1.bf16.msra.mxu0 0
      %634 = vmatprep.subr.bf16.mxu0 0
      %635 = vmatpush1.bf16.msra.mxu0 0
      %636 = vmatprep.mubr.bf16.mxu0 0
      %637 = vmatmul.mubr.bf16.gmra.mrb[0].mxu0 %v509
      %v638 = vpop.f32.mrb[0].mxu0
      %v639 = vadd.f32 0.0, %v638
      %v640 = vpop.f32.mrb[0].mxu0
      %v641 = vpop.f32.mrb[0].mxu0
      %v642 = vadd.f32 0.0, %v641
      %v643 = vpop.f32.mrb[0].mxu0
      %644 = vmatprep.mubr.bf16.mxu0 0
      %645 = vmatmul.mubr.bf16.gmra.mrb[0].mxu0 %v512
      %v646 = vpop.f32.mrb[0].mxu0
      %v647 = vadd.f32 0.0, %v646
      %v648 = vpop.f32.mrb[0].mxu0
      %v649 = vpop.f32.mrb[0].mxu0
      %v650 = vadd.f32 0.0, %v649
      %v651 = vpop.f32.mrb[0].mxu0
      %652 = vmatprep.mubr.bf16.mxu0 0
      %653 = vmatmul.mubr.bf16.gmra.mrb[0].mxu0 %v515
      %v654 = vpop.f32.mrb[0].mxu0
      %v655 = vadd.f32 0.0, %v654
      %v656 = vpop.f32.mrb[0].mxu0
      %v657 = vpop.f32.mrb[0].mxu0
      %v658 = vadd.f32 0.0, %v657
      %v659 = vpop.f32.mrb[0].mxu0
      %660 = vmatprep.mubr.bf16.mxu0 0
      %661 = vmatmul.mubr.bf16.gmra.mrb[0].mxu0 %v518
      %v662 = vpop.f32.mrb[0].mxu0
      %v663 = vadd.f32 0.0, %v662
      %v664 = vpop.f32.mrb[0].mxu0
      %v665 = vpop.f32.mrb[0].mxu0
      %v666 = vadd.f32 0.0, %v665
      %v667 = vpop.f32.mrb[0].mxu0
      %668 = vmatprep.mubr.bf16.mxu0 0
      %669 = vmatmul.mubr.bf16.gmra.mrb[0].mxu0 %v521
      %v670 = vpop.f32.mrb[0].mxu0
      %v671 = vadd.f32 0.0, %v670
      %v672 = vpop.f32.mrb[0].mxu0
      %v673 = vpop.f32.mrb[0].mxu0
      %v674 = vadd.f32 0.0, %v673
      %v675 = vpop.f32.mrb[0].mxu0
      %676 = vmatprep.mubr.bf16.mxu0 0
      %677 = vmatmul.mubr.bf16.gmra.mrb[0].mxu0 %v524
      %v678 = vpop.f32.mrb[0].mxu0
      %v679 = vadd.f32 0.0, %v678
      %v680 = vpop.f32.mrb[0].mxu0
      %v681 = vpop.f32.mrb[0].mxu0
      %v682 = vadd.f32 0.0, %v681
      %v683 = vpop.f32.mrb[0].mxu0
      %684 = vmatprep.mubr.bf16.mxu0 0
      %685 = vmatmul.mubr.bf16.gmra.mrb[0].mxu0 %v527
      %v686 = vpop.f32.mrb[0].mxu0
      %v687 = vadd.f32 0.0, %v686
      %v688 = vpop.f32.mrb[0].mxu0
      %v689 = vpop.f32.mrb[0].mxu0
      %v690 = vadd.f32 0.0, %v689
      %v691 = vpop.f32.mrb[0].mxu0
      %692 = vmatprep.mubr.bf16.mxu0 0
      %693 = vmatmul.mubr.bf16.gmra.mrb[0].mxu0 %v530
      %v694 = vpop.f32.mrb[0].mxu0
      %v695 = vadd.f32 0.0, %v694
      %v696 = vpop.f32.mrb[0].mxu0
      %v697 = vpop.f32.mrb[0].mxu0
      %v698 = vadd.f32 0.0, %v697
      %v699 = vpop.f32.mrb[0].mxu0
      %700 = vmatprep.mubr.bf16.mxu0 0
      %701 = vmatmul.mubr.bf16.gmra.mrb[0].mxu0 %v533
      %v702 = vpop.f32.mrb[0].mxu0
      %v703 = vadd.f32 0.0, %v702
      %v704 = vpop.f32.mrb[0].mxu0
      %v705 = vpop.f32.mrb[0].mxu0
      %v706 = vadd.f32 0.0, %v705
      %v707 = vpop.f32.mrb[0].mxu0
      %708 = vmatprep.mubr.bf16.mxu0 0
      %709 = vmatmul.mubr.bf16.gmra.mrb[0].mxu0 %v536
      %v710 = vpop.f32.mrb[0].mxu0
      %v711 = vadd.f32 0.0, %v710
      %v712 = vpop.f32.mrb[0].mxu0
      %v713 = vpop.f32.mrb[0].mxu0
      %v714 = vadd.f32 0.0, %v713
      %v715 = vpop.f32.mrb[0].mxu0
      %716 = vmatprep.mubr.bf16.mxu0 0
      %717 = vmatmul.mubr.bf16.gmra.mrb[0].mxu0 %v539
      %v718 = vpop.f32.mrb[0].mxu0
      %v719 = vadd.f32 0.0, %v718
      %v720 = vpop.f32.mrb[0].mxu0
      %v721 = vpop.f32.mrb[0].mxu0
      %v722 = vadd.f32 0.0, %v721
      %v723 = vpop.f32.mrb[0].mxu0
      %724 = vmatprep.mubr.bf16.mxu0 0
      %725 = vmatmul.mubr.bf16.gmra.mrb[0].mxu0 %v542
      %v726 = vpop.f32.mrb[0].mxu0
      %v727 = vadd.f32 0.0, %v726
      %v728 = vpop.f32.mrb[0].mxu0
      %v729 = vpop.f32.mrb[0].mxu0
      %v730 = vadd.f32 0.0, %v729
      %v731 = vpop.f32.mrb[0].mxu0
      %732 = vmatprep.mubr.bf16.mxu0 0
      %733 = vmatmul.mubr.bf16.gmra.mrb[0].mxu0 %v545
      %v734 = vpop.f32.mrb[0].mxu0
      %v735 = vadd.f32 0.0, %v734
      %v736 = vpop.f32.mrb[0].mxu0
      %v737 = vpop.f32.mrb[0].mxu0
      %v738 = vadd.f32 0.0, %v737
      %v739 = vpop.f32.mrb[0].mxu0
      %740 = vmatprep.mubr.bf16.mxu0 0
      %741 = vmatmul.mubr.bf16.gmra.mrb[0].mxu0 %v548
      %v742 = vpop.f32.mrb[0].mxu0
      %v743 = vadd.f32 0.0, %v742
      %v744 = vpop.f32.mrb[0].mxu0
      %v745 = vpop.f32.mrb[0].mxu0
      %v746 = vadd.f32 0.0, %v745
      %v747 = vpop.f32.mrb[0].mxu0
      %748 = vmatprep.mubr.bf16.mxu0 0
      %749 = vmatmul.mubr.bf16.gmra.mrb[0].mxu0 %v551
      %v750 = vpop.f32.mrb[0].mxu0
      %v751 = vadd.f32 0.0, %v750
      %v752 = vpop.f32.mrb[0].mxu0
      %v753 = vpop.f32.mrb[0].mxu0
      %v754 = vadd.f32 0.0, %v753
      %v755 = vpop.f32.mrb[0].mxu0
      %756 = vmatprep.mubr.bf16.mxu0 0
      %757 = vmatmul.mubr.bf16.gmra.mrb[0].mxu0 %v554
      %v758 = vpop.f32.mrb[0].mxu0
      %v759 = vadd.f32 0.0, %v758
      %v760 = vpop.f32.mrb[0].mxu0
      %v761 = vpop.f32.mrb[0].mxu0
      %v762 = vadd.f32 0.0, %v761
      %v763 = vpop.f32.mrb[0].mxu0
      %764 = vmatprep.mubr.bf16.mxu0 0
      %765 = vmatmul.mubr.bf16.gmra.mrb[0].mxu0 %v557
      %v766 = vpop.f32.mrb[0].mxu0
      %v767 = vadd.f32 0.0, %v766
      %v768 = vpop.f32.mrb[0].mxu0
      %v769 = vpop.f32.mrb[0].mxu0
      %v770 = vadd.f32 0.0, %v769
      %v771 = vpop.f32.mrb[0].mxu0
      %772 = vmatprep.mubr.bf16.mxu0 0
      %773 = vmatmul.mubr.bf16.gmra.mrb[0].mxu0 %v560
      %v774 = vpop.f32.mrb[0].mxu0
      %v775 = vadd.f32 0.0, %v774
      %v776 = vpop.f32.mrb[0].mxu0
      %v777 = vpop.f32.mrb[0].mxu0
      %v778 = vadd.f32 0.0, %v777
      %v779 = vpop.f32.mrb[0].mxu0
      %780 = vmatprep.mubr.bf16.mxu0 0
      %781 = vmatmul.mubr.bf16.gmra.mrb[0].mxu0 %v563
      %v782 = vpop.f32.mrb[0].mxu0
      %v783 = vadd.f32 0.0, %v782
      %v784 = vpop.f32.mrb[0].mxu0
      %v785 = vpop.f32.mrb[0].mxu0
      %v786 = vadd.f32 0.0, %v785
      %v787 = vpop.f32.mrb[0].mxu0
      %788 = vmatprep.mubr.bf16.mxu0 0
      %789 = vmatmul.mubr.bf16.gmra.mrb[0].mxu0 %v566
      %v790 = vpop.f32.mrb[0].mxu0
      %v791 = vadd.f32 0.0, %v790
      %v792 = vpop.f32.mrb[0].mxu0
      %v793 = vpop.f32.mrb[0].mxu0
      %v794 = vadd.f32 0.0, %v793
      %v795 = vpop.f32.mrb[0].mxu0
      %796 = vmatprep.mubr.bf16.mxu0 0
      %797 = vmatmul.mubr.bf16.gmra.mrb[0].mxu0 %v569
      %v798 = vpop.f32.mrb[0].mxu0
      %v799 = vadd.f32 0.0, %v798
      %v800 = vpop.f32.mrb[0].mxu0
      %v801 = vpop.f32.mrb[0].mxu0
      %v802 = vadd.f32 0.0, %v801
      %v803 = vpop.f32.mrb[0].mxu0
      %804 = vmatprep.mubr.bf16.mxu0 0
      %805 = vmatmul.mubr.bf16.gmra.mrb[0].mxu0 %v572
      %v806 = vpop.f32.mrb[0].mxu0
      %v807 = vadd.f32 0.0, %v806
      %v808 = vpop.f32.mrb[0].mxu0
      %v809 = vpop.f32.mrb[0].mxu0
      %v810 = vadd.f32 0.0, %v809
      %v811 = vpop.f32.mrb[0].mxu0
      %812 = vmatprep.mubr.bf16.mxu0 0
      %813 = vmatmul.mubr.bf16.gmra.mrb[0].mxu0 %v575
      %v814 = vpop.f32.mrb[0].mxu0
      %v815 = vadd.f32 0.0, %v814
      %v816 = vpop.f32.mrb[0].mxu0
      %v817 = vpop.f32.mrb[0].mxu0
      %v818 = vadd.f32 0.0, %v817
      %v819 = vpop.f32.mrb[0].mxu0
      %820 = vmatprep.mubr.bf16.mxu0 0
      %821 = vmatmul.mubr.bf16.gmra.mrb[0].mxu0 %v578
      %v822 = vpop.f32.mrb[0].mxu0
      %v823 = vadd.f32 0.0, %v822
      %v824 = vpop.f32.mrb[0].mxu0
      %v825 = vpop.f32.mrb[0].mxu0
      %v826 = vadd.f32 0.0, %v825
      %v827 = vpop.f32.mrb[0].mxu0
      %828 = vmatprep.mubr.bf16.mxu0 0
      %829 = vmatmul.mubr.bf16.gmra.mrb[0].mxu0 %v581
      %v830 = vpop.f32.mrb[0].mxu0
      %v831 = vadd.f32 0.0, %v830
      %v832 = vpop.f32.mrb[0].mxu0
      %v833 = vpop.f32.mrb[0].mxu0
      %v834 = vadd.f32 0.0, %v833
      %v835 = vpop.f32.mrb[0].mxu0
      %836 = vmatprep.mubr.bf16.mxu0 0
      %837 = vmatmul.mubr.bf16.gmra.mrb[0].mxu0 %v584
      %v838 = vpop.f32.mrb[0].mxu0
      %v839 = vadd.f32 0.0, %v838
      %v840 = vpop.f32.mrb[0].mxu0
      %v841 = vpop.f32.mrb[0].mxu0
      %v842 = vadd.f32 0.0, %v841
      %v843 = vpop.f32.mrb[0].mxu0
      %844 = vmatprep.mubr.bf16.mxu0 0
      %845 = vmatmul.mubr.bf16.gmra.mrb[0].mxu0 %v587
      %v846 = vpop.f32.mrb[0].mxu0
      %v847 = vadd.f32 0.0, %v846
      %v848 = vpop.f32.mrb[0].mxu0
      %v849 = vpop.f32.mrb[0].mxu0
      %v850 = vadd.f32 0.0, %v849
      %v851 = vpop.f32.mrb[0].mxu0
      %852 = vmatprep.mubr.bf16.mxu0 0
      %853 = vmatmul.mubr.bf16.gmra.mrb[0].mxu0 %v590
      %v854 = vpop.f32.mrb[0].mxu0
      %v855 = vadd.f32 0.0, %v854
      %v856 = vpop.f32.mrb[0].mxu0
      %v857 = vpop.f32.mrb[0].mxu0
      %v858 = vadd.f32 0.0, %v857
      %v859 = vpop.f32.mrb[0].mxu0
      %860 = vmatprep.mubr.bf16.mxu0 0
      %861 = vmatmul.mubr.bf16.gmra.mrb[0].mxu0 %v593
      %v862 = vpop.f32.mrb[0].mxu0
      %v863 = vadd.f32 0.0, %v862
      %v864 = vpop.f32.mrb[0].mxu0
      %v865 = vpop.f32.mrb[0].mxu0
      %v866 = vadd.f32 0.0, %v865
      %v867 = vpop.f32.mrb[0].mxu0
      %868 = vmatprep.mubr.bf16.mxu0 0
      %869 = vmatmul.mubr.bf16.gmra.mrb[0].mxu0 %v596
      %v870 = vpop.f32.mrb[0].mxu0
      %v871 = vadd.f32 0.0, %v870
      %v872 = vpop.f32.mrb[0].mxu0
      %v873 = vpop.f32.mrb[0].mxu0
      %v874 = vadd.f32 0.0, %v873
      %v875 = vpop.f32.mrb[0].mxu0
      %876 = vmatprep.mubr.bf16.mxu0 0
      %877 = vmatmul.mubr.bf16.gmra.mrb[0].mxu0 %v599
      %v878 = vpop.f32.mrb[0].mxu0
      %v879 = vadd.f32 0.0, %v878
      %v880 = vpop.f32.mrb[0].mxu0
      %v881 = vpop.f32.mrb[0].mxu0
      %v882 = vadd.f32 0.0, %v881
      %v883 = vpop.f32.mrb[0].mxu0
      %884 = vmatprep.mubr.bf16.mxu0 0
      %885 = vmatmul.mubr.bf16.gmra.mrb[0].mxu0 %v602
      %v886 = vpop.f32.mrb[0].mxu0
      %v887 = vadd.f32 0.0, %v886
      %v888 = vpop.f32.mrb[0].mxu0
      %v889 = vpop.f32.mrb[0].mxu0
      %v890 = vadd.f32 0.0, %v889
      %v891 = vpop.f32.mrb[0].mxu0
      %892 = vdwg.mxu0
      %v893 = vld [vmem:[%s253] sm:$0x1]
      %v895 = vlaneseq
      %v896 = vshrl.u32 %v895, 7
      %v897 = vsub.s32 0, %v896
      %v898 = vrot.slane %v893, %v897
      %v900 = vmul.f32 %v639, %v898
      %v901 = vmul.f32 %v642, %v898
      %v902 = vmul.f32 %v647, %v898
      %v903 = vmul.f32 %v650, %v898
      %v904 = vmul.f32 %v655, %v898
      %v905 = vmul.f32 %v658, %v898
      %v906 = vmul.f32 %v663, %v898
      %v907 = vmul.f32 %v666, %v898
      %v908 = vmul.f32 %v671, %v898
      %v909 = vmul.f32 %v674, %v898
      %v910 = vmul.f32 %v679, %v898
      %v911 = vmul.f32 %v682, %v898
      %v912 = vmul.f32 %v687, %v898
      %v913 = vmul.f32 %v690, %v898
      %v914 = vmul.f32 %v695, %v898
      %v915 = vmul.f32 %v698, %v898
      %v916 = vmul.f32 %v703, %v898
      %v917 = vmul.f32 %v706, %v898
      %v918 = vmul.f32 %v711, %v898
      %v919 = vmul.f32 %v714, %v898
      %v920 = vmul.f32 %v719, %v898
      %v921 = vmul.f32 %v722, %v898
      %v922 = vmul.f32 %v727, %v898
      %v923 = vmul.f32 %v730, %v898
      %v924 = vmul.f32 %v735, %v898
      %v925 = vmul.f32 %v738, %v898
      %v926 = vmul.f32 %v743, %v898
      %v927 = vmul.f32 %v746, %v898
      %v928 = vmul.f32 %v751, %v898
      %v929 = vmul.f32 %v754, %v898
      %v930 = vmul.f32 %v759, %v898
      %v931 = vmul.f32 %v762, %v898
      %v932 = vmul.f32 %v767, %v898
      %v933 = vmul.f32 %v770, %v898
      %v934 = vmul.f32 %v775, %v898
      %v935 = vmul.f32 %v778, %v898
      %v936 = vmul.f32 %v783, %v898
      %v937 = vmul.f32 %v786, %v898
      %v938 = vmul.f32 %v791, %v898
      %v939 = vmul.f32 %v794, %v898
      %v940 = vmul.f32 %v799, %v898
      %v941 = vmul.f32 %v802, %v898
      %v942 = vmul.f32 %v807, %v898
      %v943 = vmul.f32 %v810, %v898
      %v944 = vmul.f32 %v815, %v898
      %v945 = vmul.f32 %v818, %v898
      %v946 = vmul.f32 %v823, %v898
      %v947 = vmul.f32 %v826, %v898
      %v948 = vmul.f32 %v831, %v898
      %v949 = vmul.f32 %v834, %v898
      %v950 = vmul.f32 %v839, %v898
      %v951 = vmul.f32 %v842, %v898
      %v952 = vmul.f32 %v847, %v898
      %v953 = vmul.f32 %v850, %v898
      %v954 = vmul.f32 %v855, %v898
      %v955 = vmul.f32 %v858, %v898
      %v956 = vmul.f32 %v863, %v898
      %v957 = vmul.f32 %v866, %v898
      %v958 = vmul.f32 %v871, %v898
      %v959 = vmul.f32 %v874, %v898
      %v960 = vmul.f32 %v879, %v898
      %v961 = vmul.f32 %v882, %v898
      %v962 = vmul.f32 %v887, %v898
      %v963 = vmul.f32 %v890, %v898
      %v964 = vld [vmem:[%s256] sm:$0x1]
      %v966 = vlaneseq
      %v967 = vshrl.u32 %v966, 7
      %v968 = vsub.s32 0, %v967
      %v969 = vrot.slane %v964, %v968
      %v971 = vadd.f32 %v900, %v969
      %v972 = vadd.f32 %v901, %v969
      %v973 = vadd.f32 %v902, %v969
      %v974 = vadd.f32 %v903, %v969
      %v975 = vadd.f32 %v904, %v969
      %v976 = vadd.f32 %v905, %v969
      %v977 = vadd.f32 %v906, %v969
      %v978 = vadd.f32 %v907, %v969
      %v979 = vadd.f32 %v908, %v969
      %v980 = vadd.f32 %v909, %v969
      %v981 = vadd.f32 %v910, %v969
      %v982 = vadd.f32 %v911, %v969
      %v983 = vadd.f32 %v912, %v969
      %v984 = vadd.f32 %v913, %v969
      %v985 = vadd.f32 %v914, %v969
      %v986 = vadd.f32 %v915, %v969
      %v987 = vadd.f32 %v916, %v969
      %v988 = vadd.f32 %v917, %v969
      %v989 = vadd.f32 %v918, %v969
      %v990 = vadd.f32 %v919, %v969
      %v991 = vadd.f32 %v920, %v969
      %v992 = vadd.f32 %v921, %v969
      %v993 = vadd.f32 %v922, %v969
      %v994 = vadd.f32 %v923, %v969
      %v995 = vadd.f32 %v924, %v969
      %v996 = vadd.f32 %v925, %v969
      %v997 = vadd.f32 %v926, %v969
      %v998 = vadd.f32 %v927, %v969
      %v999 = vadd.f32 %v928, %v969
      %v1000 = vadd.f32 %v929, %v969
      %v1001 = vadd.f32 %v930, %v969
      %v1002 = vadd.f32 %v931, %v969
      %v1003 = vadd.f32 %v932, %v969
      %v1004 = vadd.f32 %v933, %v969
      %v1005 = vadd.f32 %v934, %v969
      %v1006 = vadd.f32 %v935, %v969
      %v1007 = vadd.f32 %v936, %v969
      %v1008 = vadd.f32 %v937, %v969
      %v1009 = vadd.f32 %v938, %v969
      %v1010 = vadd.f32 %v939, %v969
      %v1011 = vadd.f32 %v940, %v969
      %v1012 = vadd.f32 %v941, %v969
      %v1013 = vadd.f32 %v942, %v969
      %v1014 = vadd.f32 %v943, %v969
      %v1015 = vadd.f32 %v944, %v969
      %v1016 = vadd.f32 %v945, %v969
      %v1017 = vadd.f32 %v946, %v969
      %v1018 = vadd.f32 %v947, %v969
      %v1019 = vadd.f32 %v948, %v969
      %v1020 = vadd.f32 %v949, %v969
      %v1021 = vadd.f32 %v950, %v969
      %v1022 = vadd.f32 %v951, %v969
      %v1023 = vadd.f32 %v952, %v969
      %v1024 = vadd.f32 %v953, %v969
      %v1025 = vadd.f32 %v954, %v969
      %v1026 = vadd.f32 %v955, %v969
      %v1027 = vadd.f32 %v956, %v969
      %v1028 = vadd.f32 %v957, %v969
      %v1029 = vadd.f32 %v958, %v969
      %v1030 = vadd.f32 %v959, %v969
      %v1031 = vadd.f32 %v960, %v969
      %v1032 = vadd.f32 %v961, %v969
      %v1033 = vadd.f32 %v962, %v969
      %v1034 = vadd.f32 %v963, %v969
      %v1035 = vmax.f32 %v971, 0.0
      %v1036 = vmax.f32 %v972, 0.0
      %v1037 = vmax.f32 %v973, 0.0
      %v1038 = vmax.f32 %v974, 0.0
      %v1039 = vmax.f32 %v975, 0.0
      %v1040 = vmax.f32 %v976, 0.0
      %v1041 = vmax.f32 %v977, 0.0
      %v1042 = vmax.f32 %v978, 0.0
      %v1043 = vmax.f32 %v979, 0.0
      %v1044 = vmax.f32 %v980, 0.0
      %v1045 = vmax.f32 %v981, 0.0
      %v1046 = vmax.f32 %v982, 0.0
      %v1047 = vmax.f32 %v983, 0.0
      %v1048 = vmax.f32 %v984, 0.0
      %v1049 = vmax.f32 %v985, 0.0
      %v1050 = vmax.f32 %v986, 0.0
      %v1051 = vmax.f32 %v987, 0.0
      %v1052 = vmax.f32 %v988, 0.0
      %v1053 = vmax.f32 %v989, 0.0
      %v1054 = vmax.f32 %v990, 0.0
      %v1055 = vmax.f32 %v991, 0.0
      %v1056 = vmax.f32 %v992, 0.0
      %v1057 = vmax.f32 %v993, 0.0
      %v1058 = vmax.f32 %v994, 0.0
      %v1059 = vmax.f32 %v995, 0.0
      %v1060 = vmax.f32 %v996, 0.0
      %v1061 = vmax.f32 %v997, 0.0
      %v1062 = vmax.f32 %v998, 0.0
      %v1063 = vmax.f32 %v999, 0.0
      %v1064 = vmax.f32 %v1000, 0.0
      %v1065 = vmax.f32 %v1001, 0.0
      %v1066 = vmax.f32 %v1002, 0.0
      %v1067 = vmax.f32 %v1003, 0.0
      %v1068 = vmax.f32 %v1004, 0.0
      %v1069 = vmax.f32 %v1005, 0.0
      %v1070 = vmax.f32 %v1006, 0.0
      %v1071 = vmax.f32 %v1007, 0.0
      %v1072 = vmax.f32 %v1008, 0.0
      %v1073 = vmax.f32 %v1009, 0.0
      %v1074 = vmax.f32 %v1010, 0.0
      %v1075 = vmax.f32 %v1011, 0.0
      %v1076 = vmax.f32 %v1012, 0.0
      %v1077 = vmax.f32 %v1013, 0.0
      %v1078 = vmax.f32 %v1014, 0.0
      %v1079 = vmax.f32 %v1015, 0.0
      %v1080 = vmax.f32 %v1016, 0.0
      %v1081 = vmax.f32 %v1017, 0.0
      %v1082 = vmax.f32 %v1018, 0.0
      %v1083 = vmax.f32 %v1019, 0.0
      %v1084 = vmax.f32 %v1020, 0.0
      %v1085 = vmax.f32 %v1021, 0.0
      %v1086 = vmax.f32 %v1022, 0.0
      %v1087 = vmax.f32 %v1023, 0.0
      %v1088 = vmax.f32 %v1024, 0.0
      %v1089 = vmax.f32 %v1025, 0.0
      %v1090 = vmax.f32 %v1026, 0.0
      %v1091 = vmax.f32 %v1027, 0.0
      %v1092 = vmax.f32 %v1028, 0.0
      %v1093 = vmax.f32 %v1029, 0.0
      %v1094 = vmax.f32 %v1030, 0.0
      %v1095 = vmax.f32 %v1031, 0.0
      %v1096 = vmax.f32 %v1032, 0.0
      %v1097 = vmax.f32 %v1033, 0.0
      %v1098 = vmax.f32 %v1034, 0.0
      %v1099 = vpack.c.bf16 %v1036, %v1035
      %v1100 = vpack.c.bf16 %v1038, %v1037
      %v1101 = vpack.c.bf16 %v1040, %v1039
      %v1102 = vpack.c.bf16 %v1042, %v1041
      %v1103 = vpack.c.bf16 %v1044, %v1043
      %v1104 = vpack.c.bf16 %v1046, %v1045
      %v1105 = vpack.c.bf16 %v1048, %v1047
      %v1106 = vpack.c.bf16 %v1050, %v1049
      %v1107 = vpack.c.bf16 %v1052, %v1051
      %v1108 = vpack.c.bf16 %v1054, %v1053
      %v1109 = vpack.c.bf16 %v1056, %v1055
      %v1110 = vpack.c.bf16 %v1058, %v1057
      %v1111 = vpack.c.bf16 %v1060, %v1059
      %v1112 = vpack.c.bf16 %v1062, %v1061
      %v1113 = vpack.c.bf16 %v1064, %v1063
      %v1114 = vpack.c.bf16 %v1066, %v1065
      %v1115 = vpack.c.bf16 %v1068, %v1067
      %v1116 = vpack.c.bf16 %v1070, %v1069
      %v1117 = vpack.c.bf16 %v1072, %v1071
      %v1118 = vpack.c.bf16 %v1074, %v1073
      %v1119 = vpack.c.bf16 %v1076, %v1075
      %v1120 = vpack.c.bf16 %v1078, %v1077
      %v1121 = vpack.c.bf16 %v1080, %v1079
      %v1122 = vpack.c.bf16 %v1082, %v1081
      %v1123 = vpack.c.bf16 %v1084, %v1083
      %v1124 = vpack.c.bf16 %v1086, %v1085
      %v1125 = vpack.c.bf16 %v1088, %v1087
      %v1126 = vpack.c.bf16 %v1090, %v1089
      %v1127 = vpack.c.bf16 %v1092, %v1091
      %v1128 = vpack.c.bf16 %v1094, %v1093
      %v1129 = vpack.c.bf16 %v1096, %v1095
      %v1130 = vpack.c.bf16 %v1098, %v1097
      %v1163 = vunpack.c.l.b16 %v1099
      %v1164 = vunpack.c.h.b16 %v1099
      %v1165 = vunpack.c.l.b16 %v1100
      %v1166 = vunpack.c.h.b16 %v1100
      %v1167 = vunpack.c.l.b16 %v1101
      %v1168 = vunpack.c.h.b16 %v1101
      %v1169 = vunpack.c.l.b16 %v1102
      %v1170 = vunpack.c.h.b16 %v1102
      %v1171 = vunpack.c.l.b16 %v1103
      %v1172 = vunpack.c.h.b16 %v1103
      %v1173 = vunpack.c.l.b16 %v1104
      %v1174 = vunpack.c.h.b16 %v1104
      %v1175 = vunpack.c.l.b16 %v1105
      %v1176 = vunpack.c.h.b16 %v1105
      %v1177 = vunpack.c.l.b16 %v1106
      %v1178 = vunpack.c.h.b16 %v1106
      %v1179 = vunpack.c.l.b16 %v1107
      %v1180 = vunpack.c.h.b16 %v1107
      %v1181 = vunpack.c.l.b16 %v1108
      %v1182 = vunpack.c.h.b16 %v1108
      %v1183 = vunpack.c.l.b16 %v1109
      %v1184 = vunpack.c.h.b16 %v1109
      %v1185 = vunpack.c.l.b16 %v1110
      %v1186 = vunpack.c.h.b16 %v1110
      %v1187 = vunpack.c.l.b16 %v1111
      %v1188 = vunpack.c.h.b16 %v1111
      %v1189 = vunpack.c.l.b16 %v1112
      %v1190 = vunpack.c.h.b16 %v1112
      %v1191 = vunpack.c.l.b16 %v1113
      %v1192 = vunpack.c.h.b16 %v1113
      %v1193 = vunpack.c.l.b16 %v1114
      %v1194 = vunpack.c.h.b16 %v1114
      %v1195 = vunpack.c.l.b16 %v1115
      %v1196 = vunpack.c.h.b16 %v1115
      %v1197 = vunpack.c.l.b16 %v1116
      %v1198 = vunpack.c.h.b16 %v1116
      %v1199 = vunpack.c.l.b16 %v1117
      %v1200 = vunpack.c.h.b16 %v1117
      %v1201 = vunpack.c.l.b16 %v1118
      %v1202 = vunpack.c.h.b16 %v1118
      %v1203 = vunpack.c.l.b16 %v1119
      %v1204 = vunpack.c.h.b16 %v1119
      %v1205 = vunpack.c.l.b16 %v1120
      %v1206 = vunpack.c.h.b16 %v1120
      %v1207 = vunpack.c.l.b16 %v1121
      %v1208 = vunpack.c.h.b16 %v1121
      %v1209 = vunpack.c.l.b16 %v1122
      %v1210 = vunpack.c.h.b16 %v1122
      %v1211 = vunpack.c.l.b16 %v1123
      %v1212 = vunpack.c.h.b16 %v1123
      %v1213 = vunpack.c.l.b16 %v1124
      %v1214 = vunpack.c.h.b16 %v1124
      %v1215 = vunpack.c.l.b16 %v1125
      %v1216 = vunpack.c.h.b16 %v1125
      %v1217 = vunpack.c.l.b16 %v1126
      %v1218 = vunpack.c.h.b16 %v1126
      %v1219 = vunpack.c.l.b16 %v1127
      %v1220 = vunpack.c.h.b16 %v1127
      %v1221 = vunpack.c.l.b16 %v1128
      %v1222 = vunpack.c.h.b16 %v1128
      %v1223 = vunpack.c.l.b16 %v1129
      %v1224 = vunpack.c.h.b16 %v1129
      %v1225 = vunpack.c.l.b16 %v1130
      %v1226 = vunpack.c.h.b16 %v1130
      %v1227 = vpack.c.b16 %v1163, %v1163
      %v1228 = vpack.c.b16 %v1164, %v1164
      %v1229 = vpack.c.b16 %v1165, %v1165
      %v1230 = vpack.c.b16 %v1166, %v1166
      %v1231 = vpack.c.b16 %v1167, %v1167
      %v1232 = vpack.c.b16 %v1168, %v1168
      %v1233 = vpack.c.b16 %v1169, %v1169
      %v1234 = vpack.c.b16 %v1170, %v1170
      %v1235 = vpack.c.b16 %v1171, %v1171
      %v1236 = vpack.c.b16 %v1172, %v1172
      %v1237 = vpack.c.b16 %v1173, %v1173
      %v1238 = vpack.c.b16 %v1174, %v1174
      %v1239 = vpack.c.b16 %v1175, %v1175
      %v1240 = vpack.c.b16 %v1176, %v1176
      %v1241 = vpack.c.b16 %v1177, %v1177
      %v1242 = vpack.c.b16 %v1178, %v1178
      %v1243 = vpack.c.b16 %v1179, %v1179
      %v1244 = vpack.c.b16 %v1180, %v1180
      %v1245 = vpack.c.b16 %v1181, %v1181
      %v1246 = vpack.c.b16 %v1182, %v1182
      %v1247 = vpack.c.b16 %v1183, %v1183
      %v1248 = vpack.c.b16 %v1184, %v1184
      %v1249 = vpack.c.b16 %v1185, %v1185
      %v1250 = vpack.c.b16 %v1186, %v1186
      %v1251 = vpack.c.b16 %v1187, %v1187
      %v1252 = vpack.c.b16 %v1188, %v1188
      %v1253 = vpack.c.b16 %v1189, %v1189
      %v1254 = vpack.c.b16 %v1190, %v1190
      %v1255 = vpack.c.b16 %v1191, %v1191
      %v1256 = vpack.c.b16 %v1192, %v1192
      %v1257 = vpack.c.b16 %v1193, %v1193
      %v1258 = vpack.c.b16 %v1194, %v1194
      %v1259 = vpack.c.b16 %v1195, %v1195
      %v1260 = vpack.c.b16 %v1196, %v1196
      %v1261 = vpack.c.b16 %v1197, %v1197
      %v1262 = vpack.c.b16 %v1198, %v1198
      %v1263 = vpack.c.b16 %v1199, %v1199
      %v1264 = vpack.c.b16 %v1200, %v1200
      %v1265 = vpack.c.b16 %v1201, %v1201
      %v1266 = vpack.c.b16 %v1202, %v1202
      %v1267 = vpack.c.b16 %v1203, %v1203
      %v1268 = vpack.c.b16 %v1204, %v1204
      %v1269 = vpack.c.b16 %v1205, %v1205
      %v1270 = vpack.c.b16 %v1206, %v1206
      %v1271 = vpack.c.b16 %v1207, %v1207
      %v1272 = vpack.c.b16 %v1208, %v1208
      %v1273 = vpack.c.b16 %v1209, %v1209
      %v1274 = vpack.c.b16 %v1210, %v1210
      %v1275 = vpack.c.b16 %v1211, %v1211
      %v1276 = vpack.c.b16 %v1212, %v1212
      %v1277 = vpack.c.b16 %v1213, %v1213
      %v1278 = vpack.c.b16 %v1214, %v1214
      %v1279 = vpack.c.b16 %v1215, %v1215
      %v1280 = vpack.c.b16 %v1216, %v1216
      %v1281 = vpack.c.b16 %v1217, %v1217
      %v1282 = vpack.c.b16 %v1218, %v1218
      %v1283 = vpack.c.b16 %v1219, %v1219
      %v1284 = vpack.c.b16 %v1220, %v1220
      %v1285 = vpack.c.b16 %v1221, %v1221
      %v1286 = vpack.c.b16 %v1222, %v1222
      %v1287 = vpack.c.b16 %v1223, %v1223
      %v1288 = vpack.c.b16 %v1224, %v1224
      %v1289 = vpack.c.b16 %v1225, %v1225
      %v1290 = vpack.c.b16 %v1226, %v1226
      %1355 = vst [vmem:[%s264] sm:$0xf] %v1227
      %1356 = vst [vmem:[%s264 + $0x4] sm:$0xf] %v1228
      %1357 = vst [vmem:[%s264 + $0x8] sm:$0xf] %v1229
      %1358 = vst [vmem:[%s264 + $0xc] sm:$0xf] %v1230
      %1359 = vst [vmem:[%s264 + $0x10] sm:$0xf] %v1231
      %1360 = vst [vmem:[%s264 + $0x14] sm:$0xf] %v1232
      %1361 = vst [vmem:[%s264 + $0x18] sm:$0xf] %v1233
      %1362 = vst [vmem:[%s264 + $0x1c] sm:$0xf] %v1234
      %1363 = vst [vmem:[%s264 + $0x20] sm:$0xf] %v1235
      %1364 = vst [vmem:[%s264 + $0x24] sm:$0xf] %v1236
      %1365 = vst [vmem:[%s264 + $0x28] sm:$0xf] %v1237
      %1366 = vst [vmem:[%s264 + $0x2c] sm:$0xf] %v1238
      %1367 = vst [vmem:[%s264 + $0x30] sm:$0xf] %v1239
      %1368 = vst [vmem:[%s264 + $0x34] sm:$0xf] %v1240
      %1369 = vst [vmem:[%s264 + $0x38] sm:$0xf] %v1241
      %1370 = vst [vmem:[%s264 + $0x3c] sm:$0xf] %v1242
      %1371 = vst [vmem:[%s264 + $0x40] sm:$0xf] %v1243
      %1372 = vst [vmem:[%s264 + $0x44] sm:$0xf] %v1244
      %1373 = vst [vmem:[%s264 + $0x48] sm:$0xf] %v1245
      %1374 = vst [vmem:[%s264 + $0x4c] sm:$0xf] %v1246
      %1375 = vst [vmem:[%s264 + $0x50] sm:$0xf] %v1247
      %1376 = vst [vmem:[%s264 + $0x54] sm:$0xf] %v1248
      %1377 = vst [vmem:[%s264 + $0x58] sm:$0xf] %v1249
      %1378 = vst [vmem:[%s264 + $0x5c] sm:$0xf] %v1250
      %1379 = vst [vmem:[%s264 + $0x60] sm:$0xf] %v1251
      %1380 = vst [vmem:[%s264 + $0x64] sm:$0xf] %v1252
      %1381 = vst [vmem:[%s264 + $0x68] sm:$0xf] %v1253
      %1382 = vst [vmem:[%s264 + $0x6c] sm:$0xf] %v1254
      %1383 = vst [vmem:[%s264 + $0x70] sm:$0xf] %v1255
      %1384 = vst [vmem:[%s264 + $0x74] sm:$0xf] %v1256
      %1385 = vst [vmem:[%s264 + $0x78] sm:$0xf] %v1257
      %1386 = vst [vmem:[%s264 + $0x7c] sm:$0xf] %v1258
      %1387 = vst [vmem:[%s264 + $0x80] sm:$0xf] %v1259
      %1388 = vst [vmem:[%s264 + $0x84] sm:$0xf] %v1260
      %1389 = vst [vmem:[%s264 + $0x88] sm:$0xf] %v1261
      %1390 = vst [vmem:[%s264 + $0x8c] sm:$0xf] %v1262
      %1391 = vst [vmem:[%s264 + $0x90] sm:$0xf] %v1263
      %1392 = vst [vmem:[%s264 + $0x94] sm:$0xf] %v1264
      %1393 = vst [vmem:[%s264 + $0x98] sm:$0xf] %v1265
      %1394 = vst [vmem:[%s264 + $0x9c] sm:$0xf] %v1266
      %1395 = vst [vmem:[%s264 + $0xa0] sm:$0xf] %v1267
      %1396 = vst [vmem:[%s264 + $0xa4] sm:$0xf] %v1268
      %1397 = vst [vmem:[%s264 + $0xa8] sm:$0xf] %v1269
      %1398 = vst [vmem:[%s264 + $0xac] sm:$0xf] %v1270
      %1399 = vst [vmem:[%s264 + $0xb0] sm:$0xf] %v1271
      %1400 = vst [vmem:[%s264 + $0xb4] sm:$0xf] %v1272
      %1401 = vst [vmem:[%s264 + $0xb8] sm:$0xf] %v1273
      %1402 = vst [vmem:[%s264 + $0xbc] sm:$0xf] %v1274
      %1403 = vst [vmem:[%s264 + $0xc0] sm:$0xf] %v1275
      %1404 = vst [vmem:[%s264 + $0xc4] sm:$0xf] %v1276
      %1405 = vst [vmem:[%s264 + $0xc8] sm:$0xf] %v1277
      %1406 = vst [vmem:[%s264 + $0xcc] sm:$0xf] %v1278
      %1407 = vst [vmem:[%s264 + $0xd0] sm:$0xf] %v1279
      %1408 = vst [vmem:[%s264 + $0xd4] sm:$0xf] %v1280
      %1409 = vst [vmem:[%s264 + $0xd8] sm:$0xf] %v1281
      %1410 = vst [vmem:[%s264 + $0xdc] sm:$0xf] %v1282
      %1411 = vst [vmem:[%s264 + $0xe0] sm:$0xf] %v1283
      %1412 = vst [vmem:[%s264 + $0xe4] sm:$0xf] %v1284
      %1413 = vst [vmem:[%s264 + $0xe8] sm:$0xf] %v1285
      %1414 = vst [vmem:[%s264 + $0xec] sm:$0xf] %v1286
      %1415 = vst [vmem:[%s264 + $0xf0] sm:$0xf] %v1287
      %1416 = vst [vmem:[%s264 + $0xf4] sm:$0xf] %v1288
      %1417 = vst [vmem:[%s264 + $0xf8] sm:$0xf] %v1289
      %1418 = vst [vmem:[%s264 + $0xfc] sm:$0xf] %v1290
      %s1419 = smul.u32 64, %s19
      %p1420 = scmp.lt.s32.totalorder %s1419, 191
      %s1421 = scalar_select %p1420, %s1419, 191
      %p1422 = scmp.lt.s32.totalorder %s20, 0
      %s1423 = scalar_select %p1422, %s20, 0
      %s1424 = sadd.s32 %s1423, %s1421
      %s1425 = smul.addr %s1424, 4
      %s1426 = scalar_lea.vmem %s4, %s1425
      // Predicated region
      $region37: #{encoder_forward.16} parent=35 // pred_check
        %p1427 = pneg %p151
      $region38: #{encoder_forward.16} parent=35 // pred_check_branch
        %1429 = sbr.rel (%p1427) target = $region40
      $region39: #{encoder_forward.16} parent=35 // pred_region
        %s1430 = smul.u32 64, %s19
      $region40: #{encoder_forward.16} parent=35 // pred_fallthru
        _
    $region36: #{encoder_forward.16} parent=5 // pred_fallthru
      _
    %p1431 = scmp.le.s32.totalorder 2, %s10
    // Predicated region
    $region41: #{encoder_forward.16} parent=5 // pred_check
      %p1432 = pneg %p1431
    $region42: #{encoder_forward.16} parent=5 // pred_check_branch
      %1434 = sbr.rel (%p1432) target = $region44
    $region43: #{encoder_forward.16} parent=5 // pred_region
      %s1435 = ssub.s32 %s10, 2
      // Predicated region
      $region45: #{encoder_forward.16} parent=43 // pred_check
        %p1436 = pneg %p157
      $region46: #{encoder_forward.16} parent=43 // pred_check_branch
        %1438 = sbr.rel (%p1436) target = $region48
      $region47: #{encoder_forward.16} parent=43 // pred_region
        %s1439 = smul.u32 64, %s21
        %p1440 = scmp.lt.s32.totalorder %s1439, 191
        %s1441 = scalar_select %p1440, %s1439, 191
        %p1442 = scmp.lt.s32.totalorder %s22, 0
        %s1443 = scalar_select %p1442, %s22, 0
        %s1444 = sadd.s32 %s1443, %s1441
        %s1445 = smul.addr %s1444, 4
        %s1446 = scalar_lea.vmem %s4, %s1445
      $region48: #{encoder_forward.16} parent=43 // pred_fallthru
        _
    $region44: #{encoder_forward.16} parent=5 // pred_fallthru
      _
  $region6: #{encoder_forward.16} parent=0 // loop_footer
    %s14 = sadd.s32 1, %s10
  $region7: #{encoder_forward.16} parent=0 // loop_footer_branch
    %9 = sbr.rel target = $region3
  $region8: #{encoder_forward.16} parent=0 // loop_exit
    _

// kernel: encoder_forward.17
$region0: #{encoder_forward.17}
  #allocation0 [shape = 'u32[]', space=smem, size = 0x4, offset = 0x4, fixed_abs, tag = 'smem constant byte address 0x4 - core index']
  #allocation1 [shape = 'u32[144,128]{1,0:T(1,128)}', space=vmem, size = 0x12000, scoped, tag = 'internal scratch']
  %s0 = inlined_call_operand.vmem [shape: bf16[1024,80], index: 0, kind: input, shape index: {}]
  %s1 = inlined_call_operand.vmem [shape: bf16[80,128], index: 1, kind: input, shape index: {}]
  %s2 = inlined_call_operand.vmem [shape: f32[1,128], index: 2, kind: input, shape index: {}]
  %s3 = inlined_call_operand.vmem [shape: f32[1,128], index: 3, kind: input, shape index: {}]
  %s4 = inlined_call_operand.vmem [shape: bf16[1024,128], index: 4, kind: output, shape index: {}]
  %s5 = sld [smem:[#allocation0]]
  $region49: #{encoder_forward.17} parent=0
    _
  %s7 = ssub.s32 1, %s5
  %s8 = scalar_select 0, %s7, %s5
  loop: start=0, step=1, limit=4
  $region2: #{encoder_forward.17} parent=0 // loop_pre_header
    _
  $region3: #{encoder_forward.17} parent=0 // loop_header
    %s10 = sphi 0, %s14
    %p11 = scmp.ge.s32.totalorder %s10, 4
    %s17 = sphi 0, %s29
    %s18 = sphi 0, %s25
    %s19 = sphi 0, %s17
    %s20 = sphi 0, %s18
    %s21 = sphi 0, %s19
    %s22 = sphi 0, %s20
    %s32 = sphi 0, %s34
    %s35 = sphi 0, %s32
    %s36 = sphi 0, %s35
    %s52 = sphi 0, %s36
    %s58 = sphi 0, %s60
    %s61 = sphi 0, %s58
    %s62 = sphi 0, %s61
    %s78 = sphi 0, %s62
    %s84 = sphi 0, %s86
    %s87 = sphi 0, %s84
    %s88 = sphi 0, %s87
    %s104 = sphi 0, %s88
    %s110 = sphi 0, %s112
    %s113 = sphi 0, %s110
    %s114 = sphi 0, %s113
    %s130 = sphi 0, %s114
    %s138 = sphi 0, %s140
    %s141 = sphi 0, %s138
    %s142 = sphi 0, %s141
    %s158 = sphi 0, %s142
  $region4: #{encoder_forward.17} parent=0 // loop_header_branch
    %13 = sbr.rel (%p11) target = $region8
  $region5: #{encoder_forward.17} parent=0 // loop_body
    %s15 = ssub.s32 %s10, 1
    %s16 = ssub.s32 %s10, 2
    %s23 = sadd.s32 1, %s18
    %p24 = scmp.ge.s32.totalorder %s23, 1
    %s25 = scalar_select %p24, 0, %s23
    %s26 = sadd.s32 1, %s17
    %s27 = scalar_select %p24, %s26, %s17
    %p28 = scmp.ge.s32.totalorder %s27, 2
    %s29 = scalar_select %p28, 0, %s27
    %s30 = ssub.s32 %s17, %s29
    %p31 = scmp.eq.s32.totalorder %s30, 0
    %s33 = sadd.s32 %s32, 1
    %s34 = scalar_select %p31, %s32, %s33
    %p37 = pneg %p31
    %p38 = scmp.eq.s32.totalorder %s10, 1
    %p39 = por %p37, %p38
    %p40 = scmp.ne.s32.totalorder %s32, %s35
    %p41 = scmp.eq.s32.totalorder %s10, 0
    %p42 = por %p40, %p41
    %p43 = scmp.ne.s32.totalorder %s32, %s35
    %p44 = scmp.eq.s32.totalorder %s15, 1
    %p45 = por %p43, %p44
    %p46 = scmp.ne.s32.totalorder %s35, %s36
    %p47 = scmp.eq.s32.totalorder %s15, 0
    %p48 = por %p46, %p47
    %p49 = scmp.ne.s32.totalorder %s35, %s36
    %p50 = scmp.eq.s32.totalorder %s16, 1
    %p51 = por %p49, %p50
    %p53 = scmp.ne.s32.totalorder %s36, %s52
    %p54 = scmp.eq.s32.totalorder %s16, 0
    %p55 = por %p53, %p54
    %s56 = ssub.s32 %s18, %s25
    %p57 = scmp.eq.s32.totalorder %s56, 0
    %s59 = sadd.s32 %s58, 1
    %s60 = scalar_select %p57, %s58, %s59
    %p63 = pneg %p57
    %p64 = scmp.eq.s32.totalorder %s10, 1
    %p65 = por %p63, %p64
    %p66 = scmp.ne.s32.totalorder %s58, %s61
    %p67 = scmp.eq.s32.totalorder %s10, 0
    %p68 = por %p66, %p67
    %p69 = scmp.ne.s32.totalorder %s58, %s61
    %p70 = scmp.eq.s32.totalorder %s15, 1
    %p71 = por %p69, %p70
    %p72 = scmp.ne.s32.totalorder %s61, %s62
    %p73 = scmp.eq.s32.totalorder %s15, 0
    %p74 = por %p72, %p73
    %p75 = scmp.ne.s32.totalorder %s61, %s62
    %p76 = scmp.eq.s32.totalorder %s16, 1
    %p77 = por %p75, %p76
    %p79 = scmp.ne.s32.totalorder %s62, %s78
    %p80 = scmp.eq.s32.totalorder %s16, 0
    %p81 = por %p79, %p80
    %s82 = ssub.s32 %s18, %s25
    %p83 = scmp.eq.s32.totalorder %s82, 0
    %s85 = sadd.s32 %s84, 1
    %s86 = scalar_select %p83, %s84, %s85
    %p89 = pneg %p83
    %p90 = scmp.eq.s32.totalorder %s10, 1
    %p91 = por %p89, %p90
    %p92 = scmp.ne.s32.totalorder %s84, %s87
    %p93 = scmp.eq.s32.totalorder %s10, 0
    %p94 = por %p92, %p93
    %p95 = scmp.ne.s32.totalorder %s84, %s87
    %p96 = scmp.eq.s32.totalorder %s15, 1
    %p97 = por %p95, %p96
    %p98 = scmp.ne.s32.totalorder %s87, %s88
    %p99 = scmp.eq.s32.totalorder %s15, 0
    %p100 = por %p98, %p99
    %p101 = scmp.ne.s32.totalorder %s87, %s88
    %p102 = scmp.eq.s32.totalorder %s16, 1
    %p103 = por %p101, %p102
    %p105 = scmp.ne.s32.totalorder %s88, %s104
    %p106 = scmp.eq.s32.totalorder %s16, 0
    %p107 = por %p105, %p106
    %s108 = ssub.s32 %s18, %s25
    %p109 = scmp.eq.s32.totalorder %s108, 0
    %s111 = sadd.s32 %s110, 1
    %s112 = scalar_select %p109, %s110, %s111
    %p115 = pneg %p109
    %p116 = scmp.eq.s32.totalorder %s10, 1
    %p117 = por %p115, %p116
    %p118 = scmp.ne.s32.totalorder %s110, %s113
    %p119 = scmp.eq.s32.totalorder %s10, 0
    %p120 = por %p118, %p119
    %p121 = scmp.ne.s32.totalorder %s110, %s113
    %p122 = scmp.eq.s32.totalorder %s15, 1
    %p123 = por %p121, %p122
    %p124 = scmp.ne.s32.totalorder %s113, %s114
    %p125 = scmp.eq.s32.totalorder %s15, 0
    %p126 = por %p124, %p125
    %p127 = scmp.ne.s32.totalorder %s113, %s114
    %p128 = scmp.eq.s32.totalorder %s16, 1
    %p129 = por %p127, %p128
    %p131 = scmp.ne.s32.totalorder %s114, %s130
    %p132 = scmp.eq.s32.totalorder %s16, 0
    %p133 = por %p131, %p132
    %s134 = ssub.s32 %s17, %s29
    %s135 = ssub.s32 %s18, %s25
    %s136 = sor.u32 %s134, %s135
    %p137 = scmp.eq.s32.totalorder %s136, 0
    %s139 = sadd.s32 %s138, 1
    %s140 = scalar_select %p137, %s138, %s139
    %p143 = pneg %p137
    %p144 = scmp.eq.s32.totalorder %s10, 1
    %p145 = por %p143, %p144
    %p146 = scmp.ne.s32.totalorder %s138, %s141
    %p147 = scmp.eq.s32.totalorder %s10, 0
    %p148 = por %p146, %p147
    %p149 = scmp.ne.s32.totalorder %s138, %s141
    %p150 = scmp.eq.s32.totalorder %s15, 1
    %p151 = por %p149, %p150
    %p152 = scmp.ne.s32.totalorder %s141, %s142
    %p153 = scmp.eq.s32.totalorder %s15, 0
    %p154 = por %p152, %p153
    %p155 = scmp.ne.s32.totalorder %s141, %s142
    %p156 = scmp.eq.s32.totalorder %s16, 1
    %p157 = por %p155, %p156
    %p159 = scmp.ne.s32.totalorder %s142, %s158
    %p160 = scmp.eq.s32.totalorder %s16, 0
    %p161 = por %p159, %p160
    %p162 = scmp.le.s32.totalorder 1, %s10
    %p163 = scmp.lt.s32.totalorder %s10, 3
    %p164 = pnand %p162, %p163
    %p165 = pneg %p164
    // Predicated region
    $region9: #{encoder_forward.17} parent=5 // pred_check
      _
    $region10: #{encoder_forward.17} parent=5 // pred_check_branch
      %167 = sbr.rel (%p164) target = $region12
    $region11: #{encoder_forward.17} parent=5 // pred_region
      %s168 = ssub.s32 %s10, 1
      // Predicated region
      $region13: #{encoder_forward.17} parent=11 // pred_check
        %p169 = pneg %p74
      $region14: #{encoder_forward.17} parent=11 // pred_check_branch
        %171 = sbr.rel (%p169) target = $region16
      $region15: #{encoder_forward.17} parent=11 // pred_region
        %p172 = scmp.lt.s32.totalorder %s20, 0
        %s173 = scalar_select %p172, %s20, 0
        %s174 = smul.addr %s173, 4
        %s175 = scalar_lea.vmem %s1, %s174
      $region16: #{encoder_forward.17} parent=11 // pred_fallthru
        _
      // Predicated region
      $region17: #{encoder_forward.17} parent=11 // pred_check
        %p176 = pneg %p100
      $region18: #{encoder_forward.17} parent=11 // pred_check_branch
        %178 = sbr.rel (%p176) target = $region20
      $region19: #{encoder_forward.17} parent=11 // pred_region
        %p179 = scmp.lt.s32.totalorder %s20, 0
        %s180 = scalar_select %p179, %s20, 0
        %s181 = scalar_lea.vmem %s2, %s180
      $region20: #{encoder_forward.17} parent=11 // pred_fallthru
        _
      // Predicated region
      $region21: #{encoder_forward.17} parent=11 // pred_check
        %p182 = pneg %p126
      $region22: #{encoder_forward.17} parent=11 // pred_check_branch
        %184 = sbr.rel (%p182) target = $region24
      $region23: #{encoder_forward.17} parent=11 // pred_region
        %p185 = scmp.lt.s32.totalorder %s20, 0
        %s186 = scalar_select %p185, %s20, 0
        %s187 = scalar_lea.vmem %s3, %s186
      $region24: #{encoder_forward.17} parent=11 // pred_fallthru
        _
    $region12: #{encoder_forward.17} parent=5 // pred_fallthru
      _
    %p188 = scmp.lt.s32.totalorder %s10, 2
    // Predicated region
    $region25: #{encoder_forward.17} parent=5 // pred_check
      %p189 = pneg %p188
    $region26: #{encoder_forward.17} parent=5 // pred_check_branch
      %191 = sbr.rel (%p189) target = $region28
    $region27: #{encoder_forward.17} parent=5 // pred_region
      // Predicated region
      $region29: #{encoder_forward.17} parent=27 // pred_check
        %p192 = pneg %p42
      $region30: #{encoder_forward.17} parent=27 // pred_check_branch
        %194 = sbr.rel (%p192) target = $region32
      $region31: #{encoder_forward.17} parent=27 // pred_region
        %s195 = smul.u32 64, %s17
        %p196 = scmp.lt.s32.totalorder %s195, 127
        %s197 = scalar_select %p196, %s195, 127
        %s198 = smul.addr %s197, 4
        %s199 = scalar_lea.vmem %s0, %s198
        %s200 = smul.u32 64, %s17
      $region32: #{encoder_forward.17} parent=27 // pred_fallthru
        _
    $region28: #{encoder_forward.17} parent=5 // pred_fallthru
      _
    %p201 = scmp.le.s32.totalorder 1, %s10
    %p202 = scmp.lt.s32.totalorder %s10, 3
    %p203 = pnand %p201, %p202
    %p204 = pneg %p203
    // Predicated region
    $region33: #{encoder_forward.17} parent=5 // pred_check
      _
    $region34: #{encoder_forward.17} parent=5 // pred_check_branch
      %206 = sbr.rel (%p203) target = $region36
    $region35: #{encoder_forward.17} parent=5 // pred_region
      %s207 = ssub.s32 %s10, 1
      %s208 = smul.u32 64, %s19
      %p209 = scmp.lt.s32.totalorder %s208, 127
      %s210 = scalar_select %p209, %s208, 127
      %s211 = smul.addr %s210, 4
      %s212 = scalar_lea.vmem %s0, %s211
      %p213 = pneg %p48
      %p214 = pneg %p45
      %p215 = scmp.lt.s32.totalorder %s20, 0
      %s216 = scalar_select %p215, %s20, 0
      %s217 = smul.addr %s216, 4
      %s218 = scalar_lea.vmem %s1, %s217
      %p219 = pneg %p74
      %p220 = pneg %p71
      %p221 = scmp.lt.s32.totalorder %s20, 0
      %s222 = scalar_select %p221, %s20, 0
      %s223 = scalar_lea.vmem %s2, %s222
      %p224 = pneg %p100
      %p225 = pneg %p97
      %p226 = scmp.lt.s32.totalorder %s20, 0
      %s227 = scalar_select %p226, %s20, 0
      %s228 = scalar_lea.vmem %s3, %s227
      %p229 = pneg %p126
      %p230 = pneg %p123
      %p231 = pneg %p154
      %p232 = pneg %p151
      %s233 = smul.u32 64, %s19
      %p234 = scmp.lt.s32.totalorder %s233, 127
      %s235 = scalar_select %p234, %s233, 127
      %p236 = scmp.lt.s32.totalorder %s20, 0
      %s237 = scalar_select %p236, %s20, 0
      %s238 = sadd.s32 %s237, %s235
      %s239 = smul.addr %s238, 4
      %s240 = scalar_lea.vmem %s4, %s239
      %s241 = smul.u32 64, %s19
      %p242 = scmp.lt.s32.totalorder %s241, 127
      %s243 = scalar_select %p242, %s241, 127
      %s244 = smul.addr %s243, 4
      %s245 = scalar_lea.vmem %s0, %s244
      %s246 = smul.u32 64, %s19
      %p247 = scmp.lt.s32.totalorder %s20, 0
      %s248 = scalar_select %p247, %s20, 0
      %s249 = smul.addr %s248, 4
      %s250 = scalar_lea.vmem %s1, %s249
      %p251 = scmp.lt.s32.totalorder %s20, 0
      %s252 = scalar_select %p251, %s20, 0
      %s253 = scalar_lea.vmem %s2, %s252
      %p254 = scmp.lt.s32.totalorder %s20, 0
      %s255 = scalar_select %p254, %s20, 0
      %s256 = scalar_lea.vmem %s3, %s255
      %s257 = smul.u32 64, %s19
      %p258 = scmp.lt.s32.totalorder %s257, 127
      %s259 = scalar_select %p258, %s257, 127
      %p260 = scmp.lt.s32.totalorder %s20, 0
      %s261 = scalar_select %p260, %s20, 0
      %s262 = sadd.s32 %s261, %s259
      %s263 = smul.addr %s262, 4
      %s264 = scalar_lea.vmem %s4, %s263
      %s265 = smul.u32 64, %s19
      %v267 = vld [vmem:[%s245] sm:$0xf]
      %v268 = vld [vmem:[%s245 + $0x4] sm:$0xf]
      %v269 = vld [vmem:[%s245 + $0x8] sm:$0xf]
      %v270 = vld [vmem:[%s245 + $0xc] sm:$0xf]
      %v271 = vld [vmem:[%s245 + $0x10] sm:$0xf]
      %v272 = vld [vmem:[%s245 + $0x14] sm:$0xf]
      %v273 = vld [vmem:[%s245 + $0x18] sm:$0xf]
      %v274 = vld [vmem:[%s245 + $0x1c] sm:$0xf]
      %v275 = vld [vmem:[%s245 + $0x20] sm:$0xf]
      %v276 = vld [vmem:[%s245 + $0x24] sm:$0xf]
      %v277 = vld [vmem:[%s245 + $0x28] sm:$0xf]
      %v278 = vld [vmem:[%s245 + $0x2c] sm:$0xf]
      %v279 = vld [vmem:[%s245 + $0x30] sm:$0xf]
      %v280 = vld [vmem:[%s245 + $0x34] sm:$0xf]
      %v281 = vld [vmem:[%s245 + $0x38] sm:$0xf]
      %v282 = vld [vmem:[%s245 + $0x3c] sm:$0xf]
      %v283 = vld [vmem:[%s245 + $0x40] sm:$0xf]
      %v284 = vld [vmem:[%s245 + $0x44] sm:$0xf]
      %v285 = vld [vmem:[%s245 + $0x48] sm:$0xf]
      %v286 = vld [vmem:[%s245 + $0x4c] sm:$0xf]
      %v287 = vld [vmem:[%s245 + $0x50] sm:$0xf]
      %v288 = vld [vmem:[%s245 + $0x54] sm:$0xf]
      %v289 = vld [vmem:[%s245 + $0x58] sm:$0xf]
      %v290 = vld [vmem:[%s245 + $0x5c] sm:$0xf]
      %v291 = vld [vmem:[%s245 + $0x60] sm:$0xf]
      %v292 = vld [vmem:[%s245 + $0x64] sm:$0xf]
      %v293 = vld [vmem:[%s245 + $0x68] sm:$0xf]
      %v294 = vld [vmem:[%s245 + $0x6c] sm:$0xf]
      %v295 = vld [vmem:[%s245 + $0x70] sm:$0xf]
      %v296 = vld [vmem:[%s245 + $0x74] sm:$0xf]
      %v297 = vld [vmem:[%s245 + $0x78] sm:$0xf]
      %v298 = vld [vmem:[%s245 + $0x7c] sm:$0xf]
      %v299 = vld [vmem:[%s245 + $0x80] sm:$0xf]
      %v300 = vld [vmem:[%s245 + $0x84] sm:$0xf]
      %v301 = vld [vmem:[%s245 + $0x88] sm:$0xf]
      %v302 = vld [vmem:[%s245 + $0x8c] sm:$0xf]
      %v303 = vld [vmem:[%s245 + $0x90] sm:$0xf]
      %v304 = vld [vmem:[%s245 + $0x94] sm:$0xf]
      %v305 = vld [vmem:[%s245 + $0x98] sm:$0xf]
      %v306 = vld [vmem:[%s245 + $0x9c] sm:$0xf]
      %v307 = vld [vmem:[%s245 + $0xa0] sm:$0xf]
      %v308 = vld [vmem:[%s245 + $0xa4] sm:$0xf]
      %v309 = vld [vmem:[%s245 + $0xa8] sm:$0xf]
      %v310 = vld [vmem:[%s245 + $0xac] sm:$0xf]
      %v311 = vld [vmem:[%s245 + $0xb0] sm:$0xf]
      %v312 = vld [vmem:[%s245 + $0xb4] sm:$0xf]
      %v313 = vld [vmem:[%s245 + $0xb8] sm:$0xf]
      %v314 = vld [vmem:[%s245 + $0xbc] sm:$0xf]
      %v315 = vld [vmem:[%s245 + $0xc0] sm:$0xf]
      %v316 = vld [vmem:[%s245 + $0xc4] sm:$0xf]
      %v317 = vld [vmem:[%s245 + $0xc8] sm:$0xf]
      %v318 = vld [vmem:[%s245 + $0xcc] sm:$0xf]
      %v319 = vld [vmem:[%s245 + $0xd0] sm:$0xf]
      %v320 = vld [vmem:[%s245 + $0xd4] sm:$0xf]
      %v321 = vld [vmem:[%s245 + $0xd8] sm:$0xf]
      %v322 = vld [vmem:[%s245 + $0xdc] sm:$0xf]
      %v323 = vld [vmem:[%s245 + $0xe0] sm:$0xf]
      %v324 = vld [vmem:[%s245 + $0xe4] sm:$0xf]
      %v325 = vld [vmem:[%s245 + $0xe8] sm:$0xf]
      %v326 = vld [vmem:[%s245 + $0xec] sm:$0xf]
      %v327 = vld [vmem:[%s245 + $0xf0] sm:$0xf]
      %v328 = vld [vmem:[%s245 + $0xf4] sm:$0xf]
      %v329 = vld [vmem:[%s245 + $0xf8] sm:$0xf]
      %v330 = vld [vmem:[%s245 + $0xfc] sm:$0xf]
      %v331 = vld [vmem:[%s250] sm:$0xf]
      %v332 = vld [vmem:[%s250 + $0x4] sm:$0xf]
      %v333 = vld [vmem:[%s250 + $0x8] sm:$0xf]
      %v334 = vld [vmem:[%s250 + $0xc] sm:$0xf]
      %v335 = vld [vmem:[%s250 + $0x10] sm:$0xf]
      %v336 = vld [vmem:[%s250 + $0x14] sm:$0xf]
      %v337 = vld [vmem:[%s250 + $0x18] sm:$0xf]
      %v338 = vld [vmem:[%s250 + $0x1c] sm:$0xf]
      %v339 = vld [vmem:[%s250 + $0x20] sm:$0xf]
      %v340 = vld [vmem:[%s250 + $0x24] sm:$0xf]
      %v405 = vunpack.c.l.b16 %v267
      %v406 = vunpack.c.l.b16 %v268
      %v407 = vunpack.c.l.b16 %v269
      %v408 = vunpack.c.l.b16 %v270
      %v409 = vunpack.c.l.b16 %v271
      %v410 = vunpack.c.l.b16 %v272
      %v411 = vunpack.c.l.b16 %v273
      %v412 = vunpack.c.l.b16 %v274
      %v413 = vunpack.c.l.b16 %v275
      %v414 = vunpack.c.l.b16 %v276
      %v415 = vunpack.c.l.b16 %v277
      %v416 = vunpack.c.l.b16 %v278
      %v417 = vunpack.c.l.b16 %v279
      %v418 = vunpack.c.l.b16 %v280
      %v419 = vunpack.c.l.b16 %v281
      %v420 = vunpack.c.l.b16 %v282
      %v421 = vunpack.c.l.b16 %v283
      %v422 = vunpack.c.l.b16 %v284
      %v423 = vunpack.c.l.b16 %v285
      %v424 = vunpack.c.l.b16 %v286
      %v425 = vunpack.c.l.b16 %v287
      %v426 = vunpack.c.l.b16 %v288
      %v427 = vunpack.c.l.b16 %v289
      %v428 = vunpack.c.l.b16 %v290
      %v429 = vunpack.c.l.b16 %v291
      %v430 = vunpack.c.l.b16 %v292
      %v431 = vunpack.c.l.b16 %v293
      %v432 = vunpack.c.l.b16 %v294
      %v433 = vunpack.c.l.b16 %v295
      %v434 = vunpack.c.l.b16 %v296
      %v435 = vunpack.c.l.b16 %v297
      %v436 = vunpack.c.l.b16 %v298
      %v437 = vunpack.c.l.b16 %v299
      %v438 = vunpack.c.l.b16 %v300
      %v439 = vunpack.c.l.b16 %v301
      %v440 = vunpack.c.l.b16 %v302
      %v441 = vunpack.c.l.b16 %v303
      %v442 = vunpack.c.l.b16 %v304
      %v443 = vunpack.c.l.b16 %v305
      %v444 = vunpack.c.l.b16 %v306
      %v445 = vunpack.c.l.b16 %v307
      %v446 = vunpack.c.l.b16 %v308
      %v447 = vunpack.c.l.b16 %v309
      %v448 = vunpack.c.l.b16 %v310
      %v449 = vunpack.c.l.b16 %v311
      %v450 = vunpack.c.l.b16 %v312
      %v451 = vunpack.c.l.b16 %v313
      %v452 = vunpack.c.l.b16 %v314
      %v453 = vunpack.c.l.b16 %v315
      %v454 = vunpack.c.l.b16 %v316
      %v455 = vunpack.c.l.b16 %v317
      %v456 = vunpack.c.l.b16 %v318
      %v457 = vunpack.c.l.b16 %v319
      %v458 = vunpack.c.l.b16 %v320
      %v459 = vunpack.c.l.b16 %v321
      %v460 = vunpack.c.l.b16 %v322
      %v461 = vunpack.c.l.b16 %v323
      %v462 = vunpack.c.l.b16 %v324
      %v463 = vunpack.c.l.b16 %v325
      %v464 = vunpack.c.l.b16 %v326
      %v465 = vunpack.c.l.b16 %v327
      %v466 = vunpack.c.l.b16 %v328
      %v467 = vunpack.c.l.b16 %v329
      %v468 = vunpack.c.l.b16 %v330
      %v469 = vpack.c.b16 %v406, %v405
      %v470 = vpack.c.b16 %v408, %v407
      %v471 = vpack.c.b16 %v410, %v409
      %v472 = vpack.c.b16 %v412, %v411
      %v473 = vpack.c.b16 %v414, %v413
      %v474 = vpack.c.b16 %v416, %v415
      %v475 = vpack.c.b16 %v418, %v417
      %v476 = vpack.c.b16 %v420, %v419
      %v477 = vpack.c.b16 %v422, %v421
      %v478 = vpack.c.b16 %v424, %v423
      %v479 = vpack.c.b16 %v426, %v425
      %v480 = vpack.c.b16 %v428, %v427
      %v481 = vpack.c.b16 %v430, %v429
      %v482 = vpack.c.b16 %v432, %v431
      %v483 = vpack.c.b16 %v434, %v433
      %v484 = vpack.c.b16 %v436, %v435
      %v485 = vpack.c.b16 %v438, %v437
      %v486 = vpack.c.b16 %v440, %v439
      %v487 = vpack.c.b16 %v442, %v441
      %v488 = vpack.c.b16 %v444, %v443
      %v489 = vpack.c.b16 %v446, %v445
      %v490 = vpack.c.b16 %v448, %v447
      %v491 = vpack.c.b16 %v450, %v449
      %v492 = vpack.c.b16 %v452, %v451
      %v493 = vpack.c.b16 %v454, %v453
      %v494 = vpack.c.b16 %v456, %v455
      %v495 = vpack.c.b16 %v458, %v457
      %v496 = vpack.c.b16 %v460, %v459
      %v497 = vpack.c.b16 %v462, %v461
      %v498 = vpack.c.b16 %v464, %v463
      %v499 = vpack.c.b16 %v466, %v465
      %v500 = vpack.c.b16 %v468, %v467
      %v511 = vunpack.c.l.b16 %v331
      %v512 = vunpack.c.l.b16 %v332
      %v513 = vunpack.c.l.b16 %v333
      %v514 = vunpack.c.l.b16 %v334
      %v515 = vunpack.c.l.b16 %v335
      %v516 = vunpack.c.l.b16 %v336
      %v517 = vunpack.c.l.b16 %v337
      %v518 = vunpack.c.l.b16 %v338
      %v519 = vunpack.c.l.b16 %v339
      %v520 = vunpack.c.l.b16 %v340
      %v521 = vpack.c.b16 %v512, %v511
      %v522 = vpack.c.b16 %v514, %v513
      %v523 = vpack.c.b16 %v516, %v515
      %v524 = vpack.c.b16 %v518, %v517
      %v525 = vpack.c.b16 %v520, %v519
      %vm531 = vcmask 654336
      %v533 = vsel %vm531, %v469, 0
      %v536 = vsel %vm531, %v470, 0
      %v539 = vsel %vm531, %v471, 0
      %v542 = vsel %vm531, %v472, 0
      %v545 = vsel %vm531, %v473, 0
      %v548 = vsel %vm531, %v474, 0
      %v551 = vsel %vm531, %v475, 0
      %v554 = vsel %vm531, %v476, 0
      %v557 = vsel %vm531, %v477, 0
      %v560 = vsel %vm531, %v478, 0
      %v563 = vsel %vm531, %v479, 0
      %v566 = vsel %vm531, %v480, 0
      %v569 = vsel %vm531, %v481, 0
      %v572 = vsel %vm531, %v482, 0
      %v575 = vsel %vm531, %v483, 0
      %v578 = vsel %vm531, %v484, 0
      %v581 = vsel %vm531, %v485, 0
      %v584 = vsel %vm531, %v486, 0
      %v587 = vsel %vm531, %v487, 0
      %v590 = vsel %vm531, %v488, 0
      %v593 = vsel %vm531, %v489, 0
      %v596 = vsel %vm531, %v490, 0
      %v599 = vsel %vm531, %v491, 0
      %v602 = vsel %vm531, %v492, 0
      %v605 = vsel %vm531, %v493, 0
      %v608 = vsel %vm531, %v494, 0
      %v611 = vsel %vm531, %v495, 0
      %v614 = vsel %vm531, %v496, 0
      %v617 = vsel %vm531, %v497, 0
      %v620 = vsel %vm531, %v498, 0
      %v623 = vsel %vm531, %v499, 0
      %v626 = vsel %vm531, %v500, 0
      %628 = vmatprep.subr.bf16.mxu0 0
      %629 = vmatpush1.bf16.msra.mxu0 %v521
      %630 = vmatprep.subr.bf16.mxu0 0
      %631 = vmatpush1.bf16.msra.mxu0 %v522
      %632 = vmatprep.subr.bf16.mxu0 0
      %633 = vmatpush1.bf16.msra.mxu0 %v523
      %634 = vmatprep.subr.bf16.mxu0 0
      %635 = vmatpush1.bf16.msra.mxu0 %v524
      %636 = vmatprep.subr.bf16.mxu0 0
      %637 = vmatpush1.bf16.msra.mxu0 %v525
      %638 = vmatprep.subr.bf16.mxu0 0
      %639 = vmatpush1.bf16.msra.mxu0 0
      %640 = vmatprep.subr.bf16.mxu0 0
      %641 = vmatpush1.bf16.msra.mxu0 0
      %642 = vmatprep.subr.bf16.mxu0 0
      %643 = vmatpush1.bf16.msra.mxu0 0
      %644 = vmatprep.subr.bf16.mxu0 0
      %645 = vmatpush1.bf16.msra.mxu0 0
      %646 = vmatprep.subr.bf16.mxu0 0
      %647 = vmatpush1.bf16.msra.mxu0 0
      %648 = vmatprep.subr.bf16.mxu0 0
      %649 = vmatpush1.bf16.msra.mxu0 0
      %650 = vmatprep.subr.bf16.mxu0 0
      %651 = vmatpush1.bf16.msra.mxu0 0
      %652 = vmatprep.subr.bf16.mxu0 0
      %653 = vmatpush1.bf16.msra.mxu0 0
      %654 = vmatprep.subr.bf16.mxu0 0
      %655 = vmatpush1.bf16.msra.mxu0 0
      %656 = vmatprep.subr.bf16.mxu0 0
      %657 = vmatpush1.bf16.msra.mxu0 0
      %658 = vmatprep.subr.bf16.mxu0 0
      %659 = vmatpush1.bf16.msra.mxu0 0
      %660 = vmatprep.mubr.bf16.mxu0 0
      %661 = vmatmul.mubr.bf16.gmra.mrb[0].mxu0 %v533
      %v662 = vpop.f32.mrb[0].mxu0
      %v663 = vadd.f32 0.0, %v662
      %v664 = vpop.f32.mrb[0].mxu0
      %v665 = vpop.f32.mrb[0].mxu0
      %v666 = vadd.f32 0.0, %v665
      %v667 = vpop.f32.mrb[0].mxu0
      %668 = vmatprep.mubr.bf16.mxu0 0
      %669 = vmatmul.mubr.bf16.gmra.mrb[0].mxu0 %v536
      %v670 = vpop.f32.mrb[0].mxu0
      %v671 = vadd.f32 0.0, %v670
      %v672 = vpop.f32.mrb[0].mxu0
      %v673 = vpop.f32.mrb[0].mxu0
      %v674 = vadd.f32 0.0, %v673
      %v675 = vpop.f32.mrb[0].mxu0
      %676 = vmatprep.mubr.bf16.mxu0 0
      %677 = vmatmul.mubr.bf16.gmra.mrb[0].mxu0 %v539
      %v678 = vpop.f32.mrb[0].mxu0
      %v679 = vadd.f32 0.0, %v678
      %v680 = vpop.f32.mrb[0].mxu0
      %v681 = vpop.f32.mrb[0].mxu0
      %v682 = vadd.f32 0.0, %v681
      %v683 = vpop.f32.mrb[0].mxu0
      %684 = vmatprep.mubr.bf16.mxu0 0
      %685 = vmatmul.mubr.bf16.gmra.mrb[0].mxu0 %v542
      %v686 = vpop.f32.mrb[0].mxu0
      %v687 = vadd.f32 0.0, %v686
      %v688 = vpop.f32.mrb[0].mxu0
      %v689 = vpop.f32.mrb[0].mxu0
      %v690 = vadd.f32 0.0, %v689
      %v691 = vpop.f32.mrb[0].mxu0
      %692 = vmatprep.mubr.bf16.mxu0 0
      %693 = vmatmul.mubr.bf16.gmra.mrb[0].mxu0 %v545
      %v694 = vpop.f32.mrb[0].mxu0
      %v695 = vadd.f32 0.0, %v694
      %v696 = vpop.f32.mrb[0].mxu0
      %v697 = vpop.f32.mrb[0].mxu0
      %v698 = vadd.f32 0.0, %v697
      %v699 = vpop.f32.mrb[0].mxu0
      %700 = vmatprep.mubr.bf16.mxu0 0
      %701 = vmatmul.mubr.bf16.gmra.mrb[0].mxu0 %v548
      %v702 = vpop.f32.mrb[0].mxu0
      %v703 = vadd.f32 0.0, %v702
      %v704 = vpop.f32.mrb[0].mxu0
      %v705 = vpop.f32.mrb[0].mxu0
      %v706 = vadd.f32 0.0, %v705
      %v707 = vpop.f32.mrb[0].mxu0
      %708 = vmatprep.mubr.bf16.mxu0 0
      %709 = vmatmul.mubr.bf16.gmra.mrb[0].mxu0 %v551
      %v710 = vpop.f32.mrb[0].mxu0
      %v711 = vadd.f32 0.0, %v710
      %v712 = vpop.f32.mrb[0].mxu0
      %v713 = vpop.f32.mrb[0].mxu0
      %v714 = vadd.f32 0.0, %v713
      %v715 = vpop.f32.mrb[0].mxu0
      %716 = vmatprep.mubr.bf16.mxu0 0
      %717 = vmatmul.mubr.bf16.gmra.mrb[0].mxu0 %v554
      %v718 = vpop.f32.mrb[0].mxu0
      %v719 = vadd.f32 0.0, %v718
      %v720 = vpop.f32.mrb[0].mxu0
      %v721 = vpop.f32.mrb[0].mxu0
      %v722 = vadd.f32 0.0, %v721
      %v723 = vpop.f32.mrb[0].mxu0
      %724 = vmatprep.mubr.bf16.mxu0 0
      %725 = vmatmul.mubr.bf16.gmra.mrb[0].mxu0 %v557
      %v726 = vpop.f32.mrb[0].mxu0
      %v727 = vadd.f32 0.0, %v726
      %v728 = vpop.f32.mrb[0].mxu0
      %v729 = vpop.f32.mrb[0].mxu0
      %v730 = vadd.f32 0.0, %v729
      %v731 = vpop.f32.mrb[0].mxu0
      %732 = vmatprep.mubr.bf16.mxu0 0
      %733 = vmatmul.mubr.bf16.gmra.mrb[0].mxu0 %v560
      %v734 = vpop.f32.mrb[0].mxu0
      %v735 = vadd.f32 0.0, %v734
      %v736 = vpop.f32.mrb[0].mxu0
      %v737 = vpop.f32.mrb[0].mxu0
      %v738 = vadd.f32 0.0, %v737
      %v739 = vpop.f32.mrb[0].mxu0
      %740 = vmatprep.mubr.bf16.mxu0 0
      %741 = vmatmul.mubr.bf16.gmra.mrb[0].mxu0 %v563
      %v742 = vpop.f32.mrb[0].mxu0
      %v743 = vadd.f32 0.0, %v742
      %v744 = vpop.f32.mrb[0].mxu0
      %v745 = vpop.f32.mrb[0].mxu0
      %v746 = vadd.f32 0.0, %v745
      %v747 = vpop.f32.mrb[0].mxu0
      %748 = vmatprep.mubr.bf16.mxu0 0
      %749 = vmatmul.mubr.bf16.gmra.mrb[0].mxu0 %v566
      %v750 = vpop.f32.mrb[0].mxu0
      %v751 = vadd.f32 0.0, %v750
      %v752 = vpop.f32.mrb[0].mxu0
      %v753 = vpop.f32.mrb[0].mxu0
      %v754 = vadd.f32 0.0, %v753
      %v755 = vpop.f32.mrb[0].mxu0
      %756 = vmatprep.mubr.bf16.mxu0 0
      %757 = vmatmul.mubr.bf16.gmra.mrb[0].mxu0 %v569
      %v758 = vpop.f32.mrb[0].mxu0
      %v759 = vadd.f32 0.0, %v758
      %v760 = vpop.f32.mrb[0].mxu0
      %v761 = vpop.f32.mrb[0].mxu0
      %v762 = vadd.f32 0.0, %v761
      %v763 = vpop.f32.mrb[0].mxu0
      %764 = vmatprep.mubr.bf16.mxu0 0
      %765 = vmatmul.mubr.bf16.gmra.mrb[0].mxu0 %v572
      %v766 = vpop.f32.mrb[0].mxu0
      %v767 = vadd.f32 0.0, %v766
      %v768 = vpop.f32.mrb[0].mxu0
      %v769 = vpop.f32.mrb[0].mxu0
      %v770 = vadd.f32 0.0, %v769
      %v771 = vpop.f32.mrb[0].mxu0
      %772 = vmatprep.mubr.bf16.mxu0 0
      %773 = vmatmul.mubr.bf16.gmra.mrb[0].mxu0 %v575
      %v774 = vpop.f32.mrb[0].mxu0
      %v775 = vadd.f32 0.0, %v774
      %v776 = vpop.f32.mrb[0].mxu0
      %v777 = vpop.f32.mrb[0].mxu0
      %v778 = vadd.f32 0.0, %v777
      %v779 = vpop.f32.mrb[0].mxu0
      %780 = vmatprep.mubr.bf16.mxu0 0
      %781 = vmatmul.mubr.bf16.gmra.mrb[0].mxu0 %v578
      %v782 = vpop.f32.mrb[0].mxu0
      %v783 = vadd.f32 0.0, %v782
      %v784 = vpop.f32.mrb[0].mxu0
      %v785 = vpop.f32.mrb[0].mxu0
      %v786 = vadd.f32 0.0, %v785
      %v787 = vpop.f32.mrb[0].mxu0
      %788 = vmatprep.mubr.bf16.mxu0 0
      %789 = vmatmul.mubr.bf16.gmra.mrb[0].mxu0 %v581
      %v790 = vpop.f32.mrb[0].mxu0
      %v791 = vadd.f32 0.0, %v790
      %v792 = vpop.f32.mrb[0].mxu0
      %v793 = vpop.f32.mrb[0].mxu0
      %v794 = vadd.f32 0.0, %v793
      %v795 = vpop.f32.mrb[0].mxu0
      %796 = vmatprep.mubr.bf16.mxu0 0
      %797 = vmatmul.mubr.bf16.gmra.mrb[0].mxu0 %v584
      %v798 = vpop.f32.mrb[0].mxu0
      %v799 = vadd.f32 0.0, %v798
      %v800 = vpop.f32.mrb[0].mxu0
      %v801 = vpop.f32.mrb[0].mxu0
      %v802 = vadd.f32 0.0, %v801
      %v803 = vpop.f32.mrb[0].mxu0
      %804 = vmatprep.mubr.bf16.mxu0 0
      %805 = vmatmul.mubr.bf16.gmra.mrb[0].mxu0 %v587
      %v806 = vpop.f32.mrb[0].mxu0
      %v807 = vadd.f32 0.0, %v806
      %v808 = vpop.f32.mrb[0].mxu0
      %v809 = vpop.f32.mrb[0].mxu0
      %v810 = vadd.f32 0.0, %v809
      %v811 = vpop.f32.mrb[0].mxu0
      %812 = vmatprep.mubr.bf16.mxu0 0
      %813 = vmatmul.mubr.bf16.gmra.mrb[0].mxu0 %v590
      %v814 = vpop.f32.mrb[0].mxu0
      %v815 = vadd.f32 0.0, %v814
      %v816 = vpop.f32.mrb[0].mxu0
      %v817 = vpop.f32.mrb[0].mxu0
      %v818 = vadd.f32 0.0, %v817
      %v819 = vpop.f32.mrb[0].mxu0
      %820 = vmatprep.mubr.bf16.mxu0 0
      %821 = vmatmul.mubr.bf16.gmra.mrb[0].mxu0 %v593
      %v822 = vpop.f32.mrb[0].mxu0
      %v823 = vadd.f32 0.0, %v822
      %v824 = vpop.f32.mrb[0].mxu0
      %v825 = vpop.f32.mrb[0].mxu0
      %v826 = vadd.f32 0.0, %v825
      %v827 = vpop.f32.mrb[0].mxu0
      %828 = vmatprep.mubr.bf16.mxu0 0
      %829 = vmatmul.mubr.bf16.gmra.mrb[0].mxu0 %v596
      %v830 = vpop.f32.mrb[0].mxu0
      %v831 = vadd.f32 0.0, %v830
      %v832 = vpop.f32.mrb[0].mxu0
      %v833 = vpop.f32.mrb[0].mxu0
      %v834 = vadd.f32 0.0, %v833
      %v835 = vpop.f32.mrb[0].mxu0
      %836 = vmatprep.mubr.bf16.mxu0 0
      %837 = vmatmul.mubr.bf16.gmra.mrb[0].mxu0 %v599
      %v838 = vpop.f32.mrb[0].mxu0
      %v839 = vadd.f32 0.0, %v838
      %v840 = vpop.f32.mrb[0].mxu0
      %v841 = vpop.f32.mrb[0].mxu0
      %v842 = vadd.f32 0.0, %v841
      %v843 = vpop.f32.mrb[0].mxu0
      %844 = vmatprep.mubr.bf16.mxu0 0
      %845 = vmatmul.mubr.bf16.gmra.mrb[0].mxu0 %v602
      %v846 = vpop.f32.mrb[0].mxu0
      %v847 = vadd.f32 0.0, %v846
      %v848 = vpop.f32.mrb[0].mxu0
      %v849 = vpop.f32.mrb[0].mxu0
      %v850 = vadd.f32 0.0, %v849
      %v851 = vpop.f32.mrb[0].mxu0
      %852 = vmatprep.mubr.bf16.mxu0 0
      %853 = vmatmul.mubr.bf16.gmra.mrb[0].mxu0 %v605
      %v854 = vpop.f32.mrb[0].mxu0
      %v855 = vadd.f32 0.0, %v854
      %v856 = vpop.f32.mrb[0].mxu0
      %v857 = vpop.f32.mrb[0].mxu0
      %v858 = vadd.f32 0.0, %v857
      %v859 = vpop.f32.mrb[0].mxu0
      %860 = vmatprep.mubr.bf16.mxu0 0
      %861 = vmatmul.mubr.bf16.gmra.mrb[0].mxu0 %v608
      %v862 = vpop.f32.mrb[0].mxu0
      %v863 = vadd.f32 0.0, %v862
      %v864 = vpop.f32.mrb[0].mxu0
      %v865 = vpop.f32.mrb[0].mxu0
      %v866 = vadd.f32 0.0, %v865
      %v867 = vpop.f32.mrb[0].mxu0
      %868 = vmatprep.mubr.bf16.mxu0 0
      %869 = vmatmul.mubr.bf16.gmra.mrb[0].mxu0 %v611
      %v870 = vpop.f32.mrb[0].mxu0
      %v871 = vadd.f32 0.0, %v870
      %v872 = vpop.f32.mrb[0].mxu0
      %v873 = vpop.f32.mrb[0].mxu0
      %v874 = vadd.f32 0.0, %v873
      %v875 = vpop.f32.mrb[0].mxu0
      %876 = vmatprep.mubr.bf16.mxu0 0
      %877 = vmatmul.mubr.bf16.gmra.mrb[0].mxu0 %v614
      %v878 = vpop.f32.mrb[0].mxu0
      %v879 = vadd.f32 0.0, %v878
      %v880 = vpop.f32.mrb[0].mxu0
      %v881 = vpop.f32.mrb[0].mxu0
      %v882 = vadd.f32 0.0, %v881
      %v883 = vpop.f32.mrb[0].mxu0
      %884 = vmatprep.mubr.bf16.mxu0 0
      %885 = vmatmul.mubr.bf16.gmra.mrb[0].mxu0 %v617
      %v886 = vpop.f32.mrb[0].mxu0
      %v887 = vadd.f32 0.0, %v886
      %v888 = vpop.f32.mrb[0].mxu0
      %v889 = vpop.f32.mrb[0].mxu0
      %v890 = vadd.f32 0.0, %v889
      %v891 = vpop.f32.mrb[0].mxu0
      %892 = vmatprep.mubr.bf16.mxu0 0
      %893 = vmatmul.mubr.bf16.gmra.mrb[0].mxu0 %v620
      %v894 = vpop.f32.mrb[0].mxu0
      %v895 = vadd.f32 0.0, %v894
      %v896 = vpop.f32.mrb[0].mxu0
      %v897 = vpop.f32.mrb[0].mxu0
      %v898 = vadd.f32 0.0, %v897
      %v899 = vpop.f32.mrb[0].mxu0
      %900 = vmatprep.mubr.bf16.mxu0 0
      %901 = vmatmul.mubr.bf16.gmra.mrb[0].mxu0 %v623
      %v902 = vpop.f32.mrb[0].mxu0
      %v903 = vadd.f32 0.0, %v902
      %v904 = vpop.f32.mrb[0].mxu0
      %v905 = vpop.f32.mrb[0].mxu0
      %v906 = vadd.f32 0.0, %v905
      %v907 = vpop.f32.mrb[0].mxu0
      %908 = vmatprep.mubr.bf16.mxu0 0
      %909 = vmatmul.mubr.bf16.gmra.mrb[0].mxu0 %v626
      %v910 = vpop.f32.mrb[0].mxu0
      %v911 = vadd.f32 0.0, %v910
      %v912 = vpop.f32.mrb[0].mxu0
      %v913 = vpop.f32.mrb[0].mxu0
      %v914 = vadd.f32 0.0, %v913
      %v915 = vpop.f32.mrb[0].mxu0
      %916 = vdwg.mxu0
      %v917 = vld [vmem:[%s253] sm:$0x1]
      %v919 = vlaneseq
      %v920 = vshrl.u32 %v919, 7
      %v921 = vsub.s32 0, %v920
      %v922 = vrot.slane %v917, %v921
      %v924 = vmul.f32 %v663, %v922
      %v925 = vmul.f32 %v666, %v922
      %v926 = vmul.f32 %v671, %v922
      %v927 = vmul.f32 %v674, %v922
      %v928 = vmul.f32 %v679, %v922
      %v929 = vmul.f32 %v682, %v922
      %v930 = vmul.f32 %v687, %v922
      %v931 = vmul.f32 %v690, %v922
      %v932 = vmul.f32 %v695, %v922
      %v933 = vmul.f32 %v698, %v922
      %v934 = vmul.f32 %v703, %v922
      %v935 = vmul.f32 %v706, %v922
      %v936 = vmul.f32 %v711, %v922
      %v937 = vmul.f32 %v714, %v922
      %v938 = vmul.f32 %v719, %v922
      %v939 = vmul.f32 %v722, %v922
      %v940 = vmul.f32 %v727, %v922
      %v941 = vmul.f32 %v730, %v922
      %v942 = vmul.f32 %v735, %v922
      %v943 = vmul.f32 %v738, %v922
      %v944 = vmul.f32 %v743, %v922
      %v945 = vmul.f32 %v746, %v922
      %v946 = vmul.f32 %v751, %v922
      %v947 = vmul.f32 %v754, %v922
      %v948 = vmul.f32 %v759, %v922
      %v949 = vmul.f32 %v762, %v922
      %v950 = vmul.f32 %v767, %v922
      %v951 = vmul.f32 %v770, %v922
      %v952 = vmul.f32 %v775, %v922
      %v953 = vmul.f32 %v778, %v922
      %v954 = vmul.f32 %v783, %v922
      %v955 = vmul.f32 %v786, %v922
      %v956 = vmul.f32 %v791, %v922
      %v957 = vmul.f32 %v794, %v922
      %v958 = vmul.f32 %v799, %v922
      %v959 = vmul.f32 %v802, %v922
      %v960 = vmul.f32 %v807, %v922
      %v961 = vmul.f32 %v810, %v922
      %v962 = vmul.f32 %v815, %v922
      %v963 = vmul.f32 %v818, %v922
      %v964 = vmul.f32 %v823, %v922
      %v965 = vmul.f32 %v826, %v922
      %v966 = vmul.f32 %v831, %v922
      %v967 = vmul.f32 %v834, %v922
      %v968 = vmul.f32 %v839, %v922
      %v969 = vmul.f32 %v842, %v922
      %v970 = vmul.f32 %v847, %v922
      %v971 = vmul.f32 %v850, %v922
      %v972 = vmul.f32 %v855, %v922
      %v973 = vmul.f32 %v858, %v922
      %v974 = vmul.f32 %v863, %v922
      %v975 = vmul.f32 %v866, %v922
      %v976 = vmul.f32 %v871, %v922
      %v977 = vmul.f32 %v874, %v922
      %v978 = vmul.f32 %v879, %v922
      %v979 = vmul.f32 %v882, %v922
      %v980 = vmul.f32 %v887, %v922
      %v981 = vmul.f32 %v890, %v922
      %v982 = vmul.f32 %v895, %v922
      %v983 = vmul.f32 %v898, %v922
      %v984 = vmul.f32 %v903, %v922
      %v985 = vmul.f32 %v906, %v922
      %v986 = vmul.f32 %v911, %v922
      %v987 = vmul.f32 %v914, %v922
      %v988 = vld [vmem:[%s256] sm:$0x1]
      %v990 = vlaneseq
      %v991 = vshrl.u32 %v990, 7
      %v992 = vsub.s32 0, %v991
      %v993 = vrot.slane %v988, %v992
      %v995 = vadd.f32 %v924, %v993
      %v996 = vadd.f32 %v925, %v993
      %v997 = vadd.f32 %v926, %v993
      %v998 = vadd.f32 %v927, %v993
      %v999 = vadd.f32 %v928, %v993
      %v1000 = vadd.f32 %v929, %v993
      %v1001 = vadd.f32 %v930, %v993
      %v1002 = vadd.f32 %v931, %v993
      %v1003 = vadd.f32 %v932, %v993
      %v1004 = vadd.f32 %v933, %v993
      %v1005 = vadd.f32 %v934, %v993
      %v1006 = vadd.f32 %v935, %v993
      %v1007 = vadd.f32 %v936, %v993
      %v1008 = vadd.f32 %v937, %v993
      %v1009 = vadd.f32 %v938, %v993
      %v1010 = vadd.f32 %v939, %v993
      %v1011 = vadd.f32 %v940, %v993
      %v1012 = vadd.f32 %v941, %v993
      %v1013 = vadd.f32 %v942, %v993
      %v1014 = vadd.f32 %v943, %v993
      %v1015 = vadd.f32 %v944, %v993
      %v1016 = vadd.f32 %v945, %v993
      %v1017 = vadd.f32 %v946, %v993
      %v1018 = vadd.f32 %v947, %v993
      %v1019 = vadd.f32 %v948, %v993
      %v1020 = vadd.f32 %v949, %v993
      %v1021 = vadd.f32 %v950, %v993
      %v1022 = vadd.f32 %v951, %v993
      %v1023 = vadd.f32 %v952, %v993
      %v1024 = vadd.f32 %v953, %v993
      %v1025 = vadd.f32 %v954, %v993
      %v1026 = vadd.f32 %v955, %v993
      %v1027 = vadd.f32 %v956, %v993
      %v1028 = vadd.f32 %v957, %v993
      %v1029 = vadd.f32 %v958, %v993
      %v1030 = vadd.f32 %v959, %v993
      %v1031 = vadd.f32 %v960, %v993
      %v1032 = vadd.f32 %v961, %v993
      %v1033 = vadd.f32 %v962, %v993
      %v1034 = vadd.f32 %v963, %v993
      %v1035 = vadd.f32 %v964, %v993
      %v1036 = vadd.f32 %v965, %v993
      %v1037 = vadd.f32 %v966, %v993
      %v1038 = vadd.f32 %v967, %v993
      %v1039 = vadd.f32 %v968, %v993
      %v1040 = vadd.f32 %v969, %v993
      %v1041 = vadd.f32 %v970, %v993
      %v1042 = vadd.f32 %v971, %v993
      %v1043 = vadd.f32 %v972, %v993
      %v1044 = vadd.f32 %v973, %v993
      %v1045 = vadd.f32 %v974, %v993
      %v1046 = vadd.f32 %v975, %v993
      %v1047 = vadd.f32 %v976, %v993
      %v1048 = vadd.f32 %v977, %v993
      %v1049 = vadd.f32 %v978, %v993
      %v1050 = vadd.f32 %v979, %v993
      %v1051 = vadd.f32 %v980, %v993
      %v1052 = vadd.f32 %v981, %v993
      %v1053 = vadd.f32 %v982, %v993
      %v1054 = vadd.f32 %v983, %v993
      %v1055 = vadd.f32 %v984, %v993
      %v1056 = vadd.f32 %v985, %v993
      %v1057 = vadd.f32 %v986, %v993
      %v1058 = vadd.f32 %v987, %v993
      %v1059 = vmax.f32 %v995, 0.0
      %v1060 = vmax.f32 %v996, 0.0
      %v1061 = vmax.f32 %v997, 0.0
      %v1062 = vmax.f32 %v998, 0.0
      %v1063 = vmax.f32 %v999, 0.0
      %v1064 = vmax.f32 %v1000, 0.0
      %v1065 = vmax.f32 %v1001, 0.0
      %v1066 = vmax.f32 %v1002, 0.0
      %v1067 = vmax.f32 %v1003, 0.0
      %v1068 = vmax.f32 %v1004, 0.0
      %v1069 = vmax.f32 %v1005, 0.0
      %v1070 = vmax.f32 %v1006, 0.0
      %v1071 = vmax.f32 %v1007, 0.0
      %v1072 = vmax.f32 %v1008, 0.0
      %v1073 = vmax.f32 %v1009, 0.0
      %v1074 = vmax.f32 %v1010, 0.0
      %v1075 = vmax.f32 %v1011, 0.0
      %v1076 = vmax.f32 %v1012, 0.0
      %v1077 = vmax.f32 %v1013, 0.0
      %v1078 = vmax.f32 %v1014, 0.0
      %v1079 = vmax.f32 %v1015, 0.0
      %v1080 = vmax.f32 %v1016, 0.0
      %v1081 = vmax.f32 %v1017, 0.0
      %v1082 = vmax.f32 %v1018, 0.0
      %v1083 = vmax.f32 %v1019, 0.0
      %v1084 = vmax.f32 %v1020, 0.0
      %v1085 = vmax.f32 %v1021, 0.0
      %v1086 = vmax.f32 %v1022, 0.0
      %v1087 = vmax.f32 %v1023, 0.0
      %v1088 = vmax.f32 %v1024, 0.0
      %v1089 = vmax.f32 %v1025, 0.0
      %v1090 = vmax.f32 %v1026, 0.0
      %v1091 = vmax.f32 %v1027, 0.0
      %v1092 = vmax.f32 %v1028, 0.0
      %v1093 = vmax.f32 %v1029, 0.0
      %v1094 = vmax.f32 %v1030, 0.0
      %v1095 = vmax.f32 %v1031, 0.0
      %v1096 = vmax.f32 %v1032, 0.0
      %v1097 = vmax.f32 %v1033, 0.0
      %v1098 = vmax.f32 %v1034, 0.0
      %v1099 = vmax.f32 %v1035, 0.0
      %v1100 = vmax.f32 %v1036, 0.0
      %v1101 = vmax.f32 %v1037, 0.0
      %v1102 = vmax.f32 %v1038, 0.0
      %v1103 = vmax.f32 %v1039, 0.0
      %v1104 = vmax.f32 %v1040, 0.0
      %v1105 = vmax.f32 %v1041, 0.0
      %v1106 = vmax.f32 %v1042, 0.0
      %v1107 = vmax.f32 %v1043, 0.0
      %v1108 = vmax.f32 %v1044, 0.0
      %v1109 = vmax.f32 %v1045, 0.0
      %v1110 = vmax.f32 %v1046, 0.0
      %v1111 = vmax.f32 %v1047, 0.0
      %v1112 = vmax.f32 %v1048, 0.0
      %v1113 = vmax.f32 %v1049, 0.0
      %v1114 = vmax.f32 %v1050, 0.0
      %v1115 = vmax.f32 %v1051, 0.0
      %v1116 = vmax.f32 %v1052, 0.0
      %v1117 = vmax.f32 %v1053, 0.0
      %v1118 = vmax.f32 %v1054, 0.0
      %v1119 = vmax.f32 %v1055, 0.0
      %v1120 = vmax.f32 %v1056, 0.0
      %v1121 = vmax.f32 %v1057, 0.0
      %v1122 = vmax.f32 %v1058, 0.0
      %v1123 = vpack.c.bf16 %v1060, %v1059
      %v1124 = vpack.c.bf16 %v1062, %v1061
      %v1125 = vpack.c.bf16 %v1064, %v1063
      %v1126 = vpack.c.bf16 %v1066, %v1065
      %v1127 = vpack.c.bf16 %v1068, %v1067
      %v1128 = vpack.c.bf16 %v1070, %v1069
      %v1129 = vpack.c.bf16 %v1072, %v1071
      %v1130 = vpack.c.bf16 %v1074, %v1073
      %v1131 = vpack.c.bf16 %v1076, %v1075
      %v1132 = vpack.c.bf16 %v1078, %v1077
      %v1133 = vpack.c.bf16 %v1080, %v1079
      %v1134 = vpack.c.bf16 %v1082, %v1081
      %v1135 = vpack.c.bf16 %v1084, %v1083
      %v1136 = vpack.c.bf16 %v1086, %v1085
      %v1137 = vpack.c.bf16 %v1088, %v1087
      %v1138 = vpack.c.bf16 %v1090, %v1089
      %v1139 = vpack.c.bf16 %v1092, %v1091
      %v1140 = vpack.c.bf16 %v1094, %v1093
      %v1141 = vpack.c.bf16 %v1096, %v1095
      %v1142 = vpack.c.bf16 %v1098, %v1097
      %v1143 = vpack.c.bf16 %v1100, %v1099
      %v1144 = vpack.c.bf16 %v1102, %v1101
      %v1145 = vpack.c.bf16 %v1104, %v1103
      %v1146 = vpack.c.bf16 %v1106, %v1105
      %v1147 = vpack.c.bf16 %v1108, %v1107
      %v1148 = vpack.c.bf16 %v1110, %v1109
      %v1149 = vpack.c.bf16 %v1112, %v1111
      %v1150 = vpack.c.bf16 %v1114, %v1113
      %v1151 = vpack.c.bf16 %v1116, %v1115
      %v1152 = vpack.c.bf16 %v1118, %v1117
      %v1153 = vpack.c.bf16 %v1120, %v1119
      %v1154 = vpack.c.bf16 %v1122, %v1121
      %v1187 = vunpack.c.l.b16 %v1123
      %v1188 = vunpack.c.h.b16 %v1123
      %v1189 = vunpack.c.l.b16 %v1124
      %v1190 = vunpack.c.h.b16 %v1124
      %v1191 = vunpack.c.l.b16 %v1125
      %v1192 = vunpack.c.h.b16 %v1125
      %v1193 = vunpack.c.l.b16 %v1126
      %v1194 = vunpack.c.h.b16 %v1126
      %v1195 = vunpack.c.l.b16 %v1127
      %v1196 = vunpack.c.h.b16 %v1127
      %v1197 = vunpack.c.l.b16 %v1128
      %v1198 = vunpack.c.h.b16 %v1128
      %v1199 = vunpack.c.l.b16 %v1129
      %v1200 = vunpack.c.h.b16 %v1129
      %v1201 = vunpack.c.l.b16 %v1130
      %v1202 = vunpack.c.h.b16 %v1130
      %v1203 = vunpack.c.l.b16 %v1131
      %v1204 = vunpack.c.h.b16 %v1131
      %v1205 = vunpack.c.l.b16 %v1132
      %v1206 = vunpack.c.h.b16 %v1132
      %v1207 = vunpack.c.l.b16 %v1133
      %v1208 = vunpack.c.h.b16 %v1133
      %v1209 = vunpack.c.l.b16 %v1134
      %v1210 = vunpack.c.h.b16 %v1134
      %v1211 = vunpack.c.l.b16 %v1135
      %v1212 = vunpack.c.h.b16 %v1135
      %v1213 = vunpack.c.l.b16 %v1136
      %v1214 = vunpack.c.h.b16 %v1136
      %v1215 = vunpack.c.l.b16 %v1137
      %v1216 = vunpack.c.h.b16 %v1137
      %v1217 = vunpack.c.l.b16 %v1138
      %v1218 = vunpack.c.h.b16 %v1138
      %v1219 = vunpack.c.l.b16 %v1139
      %v1220 = vunpack.c.h.b16 %v1139
      %v1221 = vunpack.c.l.b16 %v1140
      %v1222 = vunpack.c.h.b16 %v1140
      %v1223 = vunpack.c.l.b16 %v1141
      %v1224 = vunpack.c.h.b16 %v1141
      %v1225 = vunpack.c.l.b16 %v1142
      %v1226 = vunpack.c.h.b16 %v1142
      %v1227 = vunpack.c.l.b16 %v1143
      %v1228 = vunpack.c.h.b16 %v1143
      %v1229 = vunpack.c.l.b16 %v1144
      %v1230 = vunpack.c.h.b16 %v1144
      %v1231 = vunpack.c.l.b16 %v1145
      %v1232 = vunpack.c.h.b16 %v1145
      %v1233 = vunpack.c.l.b16 %v1146
      %v1234 = vunpack.c.h.b16 %v1146
      %v1235 = vunpack.c.l.b16 %v1147
      %v1236 = vunpack.c.h.b16 %v1147
      %v1237 = vunpack.c.l.b16 %v1148
      %v1238 = vunpack.c.h.b16 %v1148
      %v1239 = vunpack.c.l.b16 %v1149
      %v1240 = vunpack.c.h.b16 %v1149
      %v1241 = vunpack.c.l.b16 %v1150
      %v1242 = vunpack.c.h.b16 %v1150
      %v1243 = vunpack.c.l.b16 %v1151
      %v1244 = vunpack.c.h.b16 %v1151
      %v1245 = vunpack.c.l.b16 %v1152
      %v1246 = vunpack.c.h.b16 %v1152
      %v1247 = vunpack.c.l.b16 %v1153
      %v1248 = vunpack.c.h.b16 %v1153
      %v1249 = vunpack.c.l.b16 %v1154
      %v1250 = vunpack.c.h.b16 %v1154
      %v1251 = vpack.c.b16 %v1187, %v1187
      %v1252 = vpack.c.b16 %v1188, %v1188
      %v1253 = vpack.c.b16 %v1189, %v1189
      %v1254 = vpack.c.b16 %v1190, %v1190
      %v1255 = vpack.c.b16 %v1191, %v1191
      %v1256 = vpack.c.b16 %v1192, %v1192
      %v1257 = vpack.c.b16 %v1193, %v1193
      %v1258 = vpack.c.b16 %v1194, %v1194
      %v1259 = vpack.c.b16 %v1195, %v1195
      %v1260 = vpack.c.b16 %v1196, %v1196
      %v1261 = vpack.c.b16 %v1197, %v1197
      %v1262 = vpack.c.b16 %v1198, %v1198
      %v1263 = vpack.c.b16 %v1199, %v1199
      %v1264 = vpack.c.b16 %v1200, %v1200
      %v1265 = vpack.c.b16 %v1201, %v1201
      %v1266 = vpack.c.b16 %v1202, %v1202
      %v1267 = vpack.c.b16 %v1203, %v1203
      %v1268 = vpack.c.b16 %v1204, %v1204
      %v1269 = vpack.c.b16 %v1205, %v1205
      %v1270 = vpack.c.b16 %v1206, %v1206
      %v1271 = vpack.c.b16 %v1207, %v1207
      %v1272 = vpack.c.b16 %v1208, %v1208
      %v1273 = vpack.c.b16 %v1209, %v1209
      %v1274 = vpack.c.b16 %v1210, %v1210
      %v1275 = vpack.c.b16 %v1211, %v1211
      %v1276 = vpack.c.b16 %v1212, %v1212
      %v1277 = vpack.c.b16 %v1213, %v1213
      %v1278 = vpack.c.b16 %v1214, %v1214
      %v1279 = vpack.c.b16 %v1215, %v1215
      %v1280 = vpack.c.b16 %v1216, %v1216
      %v1281 = vpack.c.b16 %v1217, %v1217
      %v1282 = vpack.c.b16 %v1218, %v1218
      %v1283 = vpack.c.b16 %v1219, %v1219
      %v1284 = vpack.c.b16 %v1220, %v1220
      %v1285 = vpack.c.b16 %v1221, %v1221
      %v1286 = vpack.c.b16 %v1222, %v1222
      %v1287 = vpack.c.b16 %v1223, %v1223
      %v1288 = vpack.c.b16 %v1224, %v1224
      %v1289 = vpack.c.b16 %v1225, %v1225
      %v1290 = vpack.c.b16 %v1226, %v1226
      %v1291 = vpack.c.b16 %v1227, %v1227
      %v1292 = vpack.c.b16 %v1228, %v1228
      %v1293 = vpack.c.b16 %v1229, %v1229
      %v1294 = vpack.c.b16 %v1230, %v1230
      %v1295 = vpack.c.b16 %v1231, %v1231
      %v1296 = vpack.c.b16 %v1232, %v1232
      %v1297 = vpack.c.b16 %v1233, %v1233
      %v1298 = vpack.c.b16 %v1234, %v1234
      %v1299 = vpack.c.b16 %v1235, %v1235
      %v1300 = vpack.c.b16 %v1236, %v1236
      %v1301 = vpack.c.b16 %v1237, %v1237
      %v1302 = vpack.c.b16 %v1238, %v1238
      %v1303 = vpack.c.b16 %v1239, %v1239
      %v1304 = vpack.c.b16 %v1240, %v1240
      %v1305 = vpack.c.b16 %v1241, %v1241
      %v1306 = vpack.c.b16 %v1242, %v1242
      %v1307 = vpack.c.b16 %v1243, %v1243
      %v1308 = vpack.c.b16 %v1244, %v1244
      %v1309 = vpack.c.b16 %v1245, %v1245
      %v1310 = vpack.c.b16 %v1246, %v1246
      %v1311 = vpack.c.b16 %v1247, %v1247
      %v1312 = vpack.c.b16 %v1248, %v1248
      %v1313 = vpack.c.b16 %v1249, %v1249
      %v1314 = vpack.c.b16 %v1250, %v1250
      %1379 = vst [vmem:[%s264] sm:$0xf] %v1251
      %1380 = vst [vmem:[%s264 + $0x4] sm:$0xf] %v1252
      %1381 = vst [vmem:[%s264 + $0x8] sm:$0xf] %v1253
      %1382 = vst [vmem:[%s264 + $0xc] sm:$0xf] %v1254
      %1383 = vst [vmem:[%s264 + $0x10] sm:$0xf] %v1255
      %1384 = vst [vmem:[%s264 + $0x14] sm:$0xf] %v1256
      %1385 = vst [vmem:[%s264 + $0x18] sm:$0xf] %v1257
      %1386 = vst [vmem:[%s264 + $0x1c] sm:$0xf] %v1258
      %1387 = vst [vmem:[%s264 + $0x20] sm:$0xf] %v1259
      %1388 = vst [vmem:[%s264 + $0x24] sm:$0xf] %v1260
      %1389 = vst [vmem:[%s264 + $0x28] sm:$0xf] %v1261
      %1390 = vst [vmem:[%s264 + $0x2c] sm:$0xf] %v1262
      %1391 = vst [vmem:[%s264 + $0x30] sm:$0xf] %v1263
      %1392 = vst [vmem:[%s264 + $0x34] sm:$0xf] %v1264
      %1393 = vst [vmem:[%s264 + $0x38] sm:$0xf] %v1265
      %1394 = vst [vmem:[%s264 + $0x3c] sm:$0xf] %v1266
      %1395 = vst [vmem:[%s264 + $0x40] sm:$0xf] %v1267
      %1396 = vst [vmem:[%s264 + $0x44] sm:$0xf] %v1268
      %1397 = vst [vmem:[%s264 + $0x48] sm:$0xf] %v1269
      %1398 = vst [vmem:[%s264 + $0x4c] sm:$0xf] %v1270
      %1399 = vst [vmem:[%s264 + $0x50] sm:$0xf] %v1271
      %1400 = vst [vmem:[%s264 + $0x54] sm:$0xf] %v1272
      %1401 = vst [vmem:[%s264 + $0x58] sm:$0xf] %v1273
      %1402 = vst [vmem:[%s264 + $0x5c] sm:$0xf] %v1274
      %1403 = vst [vmem:[%s264 + $0x60] sm:$0xf] %v1275
      %1404 = vst [vmem:[%s264 + $0x64] sm:$0xf] %v1276
      %1405 = vst [vmem:[%s264 + $0x68] sm:$0xf] %v1277
      %1406 = vst [vmem:[%s264 + $0x6c] sm:$0xf] %v1278
      %1407 = vst [vmem:[%s264 + $0x70] sm:$0xf] %v1279
      %1408 = vst [vmem:[%s264 + $0x74] sm:$0xf] %v1280
      %1409 = vst [vmem:[%s264 + $0x78] sm:$0xf] %v1281
      %1410 = vst [vmem:[%s264 + $0x7c] sm:$0xf] %v1282
      %1411 = vst [vmem:[%s264 + $0x80] sm:$0xf] %v1283
      %1412 = vst [vmem:[%s264 + $0x84] sm:$0xf] %v1284
      %1413 = vst [vmem:[%s264 + $0x88] sm:$0xf] %v1285
      %1414 = vst [vmem:[%s264 + $0x8c] sm:$0xf] %v1286
      %1415 = vst [vmem:[%s264 + $0x90] sm:$0xf] %v1287
      %1416 = vst [vmem:[%s264 + $0x94] sm:$0xf] %v1288
      %1417 = vst [vmem:[%s264 + $0x98] sm:$0xf] %v1289
      %1418 = vst [vmem:[%s264 + $0x9c] sm:$0xf] %v1290
      %1419 = vst [vmem:[%s264 + $0xa0] sm:$0xf] %v1291
      %1420 = vst [vmem:[%s264 + $0xa4] sm:$0xf] %v1292
      %1421 = vst [vmem:[%s264 + $0xa8] sm:$0xf] %v1293
      %1422 = vst [vmem:[%s264 + $0xac] sm:$0xf] %v1294
      %1423 = vst [vmem:[%s264 + $0xb0] sm:$0xf] %v1295
      %1424 = vst [vmem:[%s264 + $0xb4] sm:$0xf] %v1296
      %1425 = vst [vmem:[%s264 + $0xb8] sm:$0xf] %v1297
      %1426 = vst [vmem:[%s264 + $0xbc] sm:$0xf] %v1298
      %1427 = vst [vmem:[%s264 + $0xc0] sm:$0xf] %v1299
      %1428 = vst [vmem:[%s264 + $0xc4] sm:$0xf] %v1300
      %1429 = vst [vmem:[%s264 + $0xc8] sm:$0xf] %v1301
      %1430 = vst [vmem:[%s264 + $0xcc] sm:$0xf] %v1302
      %1431 = vst [vmem:[%s264 + $0xd0] sm:$0xf] %v1303
      %1432 = vst [vmem:[%s264 + $0xd4] sm:$0xf] %v1304
      %1433 = vst [vmem:[%s264 + $0xd8] sm:$0xf] %v1305
      %1434 = vst [vmem:[%s264 + $0xdc] sm:$0xf] %v1306
      %1435 = vst [vmem:[%s264 + $0xe0] sm:$0xf] %v1307
      %1436 = vst [vmem:[%s264 + $0xe4] sm:$0xf] %v1308
      %1437 = vst [vmem:[%s264 + $0xe8] sm:$0xf] %v1309
      %1438 = vst [vmem:[%s264 + $0xec] sm:$0xf] %v1310
      %1439 = vst [vmem:[%s264 + $0xf0] sm:$0xf] %v1311
      %1440 = vst [vmem:[%s264 + $0xf4] sm:$0xf] %v1312
      %1441 = vst [vmem:[%s264 + $0xf8] sm:$0xf] %v1313
      %1442 = vst [vmem:[%s264 + $0xfc] sm:$0xf] %v1314
      %s1443 = smul.u32 64, %s19
      %p1444 = scmp.lt.s32.totalorder %s1443, 127
      %s1445 = scalar_select %p1444, %s1443, 127
      %p1446 = scmp.lt.s32.totalorder %s20, 0
      %s1447 = scalar_select %p1446, %s20, 0
      %s1448 = sadd.s32 %s1447, %s1445
      %s1449 = smul.addr %s1448, 4
      %s1450 = scalar_lea.vmem %s4, %s1449
      // Predicated region
      $region37: #{encoder_forward.17} parent=35 // pred_check
        %p1451 = pneg %p151
      $region38: #{encoder_forward.17} parent=35 // pred_check_branch
        %1453 = sbr.rel (%p1451) target = $region40
      $region39: #{encoder_forward.17} parent=35 // pred_region
        %s1454 = smul.u32 64, %s19
      $region40: #{encoder_forward.17} parent=35 // pred_fallthru
        _
    $region36: #{encoder_forward.17} parent=5 // pred_fallthru
      _
    %p1455 = scmp.le.s32.totalorder 2, %s10
    // Predicated region
    $region41: #{encoder_forward.17} parent=5 // pred_check
      %p1456 = pneg %p1455
    $region42: #{encoder_forward.17} parent=5 // pred_check_branch
      %1458 = sbr.rel (%p1456) target = $region44
    $region43: #{encoder_forward.17} parent=5 // pred_region
      %s1459 = ssub.s32 %s10, 2
      // Predicated region
      $region45: #{encoder_forward.17} parent=43 // pred_check
        %p1460 = pneg %p157
      $region46: #{encoder_forward.17} parent=43 // pred_check_branch
        %1462 = sbr.rel (%p1460) target = $region48
      $region47: #{encoder_forward.17} parent=43 // pred_region
        %s1463 = smul.u32 64, %s21
        %p1464 = scmp.lt.s32.totalorder %s1463, 127
        %s1465 = scalar_select %p1464, %s1463, 127
        %p1466 = scmp.lt.s32.totalorder %s22, 0
        %s1467 = scalar_select %p1466, %s22, 0
        %s1468 = sadd.s32 %s1467, %s1465
        %s1469 = smul.addr %s1468, 4
        %s1470 = scalar_lea.vmem %s4, %s1469
      $region48: #{encoder_forward.17} parent=43 // pred_fallthru
        _
    $region44: #{encoder_forward.17} parent=5 // pred_fallthru
      _
  $region6: #{encoder_forward.17} parent=0 // loop_footer
    %s14 = sadd.s32 1, %s10
  $region7: #{encoder_forward.17} parent=0 // loop_footer_branch
    %9 = sbr.rel target = $region3
  $region8: #{encoder_forward.17} parent=0 // loop_exit
    _

// kernel: encoder_forward.20
$region0: #{encoder_forward.20}
  #allocation0 [shape = 'u32[]', space=smem, size = 0x4, offset = 0x4, fixed_abs, tag = 'smem constant byte address 0x4 - core index']
  #allocation1 [shape = 'u32[144,128]{1,0:T(1,128)}', space=vmem, size = 0x12000, scoped, tag = 'internal scratch']
  %s0 = inlined_call_operand.vmem [shape: bf16[200,16], index: 0, kind: input, shape index: {}]
  %s1 = inlined_call_operand.vmem [shape: bf16[16,128], index: 1, kind: input, shape index: {}]
  %s2 = inlined_call_operand.vmem [shape: f32[1,128], index: 2, kind: input, shape index: {}]
  %s3 = inlined_call_operand.vmem [shape: f32[1,128], index: 3, kind: input, shape index: {}]
  %s4 = inlined_call_operand.vmem [shape: bf16[200,128], index: 4, kind: output, shape index: {}]
  %s5 = sld [smem:[#allocation0]]
  $region26: #{encoder_forward.20} parent=0
    _
  %s7 = ssub.s32 1, %s5
  %s8 = scalar_select 0, %s7, %s5
  // Predicated region
  $region2: #{encoder_forward.20} parent=0 // pred_check
    _
  $region3: #{encoder_forward.20} parent=0 // pred_check_branch
    %10 = sbr.rel (0) target = $region5
  $region4: #{encoder_forward.20} parent=0 // pred_region
    _
  $region5: #{encoder_forward.20} parent=0 // pred_fallthru
    _
  // Predicated region
  $region6: #{encoder_forward.20} parent=0 // pred_check
    _
  $region7: #{encoder_forward.20} parent=0 // pred_check_branch
    %12 = sbr.rel (0) target = $region9
  $region8: #{encoder_forward.20} parent=0 // pred_region
    _
  $region9: #{encoder_forward.20} parent=0 // pred_fallthru
    _
  // Predicated region
  $region10: #{encoder_forward.20} parent=0 // pred_check
    _
  $region11: #{encoder_forward.20} parent=0 // pred_check_branch
    %14 = sbr.rel (0) target = $region13
  $region12: #{encoder_forward.20} parent=0 // pred_region
    _
  $region13: #{encoder_forward.20} parent=0 // pred_fallthru
    _
  // Predicated region
  $region14: #{encoder_forward.20} parent=0 // pred_check
    _
  $region15: #{encoder_forward.20} parent=0 // pred_check_branch
    %16 = sbr.rel (0) target = $region17
  $region16: #{encoder_forward.20} parent=0 // pred_region
    _
  $region17: #{encoder_forward.20} parent=0 // pred_fallthru
    _
  %v18 = vld [vmem:[%s0] sm:$0xf]
  %v19 = vld [vmem:[%s0 + $0x4] sm:$0xf]
  %v20 = vld [vmem:[%s0 + $0x8] sm:$0xf]
  %v21 = vld [vmem:[%s0 + $0xc] sm:$0xf]
  %v22 = vld [vmem:[%s0 + $0x10] sm:$0xf]
  %v23 = vld [vmem:[%s0 + $0x14] sm:$0xf]
  %v24 = vld [vmem:[%s0 + $0x18] sm:$0xf]
  %v25 = vld [vmem:[%s0 + $0x1c] sm:$0xf]
  %v26 = vld [vmem:[%s0 + $0x20] sm:$0xf]
  %v27 = vld [vmem:[%s0 + $0x24] sm:$0xf]
  %v28 = vld [vmem:[%s0 + $0x28] sm:$0xf]
  %v29 = vld [vmem:[%s0 + $0x2c] sm:$0xf]
  %v30 = vld [vmem:[%s0 + $0x30] sm:$0xf]
  %v31 = vld [vmem:[%s0 + $0x34] sm:$0xf]
  %v32 = vld [vmem:[%s0 + $0x38] sm:$0xf]
  %v33 = vld [vmem:[%s0 + $0x3c] sm:$0xf]
  %v34 = vld [vmem:[%s0 + $0x40] sm:$0xf]
  %v35 = vld [vmem:[%s0 + $0x44] sm:$0xf]
  %v36 = vld [vmem:[%s0 + $0x48] sm:$0xf]
  %v37 = vld [vmem:[%s0 + $0x4c] sm:$0xf]
  %v38 = vld [vmem:[%s0 + $0x50] sm:$0xf]
  %v39 = vld [vmem:[%s0 + $0x54] sm:$0xf]
  %v40 = vld [vmem:[%s0 + $0x58] sm:$0xf]
  %v41 = vld [vmem:[%s0 + $0x5c] sm:$0xf]
  %v42 = vld [vmem:[%s0 + $0x60] sm:$0xf]
  %v43 = vld [vmem:[%s1] sm:$0xf]
  %v44 = vld [vmem:[%s1 + $0x4] sm:$0xf]
  %v70 = vunpack.c.l.b16 %v18
  %v71 = vunpack.c.l.b16 %v19
  %v72 = vunpack.c.l.b16 %v20
  %v73 = vunpack.c.l.b16 %v21
  %v74 = vunpack.c.l.b16 %v22
  %v75 = vunpack.c.l.b16 %v23
  %v76 = vunpack.c.l.b16 %v24
  %v77 = vunpack.c.l.b16 %v25
  %v78 = vunpack.c.l.b16 %v26
  %v79 = vunpack.c.l.b16 %v27
  %v80 = vunpack.c.l.b16 %v28
  %v81 = vunpack.c.l.b16 %v29
  %v82 = vunpack.c.l.b16 %v30
  %v83 = vunpack.c.l.b16 %v31
  %v84 = vunpack.c.l.b16 %v32
  %v85 = vunpack.c.l.b16 %v33
  %v86 = vunpack.c.l.b16 %v34
  %v87 = vunpack.c.l.b16 %v35
  %v88 = vunpack.c.l.b16 %v36
  %v89 = vunpack.c.l.b16 %v37
  %v90 = vunpack.c.l.b16 %v38
  %v91 = vunpack.c.l.b16 %v39
  %v92 = vunpack.c.l.b16 %v40
  %v93 = vunpack.c.l.b16 %v41
  %v94 = vunpack.c.l.b16 %v42
  %v95 = vpack.c.b16 %v71, %v70
  %v96 = vpack.c.b16 %v73, %v72
  %v97 = vpack.c.b16 %v75, %v74
  %v98 = vpack.c.b16 %v77, %v76
  %v99 = vpack.c.b16 %v79, %v78
  %v100 = vpack.c.b16 %v81, %v80
  %v101 = vpack.c.b16 %v83, %v82
  %v102 = vpack.c.b16 %v85, %v84
  %v103 = vpack.c.b16 %v87, %v86
  %v104 = vpack.c.b16 %v89, %v88
  %v105 = vpack.c.b16 %v91, %v90
  %v106 = vpack.c.b16 %v93, %v92
  %v107 = vpack.c.b16 %v94, %v94
  %v110 = vunpack.c.l.b16 %v43
  %v111 = vunpack.c.l.b16 %v44
  %v112 = vpack.c.b16 %v111, %v110
  %vm114 = vcmask 130048
  %v116 = vsel %vm114, %v95, 0
  %v119 = vsel %vm114, %v96, 0
  %v122 = vsel %vm114, %v97, 0
  %v125 = vsel %vm114, %v98, 0
  %v128 = vsel %vm114, %v99, 0
  %v131 = vsel %vm114, %v100, 0
  %v134 = vsel %vm114, %v101, 0
  %v137 = vsel %vm114, %v102, 0
  %v140 = vsel %vm114, %v103, 0
  %v143 = vsel %vm114, %v104, 0
  %v146 = vsel %vm114, %v105, 0
  %v149 = vsel %vm114, %v106, 0
  %v152 = vsel %vm114, %v107, 0
  %154 = vmatprep.subr.bf16.mxu0 0
  %155 = vmatpush1.bf16.msra.mxu0 %v112
  %156 = vmatprep.subr.bf16.mxu0 0
  %157 = vmatpush1.bf16.msra.mxu0 0
  %158 = vmatprep.subr.bf16.mxu0 0
  %159 = vmatpush1.bf16.msra.mxu0 0
  %160 = vmatprep.subr.bf16.mxu0 0
  %161 = vmatpush1.bf16.msra.mxu0 0
  %162 = vmatprep.subr.bf16.mxu0 0
  %163 = vmatpush1.bf16.msra.mxu0 0
  %164 = vmatprep.subr.bf16.mxu0 0
  %165 = vmatpush1.bf16.msra.mxu0 0
  %166 = vmatprep.subr.bf16.mxu0 0
  %167 = vmatpush1.bf16.msra.mxu0 0
  %168 = vmatprep.subr.bf16.mxu0 0
  %169 = vmatpush1.bf16.msra.mxu0 0
  %170 = vmatprep.subr.bf16.mxu0 0
  %171 = vmatpush1.bf16.msra.mxu0 0
  %172 = vmatprep.subr.bf16.mxu0 0
  %173 = vmatpush1.bf16.msra.mxu0 0
  %174 = vmatprep.subr.bf16.mxu0 0
  %175 = vmatpush1.bf16.msra.mxu0 0
  %176 = vmatprep.subr.bf16.mxu0 0
  %177 = vmatpush1.bf16.msra.mxu0 0
  %178 = vmatprep.subr.bf16.mxu0 0
  %179 = vmatpush1.bf16.msra.mxu0 0
  %180 = vmatprep.subr.bf16.mxu0 0
  %181 = vmatpush1.bf16.msra.mxu0 0
  %182 = vmatprep.subr.bf16.mxu0 0
  %183 = vmatpush1.bf16.msra.mxu0 0
  %184 = vmatprep.subr.bf16.mxu0 0
  %185 = vmatpush1.bf16.msra.mxu0 0
  %186 = vmatprep.mubr.bf16.mxu0 0
  %187 = vmatmul.mubr.bf16.gmra.mrb[0].mxu0 %v116
  %v188 = vpop.f32.mrb[0].mxu0
  %v189 = vadd.f32 0.0, %v188
  %v190 = vpop.f32.mrb[0].mxu0
  %v191 = vpop.f32.mrb[0].mxu0
  %v192 = vadd.f32 0.0, %v191
  %v193 = vpop.f32.mrb[0].mxu0
  %194 = vmatprep.mubr.bf16.mxu0 0
  %195 = vmatmul.mubr.bf16.gmra.mrb[0].mxu0 %v119
  %v196 = vpop.f32.mrb[0].mxu0
  %v197 = vadd.f32 0.0, %v196
  %v198 = vpop.f32.mrb[0].mxu0
  %v199 = vpop.f32.mrb[0].mxu0
  %v200 = vadd.f32 0.0, %v199
  %v201 = vpop.f32.mrb[0].mxu0
  %202 = vmatprep.mubr.bf16.mxu0 0
  %203 = vmatmul.mubr.bf16.gmra.mrb[0].mxu0 %v122
  %v204 = vpop.f32.mrb[0].mxu0
  %v205 = vadd.f32 0.0, %v204
  %v206 = vpop.f32.mrb[0].mxu0
  %v207 = vpop.f32.mrb[0].mxu0
  %v208 = vadd.f32 0.0, %v207
  %v209 = vpop.f32.mrb[0].mxu0
  %210 = vmatprep.mubr.bf16.mxu0 0
  %211 = vmatmul.mubr.bf16.gmra.mrb[0].mxu0 %v125
  %v212 = vpop.f32.mrb[0].mxu0
  %v213 = vadd.f32 0.0, %v212
  %v214 = vpop.f32.mrb[0].mxu0
  %v215 = vpop.f32.mrb[0].mxu0
  %v216 = vadd.f32 0.0, %v215
  %v217 = vpop.f32.mrb[0].mxu0
  %218 = vmatprep.mubr.bf16.mxu0 0
  %219 = vmatmul.mubr.bf16.gmra.mrb[0].mxu0 %v128
  %v220 = vpop.f32.mrb[0].mxu0
  %v221 = vadd.f32 0.0, %v220
  %v222 = vpop.f32.mrb[0].mxu0
  %v223 = vpop.f32.mrb[0].mxu0
  %v224 = vadd.f32 0.0, %v223
  %v225 = vpop.f32.mrb[0].mxu0
  %226 = vmatprep.mubr.bf16.mxu0 0
  %227 = vmatmul.mubr.bf16.gmra.mrb[0].mxu0 %v131
  %v228 = vpop.f32.mrb[0].mxu0
  %v229 = vadd.f32 0.0, %v228
  %v230 = vpop.f32.mrb[0].mxu0
  %v231 = vpop.f32.mrb[0].mxu0
  %v232 = vadd.f32 0.0, %v231
  %v233 = vpop.f32.mrb[0].mxu0
  %234 = vmatprep.mubr.bf16.mxu0 0
  %235 = vmatmul.mubr.bf16.gmra.mrb[0].mxu0 %v134
  %v236 = vpop.f32.mrb[0].mxu0
  %v237 = vadd.f32 0.0, %v236
  %v238 = vpop.f32.mrb[0].mxu0
  %v239 = vpop.f32.mrb[0].mxu0
  %v240 = vadd.f32 0.0, %v239
  %v241 = vpop.f32.mrb[0].mxu0
  %242 = vmatprep.mubr.bf16.mxu0 0
  %243 = vmatmul.mubr.bf16.gmra.mrb[0].mxu0 %v137
  %v244 = vpop.f32.mrb[0].mxu0
  %v245 = vadd.f32 0.0, %v244
  %v246 = vpop.f32.mrb[0].mxu0
  %v247 = vpop.f32.mrb[0].mxu0
  %v248 = vadd.f32 0.0, %v247
  %v249 = vpop.f32.mrb[0].mxu0
  %250 = vmatprep.mubr.bf16.mxu0 0
  %251 = vmatmul.mubr.bf16.gmra.mrb[0].mxu0 %v140
  %v252 = vpop.f32.mrb[0].mxu0
  %v253 = vadd.f32 0.0, %v252
  %v254 = vpop.f32.mrb[0].mxu0
  %v255 = vpop.f32.mrb[0].mxu0
  %v256 = vadd.f32 0.0, %v255
  %v257 = vpop.f32.mrb[0].mxu0
  %258 = vmatprep.mubr.bf16.mxu0 0
  %259 = vmatmul.mubr.bf16.gmra.mrb[0].mxu0 %v143
  %v260 = vpop.f32.mrb[0].mxu0
  %v261 = vadd.f32 0.0, %v260
  %v262 = vpop.f32.mrb[0].mxu0
  %v263 = vpop.f32.mrb[0].mxu0
  %v264 = vadd.f32 0.0, %v263
  %v265 = vpop.f32.mrb[0].mxu0
  %266 = vmatprep.mubr.bf16.mxu0 0
  %267 = vmatmul.mubr.bf16.gmra.mrb[0].mxu0 %v146
  %v268 = vpop.f32.mrb[0].mxu0
  %v269 = vadd.f32 0.0, %v268
  %v270 = vpop.f32.mrb[0].mxu0
  %v271 = vpop.f32.mrb[0].mxu0
  %v272 = vadd.f32 0.0, %v271
  %v273 = vpop.f32.mrb[0].mxu0
  %274 = vmatprep.mubr.bf16.mxu0 0
  %275 = vmatmul.mubr.bf16.gmra.mrb[0].mxu0 %v149
  %v276 = vpop.f32.mrb[0].mxu0
  %v277 = vadd.f32 0.0, %v276
  %v278 = vpop.f32.mrb[0].mxu0
  %v279 = vpop.f32.mrb[0].mxu0
  %v280 = vadd.f32 0.0, %v279
  %v281 = vpop.f32.mrb[0].mxu0
  %282 = vmatprep.mubr.bf16.mxu0 0
  %283 = vmatmul.mubr.bf16.gmra.mrb[0].mxu0 %v152
  %v284 = vpop.f32.mrb[0].mxu0
  %v285 = vadd.f32 0.0, %v284
  %v286 = vpop.f32.mrb[0].mxu0
  %v287 = vpop.f32.mrb[0].mxu0
  %v288 = vpop.f32.mrb[0].mxu0
  %289 = vdwg.mxu0
  %v290 = vld [vmem:[%s2] sm:$0x1]
  %v292 = vlaneseq
  %v293 = vshrl.u32 %v292, 7
  %v294 = vsub.s32 0, %v293
  %v295 = vrot.slane %v290, %v294
  %v297 = vmul.f32 %v189, %v295
  %v298 = vmul.f32 %v192, %v295
  %v299 = vmul.f32 %v197, %v295
  %v300 = vmul.f32 %v200, %v295
  %v301 = vmul.f32 %v205, %v295
  %v302 = vmul.f32 %v208, %v295
  %v303 = vmul.f32 %v213, %v295
  %v304 = vmul.f32 %v216, %v295
  %v305 = vmul.f32 %v221, %v295
  %v306 = vmul.f32 %v224, %v295
  %v307 = vmul.f32 %v229, %v295
  %v308 = vmul.f32 %v232, %v295
  %v309 = vmul.f32 %v237, %v295
  %v310 = vmul.f32 %v240, %v295
  %v311 = vmul.f32 %v245, %v295
  %v312 = vmul.f32 %v248, %v295
  %v313 = vmul.f32 %v253, %v295
  %v314 = vmul.f32 %v256, %v295
  %v315 = vmul.f32 %v261, %v295
  %v316 = vmul.f32 %v264, %v295
  %v317 = vmul.f32 %v269, %v295
  %v318 = vmul.f32 %v272, %v295
  %v319 = vmul.f32 %v277, %v295
  %v320 = vmul.f32 %v280, %v295
  %v321 = vmul.f32 %v285, %v295
  %v322 = vld [vmem:[%s3] sm:$0x1]
  %v324 = vlaneseq
  %v325 = vshrl.u32 %v324, 7
  %v326 = vsub.s32 0, %v325
  %v327 = vrot.slane %v322, %v326
  %v329 = vadd.f32 %v297, %v327
  %v330 = vadd.f32 %v298, %v327
  %v331 = vadd.f32 %v299, %v327
  %v332 = vadd.f32 %v300, %v327
  %v333 = vadd.f32 %v301, %v327
  %v334 = vadd.f32 %v302, %v327
  %v335 = vadd.f32 %v303, %v327
  %v336 = vadd.f32 %v304, %v327
  %v337 = vadd.f32 %v305, %v327
  %v338 = vadd.f32 %v306, %v327
  %v339 = vadd.f32 %v307, %v327
  %v340 = vadd.f32 %v308, %v327
  %v341 = vadd.f32 %v309, %v327
  %v342 = vadd.f32 %v310, %v327
  %v343 = vadd.f32 %v311, %v327
  %v344 = vadd.f32 %v312, %v327
  %v345 = vadd.f32 %v313, %v327
  %v346 = vadd.f32 %v314, %v327
  %v347 = vadd.f32 %v315, %v327
  %v348 = vadd.f32 %v316, %v327
  %v349 = vadd.f32 %v317, %v327
  %v350 = vadd.f32 %v318, %v327
  %v351 = vadd.f32 %v319, %v327
  %v352 = vadd.f32 %v320, %v327
  %v353 = vadd.f32 %v321, %v327
  %v354 = vmax.f32 %v329, 0.0
  %v355 = vmax.f32 %v330, 0.0
  %v356 = vmax.f32 %v331, 0.0
  %v357 = vmax.f32 %v332, 0.0
  %v358 = vmax.f32 %v333, 0.0
  %v359 = vmax.f32 %v334, 0.0
  %v360 = vmax.f32 %v335, 0.0
  %v361 = vmax.f32 %v336, 0.0
  %v362 = vmax.f32 %v337, 0.0
  %v363 = vmax.f32 %v338, 0.0
  %v364 = vmax.f32 %v339, 0.0
  %v365 = vmax.f32 %v340, 0.0
  %v366 = vmax.f32 %v341, 0.0
  %v367 = vmax.f32 %v342, 0.0
  %v368 = vmax.f32 %v343, 0.0
  %v369 = vmax.f32 %v344, 0.0
  %v370 = vmax.f32 %v345, 0.0
  %v371 = vmax.f32 %v346, 0.0
  %v372 = vmax.f32 %v347, 0.0
  %v373 = vmax.f32 %v348, 0.0
  %v374 = vmax.f32 %v349, 0.0
  %v375 = vmax.f32 %v350, 0.0
  %v376 = vmax.f32 %v351, 0.0
  %v377 = vmax.f32 %v352, 0.0
  %v378 = vmax.f32 %v353, 0.0
  %v379 = vpack.c.bf16 %v355, %v354
  %v380 = vpack.c.bf16 %v357, %v356
  %v381 = vpack.c.bf16 %v359, %v358
  %v382 = vpack.c.bf16 %v361, %v360
  %v383 = vpack.c.bf16 %v363, %v362
  %v384 = vpack.c.bf16 %v365, %v364
  %v385 = vpack.c.bf16 %v367, %v366
  %v386 = vpack.c.bf16 %v369, %v368
  %v387 = vpack.c.bf16 %v371, %v370
  %v388 = vpack.c.bf16 %v373, %v372
  %v389 = vpack.c.bf16 %v375, %v374
  %v390 = vpack.c.bf16 %v377, %v376
  %v391 = vpack.c.bf16 %v378, %v378
  %v405 = vunpack.c.l.b16 %v379
  %v406 = vunpack.c.h.b16 %v379
  %v407 = vunpack.c.l.b16 %v380
  %v408 = vunpack.c.h.b16 %v380
  %v409 = vunpack.c.l.b16 %v381
  %v410 = vunpack.c.h.b16 %v381
  %v411 = vunpack.c.l.b16 %v382
  %v412 = vunpack.c.h.b16 %v382
  %v413 = vunpack.c.l.b16 %v383
  %v414 = vunpack.c.h.b16 %v383
  %v415 = vunpack.c.l.b16 %v384
  %v416 = vunpack.c.h.b16 %v384
  %v417 = vunpack.c.l.b16 %v385
  %v418 = vunpack.c.h.b16 %v385
  %v419 = vunpack.c.l.b16 %v386
  %v420 = vunpack.c.h.b16 %v386
  %v421 = vunpack.c.l.b16 %v387
  %v422 = vunpack.c.h.b16 %v387
  %v423 = vunpack.c.l.b16 %v388
  %v424 = vunpack.c.h.b16 %v388
  %v425 = vunpack.c.l.b16 %v389
  %v426 = vunpack.c.h.b16 %v389
  %v427 = vunpack.c.l.b16 %v390
  %v428 = vunpack.c.h.b16 %v390
  %v429 = vunpack.c.l.b16 %v391
  %v430 = vpack.c.b16 %v405, %v405
  %v431 = vpack.c.b16 %v406, %v406
  %v432 = vpack.c.b16 %v407, %v407
  %v433 = vpack.c.b16 %v408, %v408
  %v434 = vpack.c.b16 %v409, %v409
  %v435 = vpack.c.b16 %v410, %v410
  %v436 = vpack.c.b16 %v411, %v411
  %v437 = vpack.c.b16 %v412, %v412
  %v438 = vpack.c.b16 %v413, %v413
  %v439 = vpack.c.b16 %v414, %v414
  %v440 = vpack.c.b16 %v415, %v415
  %v441 = vpack.c.b16 %v416, %v416
  %v442 = vpack.c.b16 %v417, %v417
  %v443 = vpack.c.b16 %v418, %v418
  %v444 = vpack.c.b16 %v419, %v419
  %v445 = vpack.c.b16 %v420, %v420
  %v446 = vpack.c.b16 %v421, %v421
  %v447 = vpack.c.b16 %v422, %v422
  %v448 = vpack.c.b16 %v423, %v423
  %v449 = vpack.c.b16 %v424, %v424
  %v450 = vpack.c.b16 %v425, %v425
  %v451 = vpack.c.b16 %v426, %v426
  %v452 = vpack.c.b16 %v427, %v427
  %v453 = vpack.c.b16 %v428, %v428
  %v454 = vpack.c.b16 %v429, %v429
  %480 = vst [vmem:[%s4] sm:$0xf] %v430
  %481 = vst [vmem:[%s4 + $0x4] sm:$0xf] %v431
  %482 = vst [vmem:[%s4 + $0x8] sm:$0xf] %v432
  %483 = vst [vmem:[%s4 + $0xc] sm:$0xf] %v433
  %484 = vst [vmem:[%s4 + $0x10] sm:$0xf] %v434
  %485 = vst [vmem:[%s4 + $0x14] sm:$0xf] %v435
  %486 = vst [vmem:[%s4 + $0x18] sm:$0xf] %v436
  %487 = vst [vmem:[%s4 + $0x1c] sm:$0xf] %v437
  %488 = vst [vmem:[%s4 + $0x20] sm:$0xf] %v438
  %489 = vst [vmem:[%s4 + $0x24] sm:$0xf] %v439
  %490 = vst [vmem:[%s4 + $0x28] sm:$0xf] %v440
  %491 = vst [vmem:[%s4 + $0x2c] sm:$0xf] %v441
  %492 = vst [vmem:[%s4 + $0x30] sm:$0xf] %v442
  %493 = vst [vmem:[%s4 + $0x34] sm:$0xf] %v443
  %494 = vst [vmem:[%s4 + $0x38] sm:$0xf] %v444
  %495 = vst [vmem:[%s4 + $0x3c] sm:$0xf] %v445
  %496 = vst [vmem:[%s4 + $0x40] sm:$0xf] %v446
  %497 = vst [vmem:[%s4 + $0x44] sm:$0xf] %v447
  %498 = vst [vmem:[%s4 + $0x48] sm:$0xf] %v448
  %499 = vst [vmem:[%s4 + $0x4c] sm:$0xf] %v449
  %500 = vst [vmem:[%s4 + $0x50] sm:$0xf] %v450
  %501 = vst [vmem:[%s4 + $0x54] sm:$0xf] %v451
  %502 = vst [vmem:[%s4 + $0x58] sm:$0xf] %v452
  %503 = vst [vmem:[%s4 + $0x5c] sm:$0xf] %v453
  %504 = vst [vmem:[%s4 + $0x60] sm:$0xf] %v454
  // Predicated region
  $region18: #{encoder_forward.20} parent=0 // pred_check
    _
  $region19: #{encoder_forward.20} parent=0 // pred_check_branch
    %506 = sbr.rel (0) target = $region21
  $region20: #{encoder_forward.20} parent=0 // pred_region
    _
  $region21: #{encoder_forward.20} parent=0 // pred_fallthru
    _
  // Predicated region
  $region22: #{encoder_forward.20} parent=0 // pred_check
    _
  $region23: #{encoder_forward.20} parent=0 // pred_check_branch
    %508 = sbr.rel (0) target = $region25
  $region24: #{encoder_forward.20} parent=0 // pred_region
    _
  $region25: #{encoder_forward.20} parent=0 // pred_fallthru
    _

// kernel: encoder_forward.19
$region0: #{encoder_forward.19}
  #allocation0 [shape = 'u32[]', space=smem, size = 0x4, offset = 0x4, fixed_abs, tag = 'smem constant byte address 0x4 - core index']
  #allocation1 [shape = 'u32[144,128]{1,0:T(1,128)}', space=vmem, size = 0x12000, scoped, tag = 'internal scratch']
  %s0 = inlined_call_operand.vmem [shape: bf16[9,200,16], index: 0, kind: input, shape index: {}]
  %s1 = inlined_call_operand.vmem [shape: bf16[200,16], index: 1, kind: output, shape index: {}]
  %s2 = sld [smem:[#allocation0]]
  $region14: #{encoder_forward.19} parent=0
    _
  %s4 = ssub.s32 1, %s2
  %s5 = scalar_select 0, %s4, %s2
  // Predicated region
  $region2: #{encoder_forward.19} parent=0 // pred_check
    _
  $region3: #{encoder_forward.19} parent=0 // pred_check_branch
    %7 = sbr.rel (0) target = $region5
  $region4: #{encoder_forward.19} parent=0 // pred_region
    _
  $region5: #{encoder_forward.19} parent=0 // pred_fallthru
    _
  %v8 = vld [vmem:[%s0] sm:$0xf]
  %v9 = vld [vmem:[%s0 + $0x4] sm:$0xf]
  %v10 = vld [vmem:[%s0 + $0x8] sm:$0xf]
  %v11 = vld [vmem:[%s0 + $0xc] sm:$0xf]
  %v12 = vld [vmem:[%s0 + $0x10] sm:$0xf]
  %v13 = vld [vmem:[%s0 + $0x14] sm:$0xf]
  %v14 = vld [vmem:[%s0 + $0x18] sm:$0xf]
  %v15 = vld [vmem:[%s0 + $0x1c] sm:$0xf]
  %v16 = vld [vmem:[%s0 + $0x20] sm:$0xf]
  %v17 = vld [vmem:[%s0 + $0x24] sm:$0xf]
  %v18 = vld [vmem:[%s0 + $0x28] sm:$0xf]
  %v19 = vld [vmem:[%s0 + $0x2c] sm:$0xf]
  %v20 = vld [vmem:[%s0 + $0x30] sm:$0xf]
  %v21 = vld [vmem:[%s0 + $0x34] sm:$0xf]
  %v22 = vld [vmem:[%s0 + $0x38] sm:$0xf]
  %v23 = vld [vmem:[%s0 + $0x3c] sm:$0xf]
  %v24 = vld [vmem:[%s0 + $0x40] sm:$0xf]
  %v25 = vld [vmem:[%s0 + $0x44] sm:$0xf]
  %v26 = vld [vmem:[%s0 + $0x48] sm:$0xf]
  %v27 = vld [vmem:[%s0 + $0x4c] sm:$0xf]
  %v28 = vld [vmem:[%s0 + $0x50] sm:$0xf]
  %v29 = vld [vmem:[%s0 + $0x54] sm:$0xf]
  %v30 = vld [vmem:[%s0 + $0x58] sm:$0xf]
  %v31 = vld [vmem:[%s0 + $0x5c] sm:$0xf]
  %v32 = vld [vmem:[%s0 + $0x60] sm:$0xf]
  %v33 = vunpack.c.l.bf16 %v8
  %v34 = vunpack.c.l.bf16 %v9
  %v35 = vunpack.c.l.bf16 %v10
  %v36 = vunpack.c.l.bf16 %v11
  %v37 = vunpack.c.l.bf16 %v12
  %v38 = vunpack.c.l.bf16 %v13
  %v39 = vunpack.c.l.bf16 %v14
  %v40 = vunpack.c.l.bf16 %v15
  %v41 = vunpack.c.l.bf16 %v16
  %v42 = vunpack.c.l.bf16 %v17
  %v43 = vunpack.c.l.bf16 %v18
  %v44 = vunpack.c.l.bf16 %v19
  %v45 = vunpack.c.l.bf16 %v20
  %v46 = vunpack.c.l.bf16 %v21
  %v47 = vunpack.c.l.bf16 %v22
  %v48 = vunpack.c.l.bf16 %v23
  %v49 = vunpack.c.l.bf16 %v24
  %v50 = vunpack.c.l.bf16 %v25
  %v51 = vunpack.c.l.bf16 %v26
  %v52 = vunpack.c.l.bf16 %v27
  %v53 = vunpack.c.l.bf16 %v28
  %v54 = vunpack.c.l.bf16 %v29
  %v55 = vunpack.c.l.bf16 %v30
  %v56 = vunpack.c.l.bf16 %v31
  %v57 = vunpack.c.l.bf16 %v32
  %s58 = scalar_lea.vmem %s0, 100
  %v59 = vld [vmem:[%s58] sm:$0xf]
  %v60 = vld [vmem:[%s58 + $0x4] sm:$0xf]
  %v61 = vld [vmem:[%s58 + $0x8] sm:$0xf]
  %v62 = vld [vmem:[%s58 + $0xc] sm:$0xf]
  %v63 = vld [vmem:[%s58 + $0x10] sm:$0xf]
  %v64 = vld [vmem:[%s58 + $0x14] sm:$0xf]
  %v65 = vld [vmem:[%s58 + $0x18] sm:$0xf]
  %v66 = vld [vmem:[%s58 + $0x1c] sm:$0xf]
  %v67 = vld [vmem:[%s58 + $0x20] sm:$0xf]
  %v68 = vld [vmem:[%s58 + $0x24] sm:$0xf]
  %v69 = vld [vmem:[%s58 + $0x28] sm:$0xf]
  %v70 = vld [vmem:[%s58 + $0x2c] sm:$0xf]
  %v71 = vld [vmem:[%s58 + $0x30] sm:$0xf]
  %v72 = vld [vmem:[%s58 + $0x34] sm:$0xf]
  %v73 = vld [vmem:[%s58 + $0x38] sm:$0xf]
  %v74 = vld [vmem:[%s58 + $0x3c] sm:$0xf]
  %v75 = vld [vmem:[%s58 + $0x40] sm:$0xf]
  %v76 = vld [vmem:[%s58 + $0x44] sm:$0xf]
  %v77 = vld [vmem:[%s58 + $0x48] sm:$0xf]
  %v78 = vld [vmem:[%s58 + $0x4c] sm:$0xf]
  %v79 = vld [vmem:[%s58 + $0x50] sm:$0xf]
  %v80 = vld [vmem:[%s58 + $0x54] sm:$0xf]
  %v81 = vld [vmem:[%s58 + $0x58] sm:$0xf]
  %v82 = vld [vmem:[%s58 + $0x5c] sm:$0xf]
  %v83 = vld [vmem:[%s58 + $0x60] sm:$0xf]
  %v84 = vunpack.c.l.bf16 %v59
  %v85 = vunpack.c.l.bf16 %v60
  %v86 = vunpack.c.l.bf16 %v61
  %v87 = vunpack.c.l.bf16 %v62
  %v88 = vunpack.c.l.bf16 %v63
  %v89 = vunpack.c.l.bf16 %v64
  %v90 = vunpack.c.l.bf16 %v65
  %v91 = vunpack.c.l.bf16 %v66
  %v92 = vunpack.c.l.bf16 %v67
  %v93 = vunpack.c.l.bf16 %v68
  %v94 = vunpack.c.l.bf16 %v69
  %v95 = vunpack.c.l.bf16 %v70
  %v96 = vunpack.c.l.bf16 %v71
  %v97 = vunpack.c.l.bf16 %v72
  %v98 = vunpack.c.l.bf16 %v73
  %v99 = vunpack.c.l.bf16 %v74
  %v100 = vunpack.c.l.bf16 %v75
  %v101 = vunpack.c.l.bf16 %v76
  %v102 = vunpack.c.l.bf16 %v77
  %v103 = vunpack.c.l.bf16 %v78
  %v104 = vunpack.c.l.bf16 %v79
  %v105 = vunpack.c.l.bf16 %v80
  %v106 = vunpack.c.l.bf16 %v81
  %v107 = vunpack.c.l.bf16 %v82
  %v108 = vunpack.c.l.bf16 %v83
  %v109 = vmax.f32 %v33, %v84
  %v110 = vmax.f32 %v34, %v85
  %v111 = vmax.f32 %v35, %v86
  %v112 = vmax.f32 %v36, %v87
  %v113 = vmax.f32 %v37, %v88
  %v114 = vmax.f32 %v38, %v89
  %v115 = vmax.f32 %v39, %v90
  %v116 = vmax.f32 %v40, %v91
  %v117 = vmax.f32 %v41, %v92
  %v118 = vmax.f32 %v42, %v93
  %v119 = vmax.f32 %v43, %v94
  %v120 = vmax.f32 %v44, %v95
  %v121 = vmax.f32 %v45, %v96
  %v122 = vmax.f32 %v46, %v97
  %v123 = vmax.f32 %v47, %v98
  %v124 = vmax.f32 %v48, %v99
  %v125 = vmax.f32 %v49, %v100
  %v126 = vmax.f32 %v50, %v101
  %v127 = vmax.f32 %v51, %v102
  %v128 = vmax.f32 %v52, %v103
  %v129 = vmax.f32 %v53, %v104
  %v130 = vmax.f32 %v54, %v105
  %v131 = vmax.f32 %v55, %v106
  %v132 = vmax.f32 %v56, %v107
  %v133 = vmax.f32 %v57, %v108
  %s134 = scalar_lea.vmem %s0, 200
  %v135 = vld [vmem:[%s134] sm:$0xf]
  %v136 = vld [vmem:[%s134 + $0x4] sm:$0xf]
  %v137 = vld [vmem:[%s134 + $0x8] sm:$0xf]
  %v138 = vld [vmem:[%s134 + $0xc] sm:$0xf]
  %v139 = vld [vmem:[%s134 + $0x10] sm:$0xf]
  %v140 = vld [vmem:[%s134 + $0x14] sm:$0xf]
  %v141 = vld [vmem:[%s134 + $0x18] sm:$0xf]
  %v142 = vld [vmem:[%s134 + $0x1c] sm:$0xf]
  %v143 = vld [vmem:[%s134 + $0x20] sm:$0xf]
  %v144 = vld [vmem:[%s134 + $0x24] sm:$0xf]
  %v145 = vld [vmem:[%s134 + $0x28] sm:$0xf]
  %v146 = vld [vmem:[%s134 + $0x2c] sm:$0xf]
  %v147 = vld [vmem:[%s134 + $0x30] sm:$0xf]
  %v148 = vld [vmem:[%s134 + $0x34] sm:$0xf]
  %v149 = vld [vmem:[%s134 + $0x38] sm:$0xf]
  %v150 = vld [vmem:[%s134 + $0x3c] sm:$0xf]
  %v151 = vld [vmem:[%s134 + $0x40] sm:$0xf]
  %v152 = vld [vmem:[%s134 + $0x44] sm:$0xf]
  %v153 = vld [vmem:[%s134 + $0x48] sm:$0xf]
  %v154 = vld [vmem:[%s134 + $0x4c] sm:$0xf]
  %v155 = vld [vmem:[%s134 + $0x50] sm:$0xf]
  %v156 = vld [vmem:[%s134 + $0x54] sm:$0xf]
  %v157 = vld [vmem:[%s134 + $0x58] sm:$0xf]
  %v158 = vld [vmem:[%s134 + $0x5c] sm:$0xf]
  %v159 = vld [vmem:[%s134 + $0x60] sm:$0xf]
  %v160 = vunpack.c.l.bf16 %v135
  %v161 = vunpack.c.l.bf16 %v136
  %v162 = vunpack.c.l.bf16 %v137
  %v163 = vunpack.c.l.bf16 %v138
  %v164 = vunpack.c.l.bf16 %v139
  %v165 = vunpack.c.l.bf16 %v140
  %v166 = vunpack.c.l.bf16 %v141
  %v167 = vunpack.c.l.bf16 %v142
  %v168 = vunpack.c.l.bf16 %v143
  %v169 = vunpack.c.l.bf16 %v144
  %v170 = vunpack.c.l.bf16 %v145
  %v171 = vunpack.c.l.bf16 %v146
  %v172 = vunpack.c.l.bf16 %v147
  %v173 = vunpack.c.l.bf16 %v148
  %v174 = vunpack.c.l.bf16 %v149
  %v175 = vunpack.c.l.bf16 %v150
  %v176 = vunpack.c.l.bf16 %v151
  %v177 = vunpack.c.l.bf16 %v152
  %v178 = vunpack.c.l.bf16 %v153
  %v179 = vunpack.c.l.bf16 %v154
  %v180 = vunpack.c.l.bf16 %v155
  %v181 = vunpack.c.l.bf16 %v156
  %v182 = vunpack.c.l.bf16 %v157
  %v183 = vunpack.c.l.bf16 %v158
  %v184 = vunpack.c.l.bf16 %v159
  %v185 = vmax.f32 %v109, %v160
  %v186 = vmax.f32 %v110, %v161
  %v187 = vmax.f32 %v111, %v162
  %v188 = vmax.f32 %v112, %v163
  %v189 = vmax.f32 %v113, %v164
  %v190 = vmax.f32 %v114, %v165
  %v191 = vmax.f32 %v115, %v166
  %v192 = vmax.f32 %v116, %v167
  %v193 = vmax.f32 %v117, %v168
  %v194 = vmax.f32 %v118, %v169
  %v195 = vmax.f32 %v119, %v170
  %v196 = vmax.f32 %v120, %v171
  %v197 = vmax.f32 %v121, %v172
  %v198 = vmax.f32 %v122, %v173
  %v199 = vmax.f32 %v123, %v174
  %v200 = vmax.f32 %v124, %v175
  %v201 = vmax.f32 %v125, %v176
  %v202 = vmax.f32 %v126, %v177
  %v203 = vmax.f32 %v127, %v178
  %v204 = vmax.f32 %v128, %v179
  %v205 = vmax.f32 %v129, %v180
  %v206 = vmax.f32 %v130, %v181
  %v207 = vmax.f32 %v131, %v182
  %v208 = vmax.f32 %v132, %v183
  %v209 = vmax.f32 %v133, %v184
  %s210 = scalar_lea.vmem %s0, 300
  %v211 = vld [vmem:[%s210] sm:$0xf]
  %v212 = vld [vmem:[%s210 + $0x4] sm:$0xf]
  %v213 = vld [vmem:[%s210 + $0x8] sm:$0xf]
  %v214 = vld [vmem:[%s210 + $0xc] sm:$0xf]
  %v215 = vld [vmem:[%s210 + $0x10] sm:$0xf]
  %v216 = vld [vmem:[%s210 + $0x14] sm:$0xf]
  %v217 = vld [vmem:[%s210 + $0x18] sm:$0xf]
  %v218 = vld [vmem:[%s210 + $0x1c] sm:$0xf]
  %v219 = vld [vmem:[%s210 + $0x20] sm:$0xf]
  %v220 = vld [vmem:[%s210 + $0x24] sm:$0xf]
  %v221 = vld [vmem:[%s210 + $0x28] sm:$0xf]
  %v222 = vld [vmem:[%s210 + $0x2c] sm:$0xf]
  %v223 = vld [vmem:[%s210 + $0x30] sm:$0xf]
  %v224 = vld [vmem:[%s210 + $0x34] sm:$0xf]
  %v225 = vld [vmem:[%s210 + $0x38] sm:$0xf]
  %v226 = vld [vmem:[%s210 + $0x3c] sm:$0xf]
  %v227 = vld [vmem:[%s210 + $0x40] sm:$0xf]
  %v228 = vld [vmem:[%s210 + $0x44] sm:$0xf]
  %v229 = vld [vmem:[%s210 + $0x48] sm:$0xf]
  %v230 = vld [vmem:[%s210 + $0x4c] sm:$0xf]
  %v231 = vld [vmem:[%s210 + $0x50] sm:$0xf]
  %v232 = vld [vmem:[%s210 + $0x54] sm:$0xf]
  %v233 = vld [vmem:[%s210 + $0x58] sm:$0xf]
  %v234 = vld [vmem:[%s210 + $0x5c] sm:$0xf]
  %v235 = vld [vmem:[%s210 + $0x60] sm:$0xf]
  %v236 = vunpack.c.l.bf16 %v211
  %v237 = vunpack.c.l.bf16 %v212
  %v238 = vunpack.c.l.bf16 %v213
  %v239 = vunpack.c.l.bf16 %v214
  %v240 = vunpack.c.l.bf16 %v215
  %v241 = vunpack.c.l.bf16 %v216
  %v242 = vunpack.c.l.bf16 %v217
  %v243 = vunpack.c.l.bf16 %v218
  %v244 = vunpack.c.l.bf16 %v219
  %v245 = vunpack.c.l.bf16 %v220
  %v246 = vunpack.c.l.bf16 %v221
  %v247 = vunpack.c.l.bf16 %v222
  %v248 = vunpack.c.l.bf16 %v223
  %v249 = vunpack.c.l.bf16 %v224
  %v250 = vunpack.c.l.bf16 %v225
  %v251 = vunpack.c.l.bf16 %v226
  %v252 = vunpack.c.l.bf16 %v227
  %v253 = vunpack.c.l.bf16 %v228
  %v254 = vunpack.c.l.bf16 %v229
  %v255 = vunpack.c.l.bf16 %v230
  %v256 = vunpack.c.l.bf16 %v231
  %v257 = vunpack.c.l.bf16 %v232
  %v258 = vunpack.c.l.bf16 %v233
  %v259 = vunpack.c.l.bf16 %v234
  %v260 = vunpack.c.l.bf16 %v235
  %v261 = vmax.f32 %v185, %v236
  %v262 = vmax.f32 %v186, %v237
  %v263 = vmax.f32 %v187, %v238
  %v264 = vmax.f32 %v188, %v239
  %v265 = vmax.f32 %v189, %v240
  %v266 = vmax.f32 %v190, %v241
  %v267 = vmax.f32 %v191, %v242
  %v268 = vmax.f32 %v192, %v243
  %v269 = vmax.f32 %v193, %v244
  %v270 = vmax.f32 %v194, %v245
  %v271 = vmax.f32 %v195, %v246
  %v272 = vmax.f32 %v196, %v247
  %v273 = vmax.f32 %v197, %v248
  %v274 = vmax.f32 %v198, %v249
  %v275 = vmax.f32 %v199, %v250
  %v276 = vmax.f32 %v200, %v251
  %v277 = vmax.f32 %v201, %v252
  %v278 = vmax.f32 %v202, %v253
  %v279 = vmax.f32 %v203, %v254
  %v280 = vmax.f32 %v204, %v255
  %v281 = vmax.f32 %v205, %v256
  %v282 = vmax.f32 %v206, %v257
  %v283 = vmax.f32 %v207, %v258
  %v284 = vmax.f32 %v208, %v259
  %v285 = vmax.f32 %v209, %v260
  %s286 = scalar_lea.vmem %s0, 400
  %v287 = vld [vmem:[%s286] sm:$0xf]
  %v288 = vld [vmem:[%s286 + $0x4] sm:$0xf]
  %v289 = vld [vmem:[%s286 + $0x8] sm:$0xf]
  %v290 = vld [vmem:[%s286 + $0xc] sm:$0xf]
  %v291 = vld [vmem:[%s286 + $0x10] sm:$0xf]
  %v292 = vld [vmem:[%s286 + $0x14] sm:$0xf]
  %v293 = vld [vmem:[%s286 + $0x18] sm:$0xf]
  %v294 = vld [vmem:[%s286 + $0x1c] sm:$0xf]
  %v295 = vld [vmem:[%s286 + $0x20] sm:$0xf]
  %v296 = vld [vmem:[%s286 + $0x24] sm:$0xf]
  %v297 = vld [vmem:[%s286 + $0x28] sm:$0xf]
  %v298 = vld [vmem:[%s286 + $0x2c] sm:$0xf]
  %v299 = vld [vmem:[%s286 + $0x30] sm:$0xf]
  %v300 = vld [vmem:[%s286 + $0x34] sm:$0xf]
  %v301 = vld [vmem:[%s286 + $0x38] sm:$0xf]
  %v302 = vld [vmem:[%s286 + $0x3c] sm:$0xf]
  %v303 = vld [vmem:[%s286 + $0x40] sm:$0xf]
  %v304 = vld [vmem:[%s286 + $0x44] sm:$0xf]
  %v305 = vld [vmem:[%s286 + $0x48] sm:$0xf]
  %v306 = vld [vmem:[%s286 + $0x4c] sm:$0xf]
  %v307 = vld [vmem:[%s286 + $0x50] sm:$0xf]
  %v308 = vld [vmem:[%s286 + $0x54] sm:$0xf]
  %v309 = vld [vmem:[%s286 + $0x58] sm:$0xf]
  %v310 = vld [vmem:[%s286 + $0x5c] sm:$0xf]
  %v311 = vld [vmem:[%s286 + $0x60] sm:$0xf]
  %v312 = vunpack.c.l.bf16 %v287
  %v313 = vunpack.c.l.bf16 %v288
  %v314 = vunpack.c.l.bf16 %v289
  %v315 = vunpack.c.l.bf16 %v290
  %v316 = vunpack.c.l.bf16 %v291
  %v317 = vunpack.c.l.bf16 %v292
  %v318 = vunpack.c.l.bf16 %v293
  %v319 = vunpack.c.l.bf16 %v294
  %v320 = vunpack.c.l.bf16 %v295
  %v321 = vunpack.c.l.bf16 %v296
  %v322 = vunpack.c.l.bf16 %v297
  %v323 = vunpack.c.l.bf16 %v298
  %v324 = vunpack.c.l.bf16 %v299
  %v325 = vunpack.c.l.bf16 %v300
  %v326 = vunpack.c.l.bf16 %v301
  %v327 = vunpack.c.l.bf16 %v302
  %v328 = vunpack.c.l.bf16 %v303
  %v329 = vunpack.c.l.bf16 %v304
  %v330 = vunpack.c.l.bf16 %v305
  %v331 = vunpack.c.l.bf16 %v306
  %v332 = vunpack.c.l.bf16 %v307
  %v333 = vunpack.c.l.bf16 %v308
  %v334 = vunpack.c.l.bf16 %v309
  %v335 = vunpack.c.l.bf16 %v310
  %v336 = vunpack.c.l.bf16 %v311
  %v337 = vmax.f32 %v261, %v312
  %v338 = vmax.f32 %v262, %v313
  %v339 = vmax.f32 %v263, %v314
  %v340 = vmax.f32 %v264, %v315
  %v341 = vmax.f32 %v265, %v316
  %v342 = vmax.f32 %v266, %v317
  %v343 = vmax.f32 %v267, %v318
  %v344 = vmax.f32 %v268, %v319
  %v345 = vmax.f32 %v269, %v320
  %v346 = vmax.f32 %v270, %v321
  %v347 = vmax.f32 %v271, %v322
  %v348 = vmax.f32 %v272, %v323
  %v349 = vmax.f32 %v273, %v324
  %v350 = vmax.f32 %v274, %v325
  %v351 = vmax.f32 %v275, %v326
  %v352 = vmax.f32 %v276, %v327
  %v353 = vmax.f32 %v277, %v328
  %v354 = vmax.f32 %v278, %v329
  %v355 = vmax.f32 %v279, %v330
  %v356 = vmax.f32 %v280, %v331
  %v357 = vmax.f32 %v281, %v332
  %v358 = vmax.f32 %v282, %v333
  %v359 = vmax.f32 %v283, %v334
  %v360 = vmax.f32 %v284, %v335
  %v361 = vmax.f32 %v285, %v336
  %s362 = scalar_lea.vmem %s0, 500
  %v363 = vld [vmem:[%s362] sm:$0xf]
  %v364 = vld [vmem:[%s362 + $0x4] sm:$0xf]
  %v365 = vld [vmem:[%s362 + $0x8] sm:$0xf]
  %v366 = vld [vmem:[%s362 + $0xc] sm:$0xf]
  %v367 = vld [vmem:[%s362 + $0x10] sm:$0xf]
  %v368 = vld [vmem:[%s362 + $0x14] sm:$0xf]
  %v369 = vld [vmem:[%s362 + $0x18] sm:$0xf]
  %v370 = vld [vmem:[%s362 + $0x1c] sm:$0xf]
  %v371 = vld [vmem:[%s362 + $0x20] sm:$0xf]
  %v372 = vld [vmem:[%s362 + $0x24] sm:$0xf]
  %v373 = vld [vmem:[%s362 + $0x28] sm:$0xf]
  %v374 = vld [vmem:[%s362 + $0x2c] sm:$0xf]
  %v375 = vld [vmem:[%s362 + $0x30] sm:$0xf]
  %v376 = vld [vmem:[%s362 + $0x34] sm:$0xf]
  %v377 = vld [vmem:[%s362 + $0x38] sm:$0xf]
  %v378 = vld [vmem:[%s362 + $0x3c] sm:$0xf]
  %v379 = vld [vmem:[%s362 + $0x40] sm:$0xf]
  %v380 = vld [vmem:[%s362 + $0x44] sm:$0xf]
  %v381 = vld [vmem:[%s362 + $0x48] sm:$0xf]
  %v382 = vld [vmem:[%s362 + $0x4c] sm:$0xf]
  %v383 = vld [vmem:[%s362 + $0x50] sm:$0xf]
  %v384 = vld [vmem:[%s362 + $0x54] sm:$0xf]
  %v385 = vld [vmem:[%s362 + $0x58] sm:$0xf]
  %v386 = vld [vmem:[%s362 + $0x5c] sm:$0xf]
  %v387 = vld [vmem:[%s362 + $0x60] sm:$0xf]
  %v388 = vunpack.c.l.bf16 %v363
  %v389 = vunpack.c.l.bf16 %v364
  %v390 = vunpack.c.l.bf16 %v365
  %v391 = vunpack.c.l.bf16 %v366
  %v392 = vunpack.c.l.bf16 %v367
  %v393 = vunpack.c.l.bf16 %v368
  %v394 = vunpack.c.l.bf16 %v369
  %v395 = vunpack.c.l.bf16 %v370
  %v396 = vunpack.c.l.bf16 %v371
  %v397 = vunpack.c.l.bf16 %v372
  %v398 = vunpack.c.l.bf16 %v373
  %v399 = vunpack.c.l.bf16 %v374
  %v400 = vunpack.c.l.bf16 %v375
  %v401 = vunpack.c.l.bf16 %v376
  %v402 = vunpack.c.l.bf16 %v377
  %v403 = vunpack.c.l.bf16 %v378
  %v404 = vunpack.c.l.bf16 %v379
  %v405 = vunpack.c.l.bf16 %v380
  %v406 = vunpack.c.l.bf16 %v381
  %v407 = vunpack.c.l.bf16 %v382
  %v408 = vunpack.c.l.bf16 %v383
  %v409 = vunpack.c.l.bf16 %v384
  %v410 = vunpack.c.l.bf16 %v385
  %v411 = vunpack.c.l.bf16 %v386
  %v412 = vunpack.c.l.bf16 %v387
  %v413 = vmax.f32 %v337, %v388
  %v414 = vmax.f32 %v338, %v389
  %v415 = vmax.f32 %v339, %v390
  %v416 = vmax.f32 %v340, %v391
  %v417 = vmax.f32 %v341, %v392
  %v418 = vmax.f32 %v342, %v393
  %v419 = vmax.f32 %v343, %v394
  %v420 = vmax.f32 %v344, %v395
  %v421 = vmax.f32 %v345, %v396
  %v422 = vmax.f32 %v346, %v397
  %v423 = vmax.f32 %v347, %v398
  %v424 = vmax.f32 %v348, %v399
  %v425 = vmax.f32 %v349, %v400
  %v426 = vmax.f32 %v350, %v401
  %v427 = vmax.f32 %v351, %v402
  %v428 = vmax.f32 %v352, %v403
  %v429 = vmax.f32 %v353, %v404
  %v430 = vmax.f32 %v354, %v405
  %v431 = vmax.f32 %v355, %v406
  %v432 = vmax.f32 %v356, %v407
  %v433 = vmax.f32 %v357, %v408
  %v434 = vmax.f32 %v358, %v409
  %v435 = vmax.f32 %v359, %v410
  %v436 = vmax.f32 %v360, %v411
  %v437 = vmax.f32 %v361, %v412
  %s438 = scalar_lea.vmem %s0, 600
  %v439 = vld [vmem:[%s438] sm:$0xf]
  %v440 = vld [vmem:[%s438 + $0x4] sm:$0xf]
  %v441 = vld [vmem:[%s438 + $0x8] sm:$0xf]
  %v442 = vld [vmem:[%s438 + $0xc] sm:$0xf]
  %v443 = vld [vmem:[%s438 + $0x10] sm:$0xf]
  %v444 = vld [vmem:[%s438 + $0x14] sm:$0xf]
  %v445 = vld [vmem:[%s438 + $0x18] sm:$0xf]
  %v446 = vld [vmem:[%s438 + $0x1c] sm:$0xf]
  %v447 = vld [vmem:[%s438 + $0x20] sm:$0xf]
  %v448 = vld [vmem:[%s438 + $0x24] sm:$0xf]
  %v449 = vld [vmem:[%s438 + $0x28] sm:$0xf]
  %v450 = vld [vmem:[%s438 + $0x2c] sm:$0xf]
  %v451 = vld [vmem:[%s438 + $0x30] sm:$0xf]
  %v452 = vld [vmem:[%s438 + $0x34] sm:$0xf]
  %v453 = vld [vmem:[%s438 + $0x38] sm:$0xf]
  %v454 = vld [vmem:[%s438 + $0x3c] sm:$0xf]
  %v455 = vld [vmem:[%s438 + $0x40] sm:$0xf]
  %v456 = vld [vmem:[%s438 + $0x44] sm:$0xf]
  %v457 = vld [vmem:[%s438 + $0x48] sm:$0xf]
  %v458 = vld [vmem:[%s438 + $0x4c] sm:$0xf]
  %v459 = vld [vmem:[%s438 + $0x50] sm:$0xf]
  %v460 = vld [vmem:[%s438 + $0x54] sm:$0xf]
  %v461 = vld [vmem:[%s438 + $0x58] sm:$0xf]
  %v462 = vld [vmem:[%s438 + $0x5c] sm:$0xf]
  %v463 = vld [vmem:[%s438 + $0x60] sm:$0xf]
  %v464 = vunpack.c.l.bf16 %v439
  %v465 = vunpack.c.l.bf16 %v440
  %v466 = vunpack.c.l.bf16 %v441
  %v467 = vunpack.c.l.bf16 %v442
  %v468 = vunpack.c.l.bf16 %v443
  %v469 = vunpack.c.l.bf16 %v444
  %v470 = vunpack.c.l.bf16 %v445
  %v471 = vunpack.c.l.bf16 %v446
  %v472 = vunpack.c.l.bf16 %v447
  %v473 = vunpack.c.l.bf16 %v448
  %v474 = vunpack.c.l.bf16 %v449
  %v475 = vunpack.c.l.bf16 %v450
  %v476 = vunpack.c.l.bf16 %v451
  %v477 = vunpack.c.l.bf16 %v452
  %v478 = vunpack.c.l.bf16 %v453
  %v479 = vunpack.c.l.bf16 %v454
  %v480 = vunpack.c.l.bf16 %v455
  %v481 = vunpack.c.l.bf16 %v456
  %v482 = vunpack.c.l.bf16 %v457
  %v483 = vunpack.c.l.bf16 %v458
  %v484 = vunpack.c.l.bf16 %v459
  %v485 = vunpack.c.l.bf16 %v460
  %v486 = vunpack.c.l.bf16 %v461
  %v487 = vunpack.c.l.bf16 %v462
  %v488 = vunpack.c.l.bf16 %v463
  %v489 = vmax.f32 %v413, %v464
  %v490 = vmax.f32 %v414, %v465
  %v491 = vmax.f32 %v415, %v466
  %v492 = vmax.f32 %v416, %v467
  %v493 = vmax.f32 %v417, %v468
  %v494 = vmax.f32 %v418, %v469
  %v495 = vmax.f32 %v419, %v470
  %v496 = vmax.f32 %v420, %v471
  %v497 = vmax.f32 %v421, %v472
  %v498 = vmax.f32 %v422, %v473
  %v499 = vmax.f32 %v423, %v474
  %v500 = vmax.f32 %v424, %v475
  %v501 = vmax.f32 %v425, %v476
  %v502 = vmax.f32 %v426, %v477
  %v503 = vmax.f32 %v427, %v478
  %v504 = vmax.f32 %v428, %v479
  %v505 = vmax.f32 %v429, %v480
  %v506 = vmax.f32 %v430, %v481
  %v507 = vmax.f32 %v431, %v482
  %v508 = vmax.f32 %v432, %v483
  %v509 = vmax.f32 %v433, %v484
  %v510 = vmax.f32 %v434, %v485
  %v511 = vmax.f32 %v435, %v486
  %v512 = vmax.f32 %v436, %v487
  %v513 = vmax.f32 %v437, %v488
  %s514 = scalar_lea.vmem %s0, 700
  %v515 = vld [vmem:[%s514] sm:$0xf]
  %v516 = vld [vmem:[%s514 + $0x4] sm:$0xf]
  %v517 = vld [vmem:[%s514 + $0x8] sm:$0xf]
  %v518 = vld [vmem:[%s514 + $0xc] sm:$0xf]
  %v519 = vld [vmem:[%s514 + $0x10] sm:$0xf]
  %v520 = vld [vmem:[%s514 + $0x14] sm:$0xf]
  %v521 = vld [vmem:[%s514 + $0x18] sm:$0xf]
  %v522 = vld [vmem:[%s514 + $0x1c] sm:$0xf]
  %v523 = vld [vmem:[%s514 + $0x20] sm:$0xf]
  %v524 = vld [vmem:[%s514 + $0x24] sm:$0xf]
  %v525 = vld [vmem:[%s514 + $0x28] sm:$0xf]
  %v526 = vld [vmem:[%s514 + $0x2c] sm:$0xf]
  %v527 = vld [vmem:[%s514 + $0x30] sm:$0xf]
  %v528 = vld [vmem:[%s514 + $0x34] sm:$0xf]
  %v529 = vld [vmem:[%s514 + $0x38] sm:$0xf]
  %v530 = vld [vmem:[%s514 + $0x3c] sm:$0xf]
  %v531 = vld [vmem:[%s514 + $0x40] sm:$0xf]
  %v532 = vld [vmem:[%s514 + $0x44] sm:$0xf]
  %v533 = vld [vmem:[%s514 + $0x48] sm:$0xf]
  %v534 = vld [vmem:[%s514 + $0x4c] sm:$0xf]
  %v535 = vld [vmem:[%s514 + $0x50] sm:$0xf]
  %v536 = vld [vmem:[%s514 + $0x54] sm:$0xf]
  %v537 = vld [vmem:[%s514 + $0x58] sm:$0xf]
  %v538 = vld [vmem:[%s514 + $0x5c] sm:$0xf]
  %v539 = vld [vmem:[%s514 + $0x60] sm:$0xf]
  %v540 = vunpack.c.l.bf16 %v515
  %v541 = vunpack.c.l.bf16 %v516
  %v542 = vunpack.c.l.bf16 %v517
  %v543 = vunpack.c.l.bf16 %v518
  %v544 = vunpack.c.l.bf16 %v519
  %v545 = vunpack.c.l.bf16 %v520
  %v546 = vunpack.c.l.bf16 %v521
  %v547 = vunpack.c.l.bf16 %v522
  %v548 = vunpack.c.l.bf16 %v523
  %v549 = vunpack.c.l.bf16 %v524
  %v550 = vunpack.c.l.bf16 %v525
  %v551 = vunpack.c.l.bf16 %v526
  %v552 = vunpack.c.l.bf16 %v527
  %v553 = vunpack.c.l.bf16 %v528
  %v554 = vunpack.c.l.bf16 %v529
  %v555 = vunpack.c.l.bf16 %v530
  %v556 = vunpack.c.l.bf16 %v531
  %v557 = vunpack.c.l.bf16 %v532
  %v558 = vunpack.c.l.bf16 %v533
  %v559 = vunpack.c.l.bf16 %v534
  %v560 = vunpack.c.l.bf16 %v535
  %v561 = vunpack.c.l.bf16 %v536
  %v562 = vunpack.c.l.bf16 %v537
  %v563 = vunpack.c.l.bf16 %v538
  %v564 = vunpack.c.l.bf16 %v539
  %v565 = vmax.f32 %v489, %v540
  %v566 = vmax.f32 %v490, %v541
  %v567 = vmax.f32 %v491, %v542
  %v568 = vmax.f32 %v492, %v543
  %v569 = vmax.f32 %v493, %v544
  %v570 = vmax.f32 %v494, %v545
  %v571 = vmax.f32 %v495, %v546
  %v572 = vmax.f32 %v496, %v547
  %v573 = vmax.f32 %v497, %v548
  %v574 = vmax.f32 %v498, %v549
  %v575 = vmax.f32 %v499, %v550
  %v576 = vmax.f32 %v500, %v551
  %v577 = vmax.f32 %v501, %v552
  %v578 = vmax.f32 %v502, %v553
  %v579 = vmax.f32 %v503, %v554
  %v580 = vmax.f32 %v504, %v555
  %v581 = vmax.f32 %v505, %v556
  %v582 = vmax.f32 %v506, %v557
  %v583 = vmax.f32 %v507, %v558
  %v584 = vmax.f32 %v508, %v559
  %v585 = vmax.f32 %v509, %v560
  %v586 = vmax.f32 %v510, %v561
  %v587 = vmax.f32 %v511, %v562
  %v588 = vmax.f32 %v512, %v563
  %v589 = vmax.f32 %v513, %v564
  %s590 = scalar_lea.vmem %s0, 800
  %v591 = vld [vmem:[%s590] sm:$0xf]
  %v592 = vld [vmem:[%s590 + $0x4] sm:$0xf]
  %v593 = vld [vmem:[%s590 + $0x8] sm:$0xf]
  %v594 = vld [vmem:[%s590 + $0xc] sm:$0xf]
  %v595 = vld [vmem:[%s590 + $0x10] sm:$0xf]
  %v596 = vld [vmem:[%s590 + $0x14] sm:$0xf]
  %v597 = vld [vmem:[%s590 + $0x18] sm:$0xf]
  %v598 = vld [vmem:[%s590 + $0x1c] sm:$0xf]
  %v599 = vld [vmem:[%s590 + $0x20] sm:$0xf]
  %v600 = vld [vmem:[%s590 + $0x24] sm:$0xf]
  %v601 = vld [vmem:[%s590 + $0x28] sm:$0xf]
  %v602 = vld [vmem:[%s590 + $0x2c] sm:$0xf]
  %v603 = vld [vmem:[%s590 + $0x30] sm:$0xf]
  %v604 = vld [vmem:[%s590 + $0x34] sm:$0xf]
  %v605 = vld [vmem:[%s590 + $0x38] sm:$0xf]
  %v606 = vld [vmem:[%s590 + $0x3c] sm:$0xf]
  %v607 = vld [vmem:[%s590 + $0x40] sm:$0xf]
  %v608 = vld [vmem:[%s590 + $0x44] sm:$0xf]
  %v609 = vld [vmem:[%s590 + $0x48] sm:$0xf]
  %v610 = vld [vmem:[%s590 + $0x4c] sm:$0xf]
  %v611 = vld [vmem:[%s590 + $0x50] sm:$0xf]
  %v612 = vld [vmem:[%s590 + $0x54] sm:$0xf]
  %v613 = vld [vmem:[%s590 + $0x58] sm:$0xf]
  %v614 = vld [vmem:[%s590 + $0x5c] sm:$0xf]
  %v615 = vld [vmem:[%s590 + $0x60] sm:$0xf]
  %v616 = vunpack.c.l.bf16 %v591
  %v617 = vunpack.c.l.bf16 %v592
  %v618 = vunpack.c.l.bf16 %v593
  %v619 = vunpack.c.l.bf16 %v594
  %v620 = vunpack.c.l.bf16 %v595
  %v621 = vunpack.c.l.bf16 %v596
  %v622 = vunpack.c.l.bf16 %v597
  %v623 = vunpack.c.l.bf16 %v598
  %v624 = vunpack.c.l.bf16 %v599
  %v625 = vunpack.c.l.bf16 %v600
  %v626 = vunpack.c.l.bf16 %v601
  %v627 = vunpack.c.l.bf16 %v602
  %v628 = vunpack.c.l.bf16 %v603
  %v629 = vunpack.c.l.bf16 %v604
  %v630 = vunpack.c.l.bf16 %v605
  %v631 = vunpack.c.l.bf16 %v606
  %v632 = vunpack.c.l.bf16 %v607
  %v633 = vunpack.c.l.bf16 %v608
  %v634 = vunpack.c.l.bf16 %v609
  %v635 = vunpack.c.l.bf16 %v610
  %v636 = vunpack.c.l.bf16 %v611
  %v637 = vunpack.c.l.bf16 %v612
  %v638 = vunpack.c.l.bf16 %v613
  %v639 = vunpack.c.l.bf16 %v614
  %v640 = vunpack.c.l.bf16 %v615
  %v641 = vmax.f32 %v565, %v616
  %v642 = vmax.f32 %v566, %v617
  %v643 = vmax.f32 %v567, %v618
  %v644 = vmax.f32 %v568, %v619
  %v645 = vmax.f32 %v569, %v620
  %v646 = vmax.f32 %v570, %v621
  %v647 = vmax.f32 %v571, %v622
  %v648 = vmax.f32 %v572, %v623
  %v649 = vmax.f32 %v573, %v624
  %v650 = vmax.f32 %v574, %v625
  %v651 = vmax.f32 %v575, %v626
  %v652 = vmax.f32 %v576, %v627
  %v653 = vmax.f32 %v577, %v628
  %v654 = vmax.f32 %v578, %v629
  %v655 = vmax.f32 %v579, %v630
  %v656 = vmax.f32 %v580, %v631
  %v657 = vmax.f32 %v581, %v632
  %v658 = vmax.f32 %v582, %v633
  %v659 = vmax.f32 %v583, %v634
  %v660 = vmax.f32 %v584, %v635
  %v661 = vmax.f32 %v585, %v636
  %v662 = vmax.f32 %v586, %v637
  %v663 = vmax.f32 %v587, %v638
  %v664 = vmax.f32 %v588, %v639
  %v665 = vmax.f32 %v589, %v640
  %v666 = vpack.c.bf16 %v642, %v641
  %v667 = vpack.c.bf16 %v644, %v643
  %v668 = vpack.c.bf16 %v646, %v645
  %v669 = vpack.c.bf16 %v648, %v647
  %v670 = vpack.c.bf16 %v650, %v649
  %v671 = vpack.c.bf16 %v652, %v651
  %v672 = vpack.c.bf16 %v654, %v653
  %v673 = vpack.c.bf16 %v656, %v655
  %v674 = vpack.c.bf16 %v658, %v657
  %v675 = vpack.c.bf16 %v660, %v659
  %v676 = vpack.c.bf16 %v662, %v661
  %v677 = vpack.c.bf16 %v664, %v663
  %v678 = vpack.c.bf16 %v665, %v665
  %v692 = vunpack.c.l.b16 %v666
  %v693 = vunpack.c.h.b16 %v666
  %v694 = vunpack.c.l.b16 %v667
  %v695 = vunpack.c.h.b16 %v667
  %v696 = vunpack.c.l.b16 %v668
  %v697 = vunpack.c.h.b16 %v668
  %v698 = vunpack.c.l.b16 %v669
  %v699 = vunpack.c.h.b16 %v669
  %v700 = vunpack.c.l.b16 %v670
  %v701 = vunpack.c.h.b16 %v670
  %v702 = vunpack.c.l.b16 %v671
  %v703 = vunpack.c.h.b16 %v671
  %v704 = vunpack.c.l.b16 %v672
  %v705 = vunpack.c.h.b16 %v672
  %v706 = vunpack.c.l.b16 %v673
  %v707 = vunpack.c.h.b16 %v673
  %v708 = vunpack.c.l.b16 %v674
  %v709 = vunpack.c.h.b16 %v674
  %v710 = vunpack.c.l.b16 %v675
  %v711 = vunpack.c.h.b16 %v675
  %v712 = vunpack.c.l.b16 %v676
  %v713 = vunpack.c.h.b16 %v676
  %v714 = vunpack.c.l.b16 %v677
  %v715 = vunpack.c.h.b16 %v677
  %v716 = vunpack.c.l.b16 %v678
  %v717 = vpack.c.b16 %v692, %v692
  %v718 = vpack.c.b16 %v693, %v693
  %v719 = vpack.c.b16 %v694, %v694
  %v720 = vpack.c.b16 %v695, %v695
  %v721 = vpack.c.b16 %v696, %v696
  %v722 = vpack.c.b16 %v697, %v697
  %v723 = vpack.c.b16 %v698, %v698
  %v724 = vpack.c.b16 %v699, %v699
  %v725 = vpack.c.b16 %v700, %v700
  %v726 = vpack.c.b16 %v701, %v701
  %v727 = vpack.c.b16 %v702, %v702
  %v728 = vpack.c.b16 %v703, %v703
  %v729 = vpack.c.b16 %v704, %v704
  %v730 = vpack.c.b16 %v705, %v705
  %v731 = vpack.c.b16 %v706, %v706
  %v732 = vpack.c.b16 %v707, %v707
  %v733 = vpack.c.b16 %v708, %v708
  %v734 = vpack.c.b16 %v709, %v709
  %v735 = vpack.c.b16 %v710, %v710
  %v736 = vpack.c.b16 %v711, %v711
  %v737 = vpack.c.b16 %v712, %v712
  %v738 = vpack.c.b16 %v713, %v713
  %v739 = vpack.c.b16 %v714, %v714
  %v740 = vpack.c.b16 %v715, %v715
  %v741 = vpack.c.b16 %v716, %v716
  %vm767 = vcmask 125952
  %768 = vst.msk [vmem:[%s1] sm:$0xf] %vm767, %v717
  %769 = vst.msk [vmem:[%s1 + $0x4] sm:$0xf] %vm767, %v718
  %770 = vst.msk [vmem:[%s1 + $0x8] sm:$0xf] %vm767, %v719
  %771 = vst.msk [vmem:[%s1 + $0xc] sm:$0xf] %vm767, %v720
  %772 = vst.msk [vmem:[%s1 + $0x10] sm:$0xf] %vm767, %v721
  %773 = vst.msk [vmem:[%s1 + $0x14] sm:$0xf] %vm767, %v722
  %774 = vst.msk [vmem:[%s1 + $0x18] sm:$0xf] %vm767, %v723
  %775 = vst.msk [vmem:[%s1 + $0x1c] sm:$0xf] %vm767, %v724
  %776 = vst.msk [vmem:[%s1 + $0x20] sm:$0xf] %vm767, %v725
  %777 = vst.msk [vmem:[%s1 + $0x24] sm:$0xf] %vm767, %v726
  %778 = vst.msk [vmem:[%s1 + $0x28] sm:$0xf] %vm767, %v727
  %779 = vst.msk [vmem:[%s1 + $0x2c] sm:$0xf] %vm767, %v728
  %780 = vst.msk [vmem:[%s1 + $0x30] sm:$0xf] %vm767, %v729
  %781 = vst.msk [vmem:[%s1 + $0x34] sm:$0xf] %vm767, %v730
  %782 = vst.msk [vmem:[%s1 + $0x38] sm:$0xf] %vm767, %v731
  %783 = vst.msk [vmem:[%s1 + $0x3c] sm:$0xf] %vm767, %v732
  %784 = vst.msk [vmem:[%s1 + $0x40] sm:$0xf] %vm767, %v733
  %785 = vst.msk [vmem:[%s1 + $0x44] sm:$0xf] %vm767, %v734
  %786 = vst.msk [vmem:[%s1 + $0x48] sm:$0xf] %vm767, %v735
  %787 = vst.msk [vmem:[%s1 + $0x4c] sm:$0xf] %vm767, %v736
  %788 = vst.msk [vmem:[%s1 + $0x50] sm:$0xf] %vm767, %v737
  %789 = vst.msk [vmem:[%s1 + $0x54] sm:$0xf] %vm767, %v738
  %790 = vst.msk [vmem:[%s1 + $0x58] sm:$0xf] %vm767, %v739
  %791 = vst.msk [vmem:[%s1 + $0x5c] sm:$0xf] %vm767, %v740
  %792 = vst.msk [vmem:[%s1 + $0x60] sm:$0xf] %vm767, %v741
  // Predicated region
  $region6: #{encoder_forward.19} parent=0 // pred_check
    _
  $region7: #{encoder_forward.19} parent=0 // pred_check_branch
    %794 = sbr.rel (0) target = $region9
  $region8: #{encoder_forward.19} parent=0 // pred_region
    _
  $region9: #{encoder_forward.19} parent=0 // pred_fallthru
    _
  // Predicated region
  $region10: #{encoder_forward.19} parent=0 // pred_check
    _
  $region11: #{encoder_forward.19} parent=0 // pred_check_branch
    %796 = sbr.rel (0) target = $region13
  $region12: #{encoder_forward.19} parent=0 // pred_region
    _
  $region13: #{encoder_forward.19} parent=0 // pred_fallthru
    _

// kernel: encoder_forward.21
$region0: #{encoder_forward.21}
  #allocation0 [shape = 'u32[]', space=smem, size = 0x4, offset = 0x4, fixed_abs, tag = 'smem constant byte address 0x4 - core index']
  #allocation1 [shape = 'u32[144,128]{1,0:T(1,128)}', space=vmem, size = 0x12000, scoped, tag = 'internal scratch']
  %s0 = inlined_call_operand.vmem [shape: bf16[128,224], index: 0, kind: input, shape index: {}]
  %s1 = inlined_call_operand.vmem [shape: bf16[224,128], index: 1, kind: input, shape index: {}]
  %s2 = inlined_call_operand.vmem [shape: f32[1,128], index: 2, kind: input, shape index: {}]
  %s3 = inlined_call_operand.vmem [shape: f32[1,128], index: 3, kind: input, shape index: {}]
  %s4 = inlined_call_operand.vmem [shape: bf16[128,128], index: 4, kind: output, shape index: {}]
  %s5 = sld [smem:[#allocation0]]
  $region26: #{encoder_forward.21} parent=0
    _
  %s7 = ssub.s32 1, %s5
  %s8 = scalar_select 0, %s7, %s5
  // Predicated region
  $region2: #{encoder_forward.21} parent=0 // pred_check
    _
  $region3: #{encoder_forward.21} parent=0 // pred_check_branch
    %10 = sbr.rel (0) target = $region5
  $region4: #{encoder_forward.21} parent=0 // pred_region
    _
  $region5: #{encoder_forward.21} parent=0 // pred_fallthru
    _
  // Predicated region
  $region6: #{encoder_forward.21} parent=0 // pred_check
    _
  $region7: #{encoder_forward.21} parent=0 // pred_check_branch
    %12 = sbr.rel (0) target = $region9
  $region8: #{encoder_forward.21} parent=0 // pred_region
    _
  $region9: #{encoder_forward.21} parent=0 // pred_fallthru
    _
  // Predicated region
  $region10: #{encoder_forward.21} parent=0 // pred_check
    _
  $region11: #{encoder_forward.21} parent=0 // pred_check_branch
    %14 = sbr.rel (0) target = $region13
  $region12: #{encoder_forward.21} parent=0 // pred_region
    _
  $region13: #{encoder_forward.21} parent=0 // pred_fallthru
    _
  // Predicated region
  $region14: #{encoder_forward.21} parent=0 // pred_check
    _
  $region15: #{encoder_forward.21} parent=0 // pred_check_branch
    %16 = sbr.rel (0) target = $region17
  $region16: #{encoder_forward.21} parent=0 // pred_region
    _
  $region17: #{encoder_forward.21} parent=0 // pred_fallthru
    _
  %v18 = vld [vmem:[%s0] sm:$0xff]
  %v19 = vld [vmem:[%s0 + $0x8] sm:$0xff]
  %v20 = vld [vmem:[%s0 + $0x10] sm:$0xff]
  %v21 = vld [vmem:[%s0 + $0x18] sm:$0xff]
  %v22 = vld [vmem:[%s0 + $0x20] sm:$0xff]
  %v23 = vld [vmem:[%s0 + $0x28] sm:$0xff]
  %v24 = vld [vmem:[%s0 + $0x30] sm:$0xff]
  %v25 = vld [vmem:[%s0 + $0x38] sm:$0xff]
  %v26 = vld [vmem:[%s0 + $0x40] sm:$0xff]
  %v27 = vld [vmem:[%s0 + $0x48] sm:$0xff]
  %v28 = vld [vmem:[%s0 + $0x50] sm:$0xff]
  %v29 = vld [vmem:[%s0 + $0x58] sm:$0xff]
  %v30 = vld [vmem:[%s0 + $0x60] sm:$0xff]
  %v31 = vld [vmem:[%s0 + $0x68] sm:$0xff]
  %v32 = vld [vmem:[%s0 + $0x70] sm:$0xff]
  %v33 = vld [vmem:[%s0 + $0x78] sm:$0xff]
  %v34 = vld [vmem:[%s1] sm:$0xf]
  %v35 = vld [vmem:[%s1 + $0x4] sm:$0xf]
  %v36 = vld [vmem:[%s1 + $0x8] sm:$0xf]
  %v37 = vld [vmem:[%s1 + $0xc] sm:$0xf]
  %v38 = vld [vmem:[%s1 + $0x10] sm:$0xf]
  %v39 = vld [vmem:[%s1 + $0x14] sm:$0xf]
  %v40 = vld [vmem:[%s1 + $0x18] sm:$0xf]
  %v41 = vld [vmem:[%s1 + $0x1c] sm:$0xf]
  %v42 = vld [vmem:[%s1 + $0x20] sm:$0xf]
  %v43 = vld [vmem:[%s1 + $0x24] sm:$0xf]
  %v44 = vld [vmem:[%s1 + $0x28] sm:$0xf]
  %v45 = vld [vmem:[%s1 + $0x2c] sm:$0xf]
  %v46 = vld [vmem:[%s1 + $0x30] sm:$0xf]
  %v47 = vld [vmem:[%s1 + $0x34] sm:$0xf]
  %v48 = vld [vmem:[%s1 + $0x38] sm:$0xf]
  %v49 = vld [vmem:[%s1 + $0x3c] sm:$0xf]
  %v50 = vld [vmem:[%s1 + $0x40] sm:$0xf]
  %v51 = vld [vmem:[%s1 + $0x44] sm:$0xf]
  %v52 = vld [vmem:[%s1 + $0x48] sm:$0xf]
  %v53 = vld [vmem:[%s1 + $0x4c] sm:$0xf]
  %v54 = vld [vmem:[%s1 + $0x50] sm:$0xf]
  %v55 = vld [vmem:[%s1 + $0x54] sm:$0xf]
  %v56 = vld [vmem:[%s1 + $0x58] sm:$0xf]
  %v57 = vld [vmem:[%s1 + $0x5c] sm:$0xf]
  %v58 = vld [vmem:[%s1 + $0x60] sm:$0xf]
  %v59 = vld [vmem:[%s1 + $0x64] sm:$0xf]
  %v60 = vld [vmem:[%s1 + $0x68] sm:$0xf]
  %v61 = vld [vmem:[%s1 + $0x6c] sm:$0xf]
  %v78 = vunpack.c.l.b16 %v18
  %v79 = vunpack.c.h.b16 %v18
  %v80 = vunpack.c.l.b16 %v19
  %v81 = vunpack.c.h.b16 %v19
  %v82 = vunpack.c.l.b16 %v20
  %v83 = vunpack.c.h.b16 %v20
  %v84 = vunpack.c.l.b16 %v21
  %v85 = vunpack.c.h.b16 %v21
  %v86 = vunpack.c.l.b16 %v22
  %v87 = vunpack.c.h.b16 %v22
  %v88 = vunpack.c.l.b16 %v23
  %v89 = vunpack.c.h.b16 %v23
  %v90 = vunpack.c.l.b16 %v24
  %v91 = vunpack.c.h.b16 %v24
  %v92 = vunpack.c.l.b16 %v25
  %v93 = vunpack.c.h.b16 %v25
  %v94 = vunpack.c.l.b16 %v26
  %v95 = vunpack.c.h.b16 %v26
  %v96 = vunpack.c.l.b16 %v27
  %v97 = vunpack.c.h.b16 %v27
  %v98 = vunpack.c.l.b16 %v28
  %v99 = vunpack.c.h.b16 %v28
  %v100 = vunpack.c.l.b16 %v29
  %v101 = vunpack.c.h.b16 %v29
  %v102 = vunpack.c.l.b16 %v30
  %v103 = vunpack.c.h.b16 %v30
  %v104 = vunpack.c.l.b16 %v31
  %v105 = vunpack.c.h.b16 %v31
  %v106 = vunpack.c.l.b16 %v32
  %v107 = vunpack.c.h.b16 %v32
  %v108 = vunpack.c.l.b16 %v33
  %v109 = vunpack.c.h.b16 %v33
  %v110 = vpack.c.b16 %v80, %v78
  %v111 = vpack.c.b16 %v81, %v79
  %v112 = vpack.c.b16 %v84, %v82
  %v113 = vpack.c.b16 %v85, %v83
  %v114 = vpack.c.b16 %v88, %v86
  %v115 = vpack.c.b16 %v89, %v87
  %v116 = vpack.c.b16 %v92, %v90
  %v117 = vpack.c.b16 %v93, %v91
  %v118 = vpack.c.b16 %v96, %v94
  %v119 = vpack.c.b16 %v97, %v95
  %v120 = vpack.c.b16 %v100, %v98
  %v121 = vpack.c.b16 %v101, %v99
  %v122 = vpack.c.b16 %v104, %v102
  %v123 = vpack.c.b16 %v105, %v103
  %v124 = vpack.c.b16 %v108, %v106
  %v125 = vpack.c.b16 %v109, %v107
  %v162 = vunpack.c.l.b16 %v34
  %v163 = vunpack.c.l.b16 %v35
  %v164 = vunpack.c.l.b16 %v36
  %v165 = vunpack.c.l.b16 %v37
  %v166 = vunpack.c.l.b16 %v38
  %v167 = vunpack.c.l.b16 %v39
  %v168 = vunpack.c.l.b16 %v40
  %v169 = vunpack.c.l.b16 %v41
  %v170 = vunpack.c.l.b16 %v42
  %v171 = vunpack.c.l.b16 %v43
  %v172 = vunpack.c.l.b16 %v44
  %v173 = vunpack.c.l.b16 %v45
  %v174 = vunpack.c.l.b16 %v46
  %v175 = vunpack.c.l.b16 %v47
  %v176 = vunpack.c.l.b16 %v48
  %v177 = vunpack.c.l.b16 %v49
  %v178 = vunpack.c.l.b16 %v50
  %v179 = vunpack.c.l.b16 %v51
  %v180 = vunpack.c.l.b16 %v52
  %v181 = vunpack.c.l.b16 %v53
  %v182 = vunpack.c.l.b16 %v54
  %v183 = vunpack.c.l.b16 %v55
  %v184 = vunpack.c.l.b16 %v56
  %v185 = vunpack.c.l.b16 %v57
  %v186 = vunpack.c.l.b16 %v58
  %v187 = vunpack.c.l.b16 %v59
  %v188 = vunpack.c.l.b16 %v60
  %v189 = vunpack.c.l.b16 %v61
  %v190 = vpack.c.b16 %v163, %v162
  %v191 = vpack.c.b16 %v165, %v164
  %v192 = vpack.c.b16 %v167, %v166
  %v193 = vpack.c.b16 %v169, %v168
  %v194 = vpack.c.b16 %v171, %v170
  %v195 = vpack.c.b16 %v173, %v172
  %v196 = vpack.c.b16 %v175, %v174
  %v197 = vpack.c.b16 %v177, %v176
  %v198 = vpack.c.b16 %v179, %v178
  %v199 = vpack.c.b16 %v181, %v180
  %v200 = vpack.c.b16 %v183, %v182
  %v201 = vpack.c.b16 %v185, %v184
  %v202 = vpack.c.b16 %v187, %v186
  %v203 = vpack.c.b16 %v189, %v188
  %vm218 = vcmask 785408
  %v220 = vsel %vm218, %v111, 0
  %v223 = vsel %vm218, %v113, 0
  %v226 = vsel %vm218, %v115, 0
  %v229 = vsel %vm218, %v117, 0
  %v232 = vsel %vm218, %v119, 0
  %v235 = vsel %vm218, %v121, 0
  %v238 = vsel %vm218, %v123, 0
  %v241 = vsel %vm218, %v125, 0
  %243 = vmatprep.subr.bf16.mxu0 0
  %244 = vmatpush1.bf16.msra.mxu0 %v190
  %245 = vmatprep.subr.bf16.mxu0 0
  %246 = vmatpush1.bf16.msra.mxu0 %v191
  %247 = vmatprep.subr.bf16.mxu0 0
  %248 = vmatpush1.bf16.msra.mxu0 %v192
  %249 = vmatprep.subr.bf16.mxu0 0
  %250 = vmatpush1.bf16.msra.mxu0 %v193
  %251 = vmatprep.subr.bf16.mxu0 0
  %252 = vmatpush1.bf16.msra.mxu0 %v194
  %253 = vmatprep.subr.bf16.mxu0 0
  %254 = vmatpush1.bf16.msra.mxu0 %v195
  %255 = vmatprep.subr.bf16.mxu0 0
  %256 = vmatpush1.bf16.msra.mxu0 %v196
  %257 = vmatprep.subr.bf16.mxu0 0
  %258 = vmatpush1.bf16.msra.mxu0 %v197
  %259 = vmatprep.subr.bf16.mxu0 0
  %260 = vmatpush1.bf16.msra.mxu0 %v198
  %261 = vmatprep.subr.bf16.mxu0 0
  %262 = vmatpush1.bf16.msra.mxu0 %v199
  %263 = vmatprep.subr.bf16.mxu0 0
  %264 = vmatpush1.bf16.msra.mxu0 %v200
  %265 = vmatprep.subr.bf16.mxu0 0
  %266 = vmatpush1.bf16.msra.mxu0 %v201
  %267 = vmatprep.subr.bf16.mxu0 0
  %268 = vmatpush1.bf16.msra.mxu0 %v202
  %269 = vmatprep.subr.bf16.mxu0 0
  %270 = vmatpush1.bf16.msra.mxu0 %v203
  %271 = vmatprep.subr.bf16.mxu0 0
  %272 = vmatpush1.bf16.msra.mxu0 0
  %273 = vmatprep.subr.bf16.mxu0 0
  %274 = vmatpush1.bf16.msra.mxu0 0
  %275 = vmatprep.mubr.bf16.mxu0 %v220
  %276 = vmatmul.mubr.bf16.gmra.mrb[0].mxu0 %v110
  %v277 = vpop.f32.mrb[0].mxu0
  %v278 = vadd.f32 0.0, %v277
  %v279 = vpop.f32.mrb[0].mxu0
  %v280 = vpop.f32.mrb[0].mxu0
  %v281 = vadd.f32 0.0, %v280
  %v282 = vpop.f32.mrb[0].mxu0
  %283 = vmatprep.mubr.bf16.mxu0 %v223
  %284 = vmatmul.mubr.bf16.gmra.mrb[0].mxu0 %v112
  %v285 = vpop.f32.mrb[0].mxu0
  %v286 = vadd.f32 0.0, %v285
  %v287 = vpop.f32.mrb[0].mxu0
  %v288 = vpop.f32.mrb[0].mxu0
  %v289 = vadd.f32 0.0, %v288
  %v290 = vpop.f32.mrb[0].mxu0
  %291 = vmatprep.mubr.bf16.mxu0 %v226
  %292 = vmatmul.mubr.bf16.gmra.mrb[0].mxu0 %v114
  %v293 = vpop.f32.mrb[0].mxu0
  %v294 = vadd.f32 0.0, %v293
  %v295 = vpop.f32.mrb[0].mxu0
  %v296 = vpop.f32.mrb[0].mxu0
  %v297 = vadd.f32 0.0, %v296
  %v298 = vpop.f32.mrb[0].mxu0
  %299 = vmatprep.mubr.bf16.mxu0 %v229
  %300 = vmatmul.mubr.bf16.gmra.mrb[0].mxu0 %v116
  %v301 = vpop.f32.mrb[0].mxu0
  %v302 = vadd.f32 0.0, %v301
  %v303 = vpop.f32.mrb[0].mxu0
  %v304 = vpop.f32.mrb[0].mxu0
  %v305 = vadd.f32 0.0, %v304
  %v306 = vpop.f32.mrb[0].mxu0
  %307 = vmatprep.mubr.bf16.mxu0 %v232
  %308 = vmatmul.mubr.bf16.gmra.mrb[0].mxu0 %v118
  %v309 = vpop.f32.mrb[0].mxu0
  %v310 = vadd.f32 0.0, %v309
  %v311 = vpop.f32.mrb[0].mxu0
  %v312 = vpop.f32.mrb[0].mxu0
  %v313 = vadd.f32 0.0, %v312
  %v314 = vpop.f32.mrb[0].mxu0
  %315 = vmatprep.mubr.bf16.mxu0 %v235
  %316 = vmatmul.mubr.bf16.gmra.mrb[0].mxu0 %v120
  %v317 = vpop.f32.mrb[0].mxu0
  %v318 = vadd.f32 0.0, %v317
  %v319 = vpop.f32.mrb[0].mxu0
  %v320 = vpop.f32.mrb[0].mxu0
  %v321 = vadd.f32 0.0, %v320
  %v322 = vpop.f32.mrb[0].mxu0
  %323 = vmatprep.mubr.bf16.mxu0 %v238
  %324 = vmatmul.mubr.bf16.gmra.mrb[0].mxu0 %v122
  %v325 = vpop.f32.mrb[0].mxu0
  %v326 = vadd.f32 0.0, %v325
  %v327 = vpop.f32.mrb[0].mxu0
  %v328 = vpop.f32.mrb[0].mxu0
  %v329 = vadd.f32 0.0, %v328
  %v330 = vpop.f32.mrb[0].mxu0
  %331 = vmatprep.mubr.bf16.mxu0 %v241
  %332 = vmatmul.mubr.bf16.gmra.mrb[0].mxu0 %v124
  %v333 = vpop.f32.mrb[0].mxu0
  %v334 = vadd.f32 0.0, %v333
  %v335 = vpop.f32.mrb[0].mxu0
  %v336 = vpop.f32.mrb[0].mxu0
  %v337 = vadd.f32 0.0, %v336
  %v338 = vpop.f32.mrb[0].mxu0
  %339 = vdwg.mxu0
  %v340 = vld [vmem:[%s2] sm:$0x1]
  %v342 = vlaneseq
  %v343 = vshrl.u32 %v342, 7
  %v344 = vsub.s32 0, %v343
  %v345 = vrot.slane %v340, %v344
  %v347 = vmul.f32 %v278, %v345
  %v348 = vmul.f32 %v281, %v345
  %v349 = vmul.f32 %v286, %v345
  %v350 = vmul.f32 %v289, %v345
  %v351 = vmul.f32 %v294, %v345
  %v352 = vmul.f32 %v297, %v345
  %v353 = vmul.f32 %v302, %v345
  %v354 = vmul.f32 %v305, %v345
  %v355 = vmul.f32 %v310, %v345
  %v356 = vmul.f32 %v313, %v345
  %v357 = vmul.f32 %v318, %v345
  %v358 = vmul.f32 %v321, %v345
  %v359 = vmul.f32 %v326, %v345
  %v360 = vmul.f32 %v329, %v345
  %v361 = vmul.f32 %v334, %v345
  %v362 = vmul.f32 %v337, %v345
  %v363 = vld [vmem:[%s3] sm:$0x1]
  %v365 = vlaneseq
  %v366 = vshrl.u32 %v365, 7
  %v367 = vsub.s32 0, %v366
  %v368 = vrot.slane %v363, %v367
  %v370 = vadd.f32 %v347, %v368
  %v371 = vadd.f32 %v348, %v368
  %v372 = vadd.f32 %v349, %v368
  %v373 = vadd.f32 %v350, %v368
  %v374 = vadd.f32 %v351, %v368
  %v375 = vadd.f32 %v352, %v368
  %v376 = vadd.f32 %v353, %v368
  %v377 = vadd.f32 %v354, %v368
  %v378 = vadd.f32 %v355, %v368
  %v379 = vadd.f32 %v356, %v368
  %v380 = vadd.f32 %v357, %v368
  %v381 = vadd.f32 %v358, %v368
  %v382 = vadd.f32 %v359, %v368
  %v383 = vadd.f32 %v360, %v368
  %v384 = vadd.f32 %v361, %v368
  %v385 = vadd.f32 %v362, %v368
  %v386 = vmax.f32 %v370, 0.0
  %v387 = vmax.f32 %v371, 0.0
  %v388 = vmax.f32 %v372, 0.0
  %v389 = vmax.f32 %v373, 0.0
  %v390 = vmax.f32 %v374, 0.0
  %v391 = vmax.f32 %v375, 0.0
  %v392 = vmax.f32 %v376, 0.0
  %v393 = vmax.f32 %v377, 0.0
  %v394 = vmax.f32 %v378, 0.0
  %v395 = vmax.f32 %v379, 0.0
  %v396 = vmax.f32 %v380, 0.0
  %v397 = vmax.f32 %v381, 0.0
  %v398 = vmax.f32 %v382, 0.0
  %v399 = vmax.f32 %v383, 0.0
  %v400 = vmax.f32 %v384, 0.0
  %v401 = vmax.f32 %v385, 0.0
  %v402 = vpack.c.bf16 %v387, %v386
  %v403 = vpack.c.bf16 %v389, %v388
  %v404 = vpack.c.bf16 %v391, %v390
  %v405 = vpack.c.bf16 %v393, %v392
  %v406 = vpack.c.bf16 %v395, %v394
  %v407 = vpack.c.bf16 %v397, %v396
  %v408 = vpack.c.bf16 %v399, %v398
  %v409 = vpack.c.bf16 %v401, %v400
  %v418 = vunpack.c.l.b16 %v402
  %v419 = vunpack.c.h.b16 %v402
  %v420 = vunpack.c.l.b16 %v403
  %v421 = vunpack.c.h.b16 %v403
  %v422 = vunpack.c.l.b16 %v404
  %v423 = vunpack.c.h.b16 %v404
  %v424 = vunpack.c.l.b16 %v405
  %v425 = vunpack.c.h.b16 %v405
  %v426 = vunpack.c.l.b16 %v406
  %v427 = vunpack.c.h.b16 %v406
  %v428 = vunpack.c.l.b16 %v407
  %v429 = vunpack.c.h.b16 %v407
  %v430 = vunpack.c.l.b16 %v408
  %v431 = vunpack.c.h.b16 %v408
  %v432 = vunpack.c.l.b16 %v409
  %v433 = vunpack.c.h.b16 %v409
  %v434 = vpack.c.b16 %v418, %v418
  %v435 = vpack.c.b16 %v419, %v419
  %v436 = vpack.c.b16 %v420, %v420
  %v437 = vpack.c.b16 %v421, %v421
  %v438 = vpack.c.b16 %v422, %v422
  %v439 = vpack.c.b16 %v423, %v423
  %v440 = vpack.c.b16 %v424, %v424
  %v441 = vpack.c.b16 %v425, %v425
  %v442 = vpack.c.b16 %v426, %v426
  %v443 = vpack.c.b16 %v427, %v427
  %v444 = vpack.c.b16 %v428, %v428
  %v445 = vpack.c.b16 %v429, %v429
  %v446 = vpack.c.b16 %v430, %v430
  %v447 = vpack.c.b16 %v431, %v431
  %v448 = vpack.c.b16 %v432, %v432
  %v449 = vpack.c.b16 %v433, %v433
  %466 = vst [vmem:[%s4] sm:$0xf] %v434
  %467 = vst [vmem:[%s4 + $0x4] sm:$0xf] %v435
  %468 = vst [vmem:[%s4 + $0x8] sm:$0xf] %v436
  %469 = vst [vmem:[%s4 + $0xc] sm:$0xf] %v437
  %470 = vst [vmem:[%s4 + $0x10] sm:$0xf] %v438
  %471 = vst [vmem:[%s4 + $0x14] sm:$0xf] %v439
  %472 = vst [vmem:[%s4 + $0x18] sm:$0xf] %v440
  %473 = vst [vmem:[%s4 + $0x1c] sm:$0xf] %v441
  %474 = vst [vmem:[%s4 + $0x20] sm:$0xf] %v442
  %475 = vst [vmem:[%s4 + $0x24] sm:$0xf] %v443
  %476 = vst [vmem:[%s4 + $0x28] sm:$0xf] %v444
  %477 = vst [vmem:[%s4 + $0x2c] sm:$0xf] %v445
  %478 = vst [vmem:[%s4 + $0x30] sm:$0xf] %v446
  %479 = vst [vmem:[%s4 + $0x34] sm:$0xf] %v447
  %480 = vst [vmem:[%s4 + $0x38] sm:$0xf] %v448
  %481 = vst [vmem:[%s4 + $0x3c] sm:$0xf] %v449
  // Predicated region
  $region18: #{encoder_forward.21} parent=0 // pred_check
    _
  $region19: #{encoder_forward.21} parent=0 // pred_check_branch
    %483 = sbr.rel (0) target = $region21
  $region20: #{encoder_forward.21} parent=0 // pred_region
    _
  $region21: #{encoder_forward.21} parent=0 // pred_fallthru
    _
  // Predicated region
  $region22: #{encoder_forward.21} parent=0 // pred_check
    _
  $region23: #{encoder_forward.21} parent=0 // pred_check_branch
    %485 = sbr.rel (0) target = $region25
  $region24: #{encoder_forward.21} parent=0 // pred_region
    _
  $region25: #{encoder_forward.21} parent=0 // pred_fallthru
    _

// kernel: encoder_forward.22
$region0: #{encoder_forward.22}
  #allocation0 [shape = 'u32[]', space=smem, size = 0x4, offset = 0x4, fixed_abs, tag = 'smem constant byte address 0x4 - core index']
  #allocation1 [shape = 'u32[144,128]{1,0:T(1,128)}', space=vmem, size = 0x12000, scoped, tag = 'internal scratch']
  %s0 = inlined_call_operand.vmem [shape: bf16[24,432], index: 0, kind: input, shape index: {}]
  %s1 = inlined_call_operand.vmem [shape: bf16[432,128], index: 1, kind: input, shape index: {}]
  %s2 = inlined_call_operand.vmem [shape: f32[1,128], index: 2, kind: input, shape index: {}]
  %s3 = inlined_call_operand.vmem [shape: f32[1,128], index: 3, kind: input, shape index: {}]
  %s4 = inlined_call_operand.vmem [shape: bf16[24,128], index: 4, kind: output, shape index: {}]
  %s5 = sld [smem:[#allocation0]]
  $region26: #{encoder_forward.22} parent=0
    _
  %s7 = ssub.s32 1, %s5
  %s8 = scalar_select 0, %s7, %s5
  // Predicated region
  $region2: #{encoder_forward.22} parent=0 // pred_check
    _
  $region3: #{encoder_forward.22} parent=0 // pred_check_branch
    %10 = sbr.rel (0) target = $region5
  $region4: #{encoder_forward.22} parent=0 // pred_region
    _
  $region5: #{encoder_forward.22} parent=0 // pred_fallthru
    _
  // Predicated region
  $region6: #{encoder_forward.22} parent=0 // pred_check
    _
  $region7: #{encoder_forward.22} parent=0 // pred_check_branch
    %12 = sbr.rel (0) target = $region9
  $region8: #{encoder_forward.22} parent=0 // pred_region
    _
  $region9: #{encoder_forward.22} parent=0 // pred_fallthru
    _
  // Predicated region
  $region10: #{encoder_forward.22} parent=0 // pred_check
    _
  $region11: #{encoder_forward.22} parent=0 // pred_check_branch
    %14 = sbr.rel (0) target = $region13
  $region12: #{encoder_forward.22} parent=0 // pred_region
    _
  $region13: #{encoder_forward.22} parent=0 // pred_fallthru
    _
  // Predicated region
  $region14: #{encoder_forward.22} parent=0 // pred_check
    _
  $region15: #{encoder_forward.22} parent=0 // pred_check_branch
    %16 = sbr.rel (0) target = $region17
  $region16: #{encoder_forward.22} parent=0 // pred_region
    _
  $region17: #{encoder_forward.22} parent=0 // pred_fallthru
    _
  %v18 = vld [vmem:[%s0] sm:$0xff]
  %v19 = vld [vmem:[%s0 + $0x8] sm:$0xff]
  %v20 = vld [vmem:[%s0 + $0x10] sm:$0xff]
  %v21 = vld [vmem:[%s0 + $0x18] sm:$0xff]
  %v22 = vld [vmem:[%s0 + $0x20] sm:$0xff]
  %v23 = vld [vmem:[%s0 + $0x28] sm:$0xff]
  %v24 = vld [vmem:[%s1] sm:$0xf]
  %v25 = vld [vmem:[%s1 + $0x4] sm:$0xf]
  %v26 = vld [vmem:[%s1 + $0x8] sm:$0xf]
  %v27 = vld [vmem:[%s1 + $0xc] sm:$0xf]
  %v28 = vld [vmem:[%s1 + $0x10] sm:$0xf]
  %v29 = vld [vmem:[%s1 + $0x14] sm:$0xf]
  %v30 = vld [vmem:[%s1 + $0x18] sm:$0xf]
  %v31 = vld [vmem:[%s1 + $0x1c] sm:$0xf]
  %v32 = vld [vmem:[%s1 + $0x20] sm:$0xf]
  %v33 = vld [vmem:[%s1 + $0x24] sm:$0xf]
  %v34 = vld [vmem:[%s1 + $0x28] sm:$0xf]
  %v35 = vld [vmem:[%s1 + $0x2c] sm:$0xf]
  %v36 = vld [vmem:[%s1 + $0x30] sm:$0xf]
  %v37 = vld [vmem:[%s1 + $0x34] sm:$0xf]
  %v38 = vld [vmem:[%s1 + $0x38] sm:$0xf]
  %v39 = vld [vmem:[%s1 + $0x3c] sm:$0xf]
  %v40 = vld [vmem:[%s1 + $0x40] sm:$0xf]
  %v41 = vld [vmem:[%s1 + $0x44] sm:$0xf]
  %v42 = vld [vmem:[%s1 + $0x48] sm:$0xf]
  %v43 = vld [vmem:[%s1 + $0x4c] sm:$0xf]
  %v44 = vld [vmem:[%s1 + $0x50] sm:$0xf]
  %v45 = vld [vmem:[%s1 + $0x54] sm:$0xf]
  %v46 = vld [vmem:[%s1 + $0x58] sm:$0xf]
  %v47 = vld [vmem:[%s1 + $0x5c] sm:$0xf]
  %v48 = vld [vmem:[%s1 + $0x60] sm:$0xf]
  %v49 = vld [vmem:[%s1 + $0x64] sm:$0xf]
  %v50 = vld [vmem:[%s1 + $0x68] sm:$0xf]
  %v51 = vld [vmem:[%s1 + $0x6c] sm:$0xf]
  %v52 = vld [vmem:[%s1 + $0x70] sm:$0xf]
  %v53 = vld [vmem:[%s1 + $0x74] sm:$0xf]
  %v54 = vld [vmem:[%s1 + $0x78] sm:$0xf]
  %v55 = vld [vmem:[%s1 + $0x7c] sm:$0xf]
  %v56 = vld [vmem:[%s1 + $0x80] sm:$0xf]
  %v57 = vld [vmem:[%s1 + $0x84] sm:$0xf]
  %v58 = vld [vmem:[%s1 + $0x88] sm:$0xf]
  %v59 = vld [vmem:[%s1 + $0x8c] sm:$0xf]
  %v60 = vld [vmem:[%s1 + $0x90] sm:$0xf]
  %v61 = vld [vmem:[%s1 + $0x94] sm:$0xf]
  %v62 = vld [vmem:[%s1 + $0x98] sm:$0xf]
  %v63 = vld [vmem:[%s1 + $0x9c] sm:$0xf]
  %v64 = vld [vmem:[%s1 + $0xa0] sm:$0xf]
  %v65 = vld [vmem:[%s1 + $0xa4] sm:$0xf]
  %v66 = vld [vmem:[%s1 + $0xa8] sm:$0xf]
  %v67 = vld [vmem:[%s1 + $0xac] sm:$0xf]
  %v68 = vld [vmem:[%s1 + $0xb0] sm:$0xf]
  %v69 = vld [vmem:[%s1 + $0xb4] sm:$0xf]
  %v70 = vld [vmem:[%s1 + $0xb8] sm:$0xf]
  %v71 = vld [vmem:[%s1 + $0xbc] sm:$0xf]
  %v72 = vld [vmem:[%s1 + $0xc0] sm:$0xf]
  %v73 = vld [vmem:[%s1 + $0xc4] sm:$0xf]
  %v74 = vld [vmem:[%s1 + $0xc8] sm:$0xf]
  %v75 = vld [vmem:[%s1 + $0xcc] sm:$0xf]
  %v76 = vld [vmem:[%s1 + $0xd0] sm:$0xf]
  %v77 = vld [vmem:[%s1 + $0xd4] sm:$0xf]
  %v84 = vunpack.c.l.b16 %v18
  %v85 = vunpack.c.h.b16 %v18
  %v86 = vunpack.c.l.b16 %v19
  %v87 = vunpack.c.h.b16 %v19
  %v88 = vunpack.c.l.b16 %v20
  %v89 = vunpack.c.h.b16 %v20
  %v90 = vunpack.c.l.b16 %v21
  %v91 = vunpack.c.h.b16 %v21
  %v92 = vunpack.c.l.b16 %v22
  %v93 = vunpack.c.h.b16 %v22
  %v94 = vunpack.c.l.b16 %v23
  %v95 = vunpack.c.h.b16 %v23
  %v96 = vpack.c.b16 %v88, %v84
  %v97 = vpack.c.b16 %v89, %v85
  %v98 = vpack.c.b16 %v90, %v86
  %v99 = vpack.c.b16 %v91, %v87
  %v100 = vpack.c.b16 %v92, %v92
  %v101 = vpack.c.b16 %v93, %v93
  %v102 = vpack.c.b16 %v94, %v94
  %v103 = vpack.c.b16 %v95, %v95
  %v164 = vunpack.c.l.b16 %v24
  %v165 = vunpack.c.l.b16 %v25
  %v166 = vunpack.c.l.b16 %v26
  %v167 = vunpack.c.l.b16 %v27
  %v168 = vunpack.c.l.b16 %v28
  %v169 = vunpack.c.l.b16 %v29
  %v170 = vunpack.c.l.b16 %v30
  %v171 = vunpack.c.l.b16 %v31
  %v172 = vunpack.c.l.b16 %v32
  %v173 = vunpack.c.l.b16 %v33
  %v174 = vunpack.c.l.b16 %v34
  %v175 = vunpack.c.l.b16 %v35
  %v176 = vunpack.c.l.b16 %v36
  %v177 = vunpack.c.l.b16 %v37
  %v178 = vunpack.c.l.b16 %v38
  %v179 = vunpack.c.l.b16 %v39
  %v180 = vunpack.c.l.b16 %v40
  %v181 = vunpack.c.l.b16 %v41
  %v182 = vunpack.c.l.b16 %v42
  %v183 = vunpack.c.l.b16 %v43
  %v184 = vunpack.c.l.b16 %v44
  %v185 = vunpack.c.l.b16 %v45
  %v186 = vunpack.c.l.b16 %v46
  %v187 = vunpack.c.l.b16 %v47
  %v188 = vunpack.c.l.b16 %v48
  %v189 = vunpack.c.l.b16 %v49
  %v190 = vunpack.c.l.b16 %v50
  %v191 = vunpack.c.l.b16 %v51
  %v192 = vunpack.c.l.b16 %v52
  %v193 = vunpack.c.l.b16 %v53
  %v194 = vunpack.c.l.b16 %v54
  %v195 = vunpack.c.l.b16 %v55
  %v196 = vunpack.c.l.b16 %v56
  %v197 = vunpack.c.l.b16 %v57
  %v198 = vunpack.c.l.b16 %v58
  %v199 = vunpack.c.l.b16 %v59
  %v200 = vunpack.c.l.b16 %v60
  %v201 = vunpack.c.l.b16 %v61
  %v202 = vunpack.c.l.b16 %v62
  %v203 = vunpack.c.l.b16 %v63
  %v204 = vunpack.c.l.b16 %v64
  %v205 = vunpack.c.l.b16 %v65
  %v206 = vunpack.c.l.b16 %v66
  %v207 = vunpack.c.l.b16 %v67
  %v208 = vunpack.c.l.b16 %v68
  %v209 = vunpack.c.l.b16 %v69
  %v210 = vunpack.c.l.b16 %v70
  %v211 = vunpack.c.l.b16 %v71
  %v212 = vunpack.c.l.b16 %v72
  %v213 = vunpack.c.l.b16 %v73
  %v214 = vunpack.c.l.b16 %v74
  %v215 = vunpack.c.l.b16 %v75
  %v216 = vunpack.c.l.b16 %v76
  %v217 = vunpack.c.l.b16 %v77
  %v218 = vpack.c.b16 %v165, %v164
  %v219 = vpack.c.b16 %v167, %v166
  %v220 = vpack.c.b16 %v169, %v168
  %v221 = vpack.c.b16 %v171, %v170
  %v222 = vpack.c.b16 %v173, %v172
  %v223 = vpack.c.b16 %v175, %v174
  %v224 = vpack.c.b16 %v177, %v176
  %v225 = vpack.c.b16 %v179, %v178
  %v226 = vpack.c.b16 %v181, %v180
  %v227 = vpack.c.b16 %v183, %v182
  %v228 = vpack.c.b16 %v185, %v184
  %v229 = vpack.c.b16 %v187, %v186
  %v230 = vpack.c.b16 %v189, %v188
  %v231 = vpack.c.b16 %v191, %v190
  %v232 = vpack.c.b16 %v193, %v192
  %v233 = vpack.c.b16 %v195, %v194
  %v234 = vpack.c.b16 %v197, %v196
  %v235 = vpack.c.b16 %v199, %v198
  %v236 = vpack.c.b16 %v201, %v200
  %v237 = vpack.c.b16 %v203, %v202
  %v238 = vpack.c.b16 %v205, %v204
  %v239 = vpack.c.b16 %v207, %v206
  %v240 = vpack.c.b16 %v209, %v208
  %v241 = vpack.c.b16 %v211, %v210
  %v242 = vpack.c.b16 %v213, %v212
  %v243 = vpack.c.b16 %v215, %v214
  %v244 = vpack.c.b16 %v217, %v216
  %vm272 = vcmask 392192
  %v274 = vsel %vm272, %v99, 0
  %v277 = vsel %vm272, %v103, 0
  %279 = vmatprep.subr.bf16.mxu0 0
  %280 = vmatpush1.bf16.msra.mxu0 %v218
  %281 = vmatprep.subr.bf16.mxu0 0
  %282 = vmatpush1.bf16.msra.mxu0 %v219
  %283 = vmatprep.subr.bf16.mxu0 0
  %284 = vmatpush1.bf16.msra.mxu0 %v220
  %285 = vmatprep.subr.bf16.mxu0 0
  %286 = vmatpush1.bf16.msra.mxu0 %v221
  %287 = vmatprep.subr.bf16.mxu0 0
  %288 = vmatpush1.bf16.msra.mxu0 %v222
  %289 = vmatprep.subr.bf16.mxu0 0
  %290 = vmatpush1.bf16.msra.mxu0 %v223
  %291 = vmatprep.subr.bf16.mxu0 0
  %292 = vmatpush1.bf16.msra.mxu0 %v224
  %293 = vmatprep.subr.bf16.mxu0 0
  %294 = vmatpush1.bf16.msra.mxu0 %v225
  %295 = vmatprep.subr.bf16.mxu0 0
  %296 = vmatpush1.bf16.msra.mxu0 %v226
  %297 = vmatprep.subr.bf16.mxu0 0
  %298 = vmatpush1.bf16.msra.mxu0 %v227
  %299 = vmatprep.subr.bf16.mxu0 0
  %300 = vmatpush1.bf16.msra.mxu0 %v228
  %301 = vmatprep.subr.bf16.mxu0 0
  %302 = vmatpush1.bf16.msra.mxu0 %v229
  %303 = vmatprep.subr.bf16.mxu0 0
  %304 = vmatpush1.bf16.msra.mxu0 %v230
  %305 = vmatprep.subr.bf16.mxu0 0
  %306 = vmatpush1.bf16.msra.mxu0 %v231
  %307 = vmatprep.subr.bf16.mxu0 0
  %308 = vmatpush1.bf16.msra.mxu0 %v232
  %309 = vmatprep.subr.bf16.mxu0 0
  %310 = vmatpush1.bf16.msra.mxu0 %v233
  %311 = vmatprep.mubr.bf16.mxu0 %v97
  %312 = vmatmul.mubr.bf16.gmra.mrb[0].mxu0 %v96
  %v313 = vpop.f32.mrb[0].mxu0
  %v314 = vadd.f32 0.0, %v313
  %v315 = vpop.f32.mrb[0].mxu0
  %v316 = vpop.f32.mrb[0].mxu0
  %v317 = vadd.f32 0.0, %v316
  %v318 = vpop.f32.mrb[0].mxu0
  %319 = vmatprep.mubr.bf16.mxu0 %v101
  %320 = vmatmul.mubr.bf16.gmra.mrb[0].mxu0 %v100
  %v321 = vpop.f32.mrb[0].mxu0
  %v322 = vadd.f32 0.0, %v321
  %v323 = vpop.f32.mrb[0].mxu0
  %v324 = vpop.f32.mrb[0].mxu0
  %v325 = vpop.f32.mrb[0].mxu0
  %326 = vdwg.mxu0
  %327 = vmatprep.subr.bf16.mxu0 0
  %328 = vmatpush1.bf16.msra.mxu0 %v234
  %329 = vmatprep.subr.bf16.mxu0 0
  %330 = vmatpush1.bf16.msra.mxu0 %v235
  %331 = vmatprep.subr.bf16.mxu0 0
  %332 = vmatpush1.bf16.msra.mxu0 %v236
  %333 = vmatprep.subr.bf16.mxu0 0
  %334 = vmatpush1.bf16.msra.mxu0 %v237
  %335 = vmatprep.subr.bf16.mxu0 0
  %336 = vmatpush1.bf16.msra.mxu0 %v238
  %337 = vmatprep.subr.bf16.mxu0 0
  %338 = vmatpush1.bf16.msra.mxu0 %v239
  %339 = vmatprep.subr.bf16.mxu0 0
  %340 = vmatpush1.bf16.msra.mxu0 %v240
  %341 = vmatprep.subr.bf16.mxu0 0
  %342 = vmatpush1.bf16.msra.mxu0 %v241
  %343 = vmatprep.subr.bf16.mxu0 0
  %344 = vmatpush1.bf16.msra.mxu0 %v242
  %345 = vmatprep.subr.bf16.mxu0 0
  %346 = vmatpush1.bf16.msra.mxu0 %v243
  %347 = vmatprep.subr.bf16.mxu0 0
  %348 = vmatpush1.bf16.msra.mxu0 %v244
  %349 = vmatprep.subr.bf16.mxu0 0
  %350 = vmatpush1.bf16.msra.mxu0 0
  %351 = vmatprep.subr.bf16.mxu0 0
  %352 = vmatpush1.bf16.msra.mxu0 0
  %353 = vmatprep.subr.bf16.mxu0 0
  %354 = vmatpush1.bf16.msra.mxu0 0
  %355 = vmatprep.subr.bf16.mxu0 0
  %356 = vmatpush1.bf16.msra.mxu0 0
  %357 = vmatprep.subr.bf16.mxu0 0
  %358 = vmatpush1.bf16.msra.mxu0 0
  %359 = vmatprep.mubr.bf16.mxu0 %v274
  %360 = vmatmul.mubr.bf16.gmra.mrb[0].mxu0 %v98
  %v361 = vpop.f32.mrb[0].mxu0
  %v362 = vadd.f32 %v314, %v361
  %v363 = vpop.f32.mrb[0].mxu0
  %v364 = vpop.f32.mrb[0].mxu0
  %v365 = vadd.f32 %v317, %v364
  %v366 = vpop.f32.mrb[0].mxu0
  %367 = vmatprep.mubr.bf16.mxu0 %v277
  %368 = vmatmul.mubr.bf16.gmra.mrb[0].mxu0 %v102
  %v369 = vpop.f32.mrb[0].mxu0
  %v370 = vadd.f32 %v322, %v369
  %v371 = vpop.f32.mrb[0].mxu0
  %v372 = vpop.f32.mrb[0].mxu0
  %v373 = vpop.f32.mrb[0].mxu0
  %374 = vdwg.mxu0
  %v375 = vld [vmem:[%s2] sm:$0x1]
  %v377 = vlaneseq
  %v378 = vshrl.u32 %v377, 7
  %v379 = vsub.s32 0, %v378
  %v380 = vrot.slane %v375, %v379
  %v382 = vmul.f32 %v362, %v380
  %v383 = vmul.f32 %v365, %v380
  %v384 = vmul.f32 %v370, %v380
  %v385 = vld [vmem:[%s3] sm:$0x1]
  %v387 = vlaneseq
  %v388 = vshrl.u32 %v387, 7
  %v389 = vsub.s32 0, %v388
  %v390 = vrot.slane %v385, %v389
  %v392 = vadd.f32 %v382, %v390
  %v393 = vadd.f32 %v383, %v390
  %v394 = vadd.f32 %v384, %v390
  %v395 = vmax.f32 %v392, 0.0
  %v396 = vmax.f32 %v393, 0.0
  %v397 = vmax.f32 %v394, 0.0
  %v398 = vpack.c.bf16 %v396, %v395
  %v399 = vpack.c.bf16 %v397, %v397
  %v402 = vunpack.c.l.b16 %v398
  %v403 = vunpack.c.h.b16 %v398
  %v404 = vunpack.c.l.b16 %v399
  %v405 = vpack.c.b16 %v402, %v402
  %v406 = vpack.c.b16 %v403, %v403
  %v407 = vpack.c.b16 %v404, %v404
  %411 = vst [vmem:[%s4] sm:$0xf] %v405
  %412 = vst [vmem:[%s4 + $0x4] sm:$0xf] %v406
  %413 = vst [vmem:[%s4 + $0x8] sm:$0xf] %v407
  // Predicated region
  $region18: #{encoder_forward.22} parent=0 // pred_check
    _
  $region19: #{encoder_forward.22} parent=0 // pred_check_branch
    %415 = sbr.rel (0) target = $region21
  $region20: #{encoder_forward.22} parent=0 // pred_region
    _
  $region21: #{encoder_forward.22} parent=0 // pred_fallthru
    _
  // Predicated region
  $region22: #{encoder_forward.22} parent=0 // pred_check
    _
  $region23: #{encoder_forward.22} parent=0 // pred_check_branch
    %417 = sbr.rel (0) target = $region25
  $region24: #{encoder_forward.22} parent=0 // pred_region
    _
  $region25: #{encoder_forward.22} parent=0 // pred_fallthru
    _

// kernel: encoder_forward.24
$region0: #{encoder_forward.24}
  #allocation0 [shape = 'u32[]', space=smem, size = 0x4, offset = 0x4, fixed_abs, tag = 'smem constant byte address 0x4 - core index']
  #allocation1 [shape = 'u32[144,128]{1,0:T(1,128)}', space=vmem, size = 0x12000, scoped, tag = 'internal scratch']
  %s0 = inlined_call_operand.vmem [shape: bf16[24,64], index: 0, kind: input, shape index: {}]
  %s1 = inlined_call_operand.vmem [shape: bf16[64,128], index: 1, kind: input, shape index: {}]
  %s2 = inlined_call_operand.vmem [shape: f32[1,128], index: 2, kind: input, shape index: {}]
  %s3 = inlined_call_operand.vmem [shape: f32[1,128], index: 3, kind: input, shape index: {}]
  %s4 = inlined_call_operand.vmem [shape: bf16[24,128], index: 4, kind: output, shape index: {}]
  %s5 = sld [smem:[#allocation0]]
  $region26: #{encoder_forward.24} parent=0
    _
  %s7 = ssub.s32 1, %s5
  %s8 = scalar_select 0, %s7, %s5
  // Predicated region
  $region2: #{encoder_forward.24} parent=0 // pred_check
    _
  $region3: #{encoder_forward.24} parent=0 // pred_check_branch
    %10 = sbr.rel (0) target = $region5
  $region4: #{encoder_forward.24} parent=0 // pred_region
    _
  $region5: #{encoder_forward.24} parent=0 // pred_fallthru
    _
  // Predicated region
  $region6: #{encoder_forward.24} parent=0 // pred_check
    _
  $region7: #{encoder_forward.24} parent=0 // pred_check_branch
    %12 = sbr.rel (0) target = $region9
  $region8: #{encoder_forward.24} parent=0 // pred_region
    _
  $region9: #{encoder_forward.24} parent=0 // pred_fallthru
    _
  // Predicated region
  $region10: #{encoder_forward.24} parent=0 // pred_check
    _
  $region11: #{encoder_forward.24} parent=0 // pred_check_branch
    %14 = sbr.rel (0) target = $region13
  $region12: #{encoder_forward.24} parent=0 // pred_region
    _
  $region13: #{encoder_forward.24} parent=0 // pred_fallthru
    _
  // Predicated region
  $region14: #{encoder_forward.24} parent=0 // pred_check
    _
  $region15: #{encoder_forward.24} parent=0 // pred_check_branch
    %16 = sbr.rel (0) target = $region17
  $region16: #{encoder_forward.24} parent=0 // pred_region
    _
  $region17: #{encoder_forward.24} parent=0 // pred_fallthru
    _
  %v18 = vld [vmem:[%s0] sm:$0xf]
  %v19 = vld [vmem:[%s0 + $0x4] sm:$0xf]
  %v20 = vld [vmem:[%s0 + $0x8] sm:$0xf]
  %v21 = vld [vmem:[%s1] sm:$0xf]
  %v22 = vld [vmem:[%s1 + $0x4] sm:$0xf]
  %v23 = vld [vmem:[%s1 + $0x8] sm:$0xf]
  %v24 = vld [vmem:[%s1 + $0xc] sm:$0xf]
  %v25 = vld [vmem:[%s1 + $0x10] sm:$0xf]
  %v26 = vld [vmem:[%s1 + $0x14] sm:$0xf]
  %v27 = vld [vmem:[%s1 + $0x18] sm:$0xf]
  %v28 = vld [vmem:[%s1 + $0x1c] sm:$0xf]
  %v32 = vunpack.c.l.b16 %v18
  %v33 = vunpack.c.l.b16 %v19
  %v34 = vunpack.c.l.b16 %v20
  %v35 = vpack.c.b16 %v33, %v32
  %v36 = vpack.c.b16 %v34, %v34
  %v45 = vunpack.c.l.b16 %v21
  %v46 = vunpack.c.l.b16 %v22
  %v47 = vunpack.c.l.b16 %v23
  %v48 = vunpack.c.l.b16 %v24
  %v49 = vunpack.c.l.b16 %v25
  %v50 = vunpack.c.l.b16 %v26
  %v51 = vunpack.c.l.b16 %v27
  %v52 = vunpack.c.l.b16 %v28
  %v53 = vpack.c.b16 %v46, %v45
  %v54 = vpack.c.b16 %v48, %v47
  %v55 = vpack.c.b16 %v50, %v49
  %v56 = vpack.c.b16 %v52, %v51
  %vm61 = vcmask 523264
  %v63 = vsel %vm61, %v35, 0
  %v66 = vsel %vm61, %v36, 0
  %68 = vmatprep.subr.bf16.mxu0 0
  %69 = vmatpush1.bf16.msra.mxu0 %v53
  %70 = vmatprep.subr.bf16.mxu0 0
  %71 = vmatpush1.bf16.msra.mxu0 %v54
  %72 = vmatprep.subr.bf16.mxu0 0
  %73 = vmatpush1.bf16.msra.mxu0 %v55
  %74 = vmatprep.subr.bf16.mxu0 0
  %75 = vmatpush1.bf16.msra.mxu0 %v56
  %76 = vmatprep.subr.bf16.mxu0 0
  %77 = vmatpush1.bf16.msra.mxu0 0
  %78 = vmatprep.subr.bf16.mxu0 0
  %79 = vmatpush1.bf16.msra.mxu0 0
  %80 = vmatprep.subr.bf16.mxu0 0
  %81 = vmatpush1.bf16.msra.mxu0 0
  %82 = vmatprep.subr.bf16.mxu0 0
  %83 = vmatpush1.bf16.msra.mxu0 0
  %84 = vmatprep.subr.bf16.mxu0 0
  %85 = vmatpush1.bf16.msra.mxu0 0
  %86 = vmatprep.subr.bf16.mxu0 0
  %87 = vmatpush1.bf16.msra.mxu0 0
  %88 = vmatprep.subr.bf16.mxu0 0
  %89 = vmatpush1.bf16.msra.mxu0 0
  %90 = vmatprep.subr.bf16.mxu0 0
  %91 = vmatpush1.bf16.msra.mxu0 0
  %92 = vmatprep.subr.bf16.mxu0 0
  %93 = vmatpush1.bf16.msra.mxu0 0
  %94 = vmatprep.subr.bf16.mxu0 0
  %95 = vmatpush1.bf16.msra.mxu0 0
  %96 = vmatprep.subr.bf16.mxu0 0
  %97 = vmatpush1.bf16.msra.mxu0 0
  %98 = vmatprep.subr.bf16.mxu0 0
  %99 = vmatpush1.bf16.msra.mxu0 0
  %100 = vmatprep.mubr.bf16.mxu0 0
  %101 = vmatmul.mubr.bf16.gmra.mrb[0].mxu0 %v63
  %v102 = vpop.f32.mrb[0].mxu0
  %v103 = vadd.f32 0.0, %v102
  %v104 = vpop.f32.mrb[0].mxu0
  %v105 = vpop.f32.mrb[0].mxu0
  %v106 = vadd.f32 0.0, %v105
  %v107 = vpop.f32.mrb[0].mxu0
  %108 = vmatprep.mubr.bf16.mxu0 0
  %109 = vmatmul.mubr.bf16.gmra.mrb[0].mxu0 %v66
  %v110 = vpop.f32.mrb[0].mxu0
  %v111 = vadd.f32 0.0, %v110
  %v112 = vpop.f32.mrb[0].mxu0
  %v113 = vpop.f32.mrb[0].mxu0
  %v114 = vpop.f32.mrb[0].mxu0
  %115 = vdwg.mxu0
  %v116 = vld [vmem:[%s2] sm:$0x1]
  %v118 = vlaneseq
  %v119 = vshrl.u32 %v118, 7
  %v120 = vsub.s32 0, %v119
  %v121 = vrot.slane %v116, %v120
  %v123 = vmul.f32 %v103, %v121
  %v124 = vmul.f32 %v106, %v121
  %v125 = vmul.f32 %v111, %v121
  %v126 = vld [vmem:[%s3] sm:$0x1]
  %v128 = vlaneseq
  %v129 = vshrl.u32 %v128, 7
  %v130 = vsub.s32 0, %v129
  %v131 = vrot.slane %v126, %v130
  %v133 = vadd.f32 %v123, %v131
  %v134 = vadd.f32 %v124, %v131
  %v135 = vadd.f32 %v125, %v131
  %v136 = vmax.f32 %v133, 0.0
  %v137 = vmax.f32 %v134, 0.0
  %v138 = vmax.f32 %v135, 0.0
  %v139 = vpack.c.bf16 %v137, %v136
  %v140 = vpack.c.bf16 %v138, %v138
  %v143 = vunpack.c.l.b16 %v139
  %v144 = vunpack.c.h.b16 %v139
  %v145 = vunpack.c.l.b16 %v140
  %v146 = vpack.c.b16 %v143, %v143
  %v147 = vpack.c.b16 %v144, %v144
  %v148 = vpack.c.b16 %v145, %v145
  %152 = vst [vmem:[%s4] sm:$0xf] %v146
  %153 = vst [vmem:[%s4 + $0x4] sm:$0xf] %v147
  %154 = vst [vmem:[%s4 + $0x8] sm:$0xf] %v148
  // Predicated region
  $region18: #{encoder_forward.24} parent=0 // pred_check
    _
  $region19: #{encoder_forward.24} parent=0 // pred_check_branch
    %156 = sbr.rel (0) target = $region21
  $region20: #{encoder_forward.24} parent=0 // pred_region
    _
  $region21: #{encoder_forward.24} parent=0 // pred_fallthru
    _
  // Predicated region
  $region22: #{encoder_forward.24} parent=0 // pred_check
    _
  $region23: #{encoder_forward.24} parent=0 // pred_check_branch
    %158 = sbr.rel (0) target = $region25
  $region24: #{encoder_forward.24} parent=0 // pred_region
    _
  $region25: #{encoder_forward.24} parent=0 // pred_fallthru
    _

// kernel: encoder_forward.25
$region0: #{encoder_forward.25}
  #allocation0 [shape = 'u32[]', space=smem, size = 0x4, offset = 0x4, fixed_abs, tag = 'smem constant byte address 0x4 - core index']
  #allocation1 [shape = 'u32[144,128]{1,0:T(1,128)}', space=vmem, size = 0x12000, scoped, tag = 'internal scratch']
  %s0 = inlined_call_operand.vmem [shape: bf16[24,80], index: 0, kind: input, shape index: {}]
  %s1 = inlined_call_operand.vmem [shape: bf16[80,128], index: 1, kind: input, shape index: {}]
  %s2 = inlined_call_operand.vmem [shape: f32[1,128], index: 2, kind: input, shape index: {}]
  %s3 = inlined_call_operand.vmem [shape: f32[1,128], index: 3, kind: input, shape index: {}]
  %s4 = inlined_call_operand.vmem [shape: bf16[24,128], index: 4, kind: output, shape index: {}]
  %s5 = sld [smem:[#allocation0]]
  $region26: #{encoder_forward.25} parent=0
    _
  %s7 = ssub.s32 1, %s5
  %s8 = scalar_select 0, %s7, %s5
  // Predicated region
  $region2: #{encoder_forward.25} parent=0 // pred_check
    _
  $region3: #{encoder_forward.25} parent=0 // pred_check_branch
    %10 = sbr.rel (0) target = $region5
  $region4: #{encoder_forward.25} parent=0 // pred_region
    _
  $region5: #{encoder_forward.25} parent=0 // pred_fallthru
    _
  // Predicated region
  $region6: #{encoder_forward.25} parent=0 // pred_check
    _
  $region7: #{encoder_forward.25} parent=0 // pred_check_branch
    %12 = sbr.rel (0) target = $region9
  $region8: #{encoder_forward.25} parent=0 // pred_region
    _
  $region9: #{encoder_forward.25} parent=0 // pred_fallthru
    _
  // Predicated region
  $region10: #{encoder_forward.25} parent=0 // pred_check
    _
  $region11: #{encoder_forward.25} parent=0 // pred_check_branch
    %14 = sbr.rel (0) target = $region13
  $region12: #{encoder_forward.25} parent=0 // pred_region
    _
  $region13: #{encoder_forward.25} parent=0 // pred_fallthru
    _
  // Predicated region
  $region14: #{encoder_forward.25} parent=0 // pred_check
    _
  $region15: #{encoder_forward.25} parent=0 // pred_check_branch
    %16 = sbr.rel (0) target = $region17
  $region16: #{encoder_forward.25} parent=0 // pred_region
    _
  $region17: #{encoder_forward.25} parent=0 // pred_fallthru
    _
  %v18 = vld [vmem:[%s0] sm:$0xf]
  %v19 = vld [vmem:[%s0 + $0x4] sm:$0xf]
  %v20 = vld [vmem:[%s0 + $0x8] sm:$0xf]
  %v21 = vld [vmem:[%s1] sm:$0xf]
  %v22 = vld [vmem:[%s1 + $0x4] sm:$0xf]
  %v23 = vld [vmem:[%s1 + $0x8] sm:$0xf]
  %v24 = vld [vmem:[%s1 + $0xc] sm:$0xf]
  %v25 = vld [vmem:[%s1 + $0x10] sm:$0xf]
  %v26 = vld [vmem:[%s1 + $0x14] sm:$0xf]
  %v27 = vld [vmem:[%s1 + $0x18] sm:$0xf]
  %v28 = vld [vmem:[%s1 + $0x1c] sm:$0xf]
  %v29 = vld [vmem:[%s1 + $0x20] sm:$0xf]
  %v30 = vld [vmem:[%s1 + $0x24] sm:$0xf]
  %v34 = vunpack.c.l.b16 %v18
  %v35 = vunpack.c.l.b16 %v19
  %v36 = vunpack.c.l.b16 %v20
  %v37 = vpack.c.b16 %v35, %v34
  %v38 = vpack.c.b16 %v36, %v36
  %v49 = vunpack.c.l.b16 %v21
  %v50 = vunpack.c.l.b16 %v22
  %v51 = vunpack.c.l.b16 %v23
  %v52 = vunpack.c.l.b16 %v24
  %v53 = vunpack.c.l.b16 %v25
  %v54 = vunpack.c.l.b16 %v26
  %v55 = vunpack.c.l.b16 %v27
  %v56 = vunpack.c.l.b16 %v28
  %v57 = vunpack.c.l.b16 %v29
  %v58 = vunpack.c.l.b16 %v30
  %v59 = vpack.c.b16 %v50, %v49
  %v60 = vpack.c.b16 %v52, %v51
  %v61 = vpack.c.b16 %v54, %v53
  %v62 = vpack.c.b16 %v56, %v55
  %v63 = vpack.c.b16 %v58, %v57
  %vm69 = vcmask 654336
  %v71 = vsel %vm69, %v37, 0
  %v74 = vsel %vm69, %v38, 0
  %76 = vmatprep.subr.bf16.mxu0 0
  %77 = vmatpush1.bf16.msra.mxu0 %v59
  %78 = vmatprep.subr.bf16.mxu0 0
  %79 = vmatpush1.bf16.msra.mxu0 %v60
  %80 = vmatprep.subr.bf16.mxu0 0
  %81 = vmatpush1.bf16.msra.mxu0 %v61
  %82 = vmatprep.subr.bf16.mxu0 0
  %83 = vmatpush1.bf16.msra.mxu0 %v62
  %84 = vmatprep.subr.bf16.mxu0 0
  %85 = vmatpush1.bf16.msra.mxu0 %v63
  %86 = vmatprep.subr.bf16.mxu0 0
  %87 = vmatpush1.bf16.msra.mxu0 0
  %88 = vmatprep.subr.bf16.mxu0 0
  %89 = vmatpush1.bf16.msra.mxu0 0
  %90 = vmatprep.subr.bf16.mxu0 0
  %91 = vmatpush1.bf16.msra.mxu0 0
  %92 = vmatprep.subr.bf16.mxu0 0
  %93 = vmatpush1.bf16.msra.mxu0 0
  %94 = vmatprep.subr.bf16.mxu0 0
  %95 = vmatpush1.bf16.msra.mxu0 0
  %96 = vmatprep.subr.bf16.mxu0 0
  %97 = vmatpush1.bf16.msra.mxu0 0
  %98 = vmatprep.subr.bf16.mxu0 0
  %99 = vmatpush1.bf16.msra.mxu0 0
  %100 = vmatprep.subr.bf16.mxu0 0
  %101 = vmatpush1.bf16.msra.mxu0 0
  %102 = vmatprep.subr.bf16.mxu0 0
  %103 = vmatpush1.bf16.msra.mxu0 0
  %104 = vmatprep.subr.bf16.mxu0 0
  %105 = vmatpush1.bf16.msra.mxu0 0
  %106 = vmatprep.subr.bf16.mxu0 0
  %107 = vmatpush1.bf16.msra.mxu0 0
  %108 = vmatprep.mubr.bf16.mxu0 0
  %109 = vmatmul.mubr.bf16.gmra.mrb[0].mxu0 %v71
  %v110 = vpop.f32.mrb[0].mxu0
  %v111 = vadd.f32 0.0, %v110
  %v112 = vpop.f32.mrb[0].mxu0
  %v113 = vpop.f32.mrb[0].mxu0
  %v114 = vadd.f32 0.0, %v113
  %v115 = vpop.f32.mrb[0].mxu0
  %116 = vmatprep.mubr.bf16.mxu0 0
  %117 = vmatmul.mubr.bf16.gmra.mrb[0].mxu0 %v74
  %v118 = vpop.f32.mrb[0].mxu0
  %v119 = vadd.f32 0.0, %v118
  %v120 = vpop.f32.mrb[0].mxu0
  %v121 = vpop.f32.mrb[0].mxu0
  %v122 = vpop.f32.mrb[0].mxu0
  %123 = vdwg.mxu0
  %v124 = vld [vmem:[%s2] sm:$0x1]
  %v126 = vlaneseq
  %v127 = vshrl.u32 %v126, 7
  %v128 = vsub.s32 0, %v127
  %v129 = vrot.slane %v124, %v128
  %v131 = vmul.f32 %v111, %v129
  %v132 = vmul.f32 %v114, %v129
  %v133 = vmul.f32 %v119, %v129
  %v134 = vld [vmem:[%s3] sm:$0x1]
  %v136 = vlaneseq
  %v137 = vshrl.u32 %v136, 7
  %v138 = vsub.s32 0, %v137
  %v139 = vrot.slane %v134, %v138
  %v141 = vadd.f32 %v131, %v139
  %v142 = vadd.f32 %v132, %v139
  %v143 = vadd.f32 %v133, %v139
  %v144 = vmax.f32 %v141, 0.0
  %v145 = vmax.f32 %v142, 0.0
  %v146 = vmax.f32 %v143, 0.0
  %v147 = vpack.c.bf16 %v145, %v144
  %v148 = vpack.c.bf16 %v146, %v146
  %v151 = vunpack.c.l.b16 %v147
  %v152 = vunpack.c.h.b16 %v147
  %v153 = vunpack.c.l.b16 %v148
  %v154 = vpack.c.b16 %v151, %v151
  %v155 = vpack.c.b16 %v152, %v152
  %v156 = vpack.c.b16 %v153, %v153
  %160 = vst [vmem:[%s4] sm:$0xf] %v154
  %161 = vst [vmem:[%s4 + $0x4] sm:$0xf] %v155
  %162 = vst [vmem:[%s4 + $0x8] sm:$0xf] %v156
  // Predicated region
  $region18: #{encoder_forward.25} parent=0 // pred_check
    _
  $region19: #{encoder_forward.25} parent=0 // pred_check_branch
    %164 = sbr.rel (0) target = $region21
  $region20: #{encoder_forward.25} parent=0 // pred_region
    _
  $region21: #{encoder_forward.25} parent=0 // pred_fallthru
    _
  // Predicated region
  $region22: #{encoder_forward.25} parent=0 // pred_check
    _
  $region23: #{encoder_forward.25} parent=0 // pred_check_branch
    %166 = sbr.rel (0) target = $region25
  $region24: #{encoder_forward.25} parent=0 // pred_region
    _
  $region25: #{encoder_forward.25} parent=0 // pred_fallthru
    _

// kernel: encoder_forward.29
$region0: #{encoder_forward.29}
  #allocation0 [shape = 'u32[]', space=smem, size = 0x4, offset = 0x4, fixed_abs, tag = 'smem constant byte address 0x4 - core index']
  #allocation1 [shape = 'u32[144,128]{1,0:T(1,128)}', space=vmem, size = 0x12000, scoped, tag = 'internal scratch']
  %s0 = inlined_call_operand.vmem [shape: bf16[24,32], index: 0, kind: input, shape index: {}]
  %s1 = inlined_call_operand.vmem [shape: bf16[32,128], index: 1, kind: input, shape index: {}]
  %s2 = inlined_call_operand.vmem [shape: f32[1,128], index: 2, kind: input, shape index: {}]
  %s3 = inlined_call_operand.vmem [shape: f32[1,128], index: 3, kind: input, shape index: {}]
  %s4 = inlined_call_operand.vmem [shape: bf16[24,128], index: 4, kind: input, shape index: {}]
  %s5 = inlined_call_operand.vmem [shape: bf16[24,128], index: 5, kind: output, shape index: {}]
  %s6 = sld [smem:[#allocation0]]
  $region30: #{encoder_forward.29} parent=0
    _
  %s8 = ssub.s32 1, %s6
  %s9 = scalar_select 0, %s8, %s6
  // Predicated region
  $region2: #{encoder_forward.29} parent=0 // pred_check
    _
  $region3: #{encoder_forward.29} parent=0 // pred_check_branch
    %11 = sbr.rel (0) target = $region5
  $region4: #{encoder_forward.29} parent=0 // pred_region
    _
  $region5: #{encoder_forward.29} parent=0 // pred_fallthru
    _
  // Predicated region
  $region6: #{encoder_forward.29} parent=0 // pred_check
    _
  $region7: #{encoder_forward.29} parent=0 // pred_check_branch
    %13 = sbr.rel (0) target = $region9
  $region8: #{encoder_forward.29} parent=0 // pred_region
    _
  $region9: #{encoder_forward.29} parent=0 // pred_fallthru
    _
  // Predicated region
  $region10: #{encoder_forward.29} parent=0 // pred_check
    _
  $region11: #{encoder_forward.29} parent=0 // pred_check_branch
    %15 = sbr.rel (0) target = $region13
  $region12: #{encoder_forward.29} parent=0 // pred_region
    _
  $region13: #{encoder_forward.29} parent=0 // pred_fallthru
    _
  // Predicated region
  $region14: #{encoder_forward.29} parent=0 // pred_check
    _
  $region15: #{encoder_forward.29} parent=0 // pred_check_branch
    %17 = sbr.rel (0) target = $region17
  $region16: #{encoder_forward.29} parent=0 // pred_region
    _
  $region17: #{encoder_forward.29} parent=0 // pred_fallthru
    _
  // Predicated region
  $region18: #{encoder_forward.29} parent=0 // pred_check
    _
  $region19: #{encoder_forward.29} parent=0 // pred_check_branch
    %19 = sbr.rel (0) target = $region21
  $region20: #{encoder_forward.29} parent=0 // pred_region
    _
  $region21: #{encoder_forward.29} parent=0 // pred_fallthru
    _
  %v21 = vld [vmem:[%s0] sm:$0xf]
  %v22 = vld [vmem:[%s0 + $0x4] sm:$0xf]
  %v23 = vld [vmem:[%s0 + $0x8] sm:$0xf]
  %v24 = vld [vmem:[%s1] sm:$0xf]
  %v25 = vld [vmem:[%s1 + $0x4] sm:$0xf]
  %v26 = vld [vmem:[%s1 + $0x8] sm:$0xf]
  %v27 = vld [vmem:[%s1 + $0xc] sm:$0xf]
  %v31 = vunpack.c.l.b16 %v21
  %v32 = vunpack.c.l.b16 %v22
  %v33 = vunpack.c.l.b16 %v23
  %v34 = vpack.c.b16 %v32, %v31
  %v35 = vpack.c.b16 %v33, %v33
  %v40 = vunpack.c.l.b16 %v24
  %v41 = vunpack.c.l.b16 %v25
  %v42 = vunpack.c.l.b16 %v26
  %v43 = vunpack.c.l.b16 %v27
  %v44 = vpack.c.b16 %v41, %v40
  %v45 = vpack.c.b16 %v43, %v42
  %vm48 = vcmask 261120
  %v50 = vsel %vm48, %v34, 0
  %v53 = vsel %vm48, %v35, 0
  %55 = vmatprep.subr.bf16.mxu0 0
  %56 = vmatpush1.bf16.msra.mxu0 %v44
  %57 = vmatprep.subr.bf16.mxu0 0
  %58 = vmatpush1.bf16.msra.mxu0 %v45
  %59 = vmatprep.subr.bf16.mxu0 0
  %60 = vmatpush1.bf16.msra.mxu0 0
  %61 = vmatprep.subr.bf16.mxu0 0
  %62 = vmatpush1.bf16.msra.mxu0 0
  %63 = vmatprep.subr.bf16.mxu0 0
  %64 = vmatpush1.bf16.msra.mxu0 0
  %65 = vmatprep.subr.bf16.mxu0 0
  %66 = vmatpush1.bf16.msra.mxu0 0
  %67 = vmatprep.subr.bf16.mxu0 0
  %68 = vmatpush1.bf16.msra.mxu0 0
  %69 = vmatprep.subr.bf16.mxu0 0
  %70 = vmatpush1.bf16.msra.mxu0 0
  %71 = vmatprep.subr.bf16.mxu0 0
  %72 = vmatpush1.bf16.msra.mxu0 0
  %73 = vmatprep.subr.bf16.mxu0 0
  %74 = vmatpush1.bf16.msra.mxu0 0
  %75 = vmatprep.subr.bf16.mxu0 0
  %76 = vmatpush1.bf16.msra.mxu0 0
  %77 = vmatprep.subr.bf16.mxu0 0
  %78 = vmatpush1.bf16.msra.mxu0 0
  %79 = vmatprep.subr.bf16.mxu0 0
  %80 = vmatpush1.bf16.msra.mxu0 0
  %81 = vmatprep.subr.bf16.mxu0 0
  %82 = vmatpush1.bf16.msra.mxu0 0
  %83 = vmatprep.subr.bf16.mxu0 0
  %84 = vmatpush1.bf16.msra.mxu0 0
  %85 = vmatprep.subr.bf16.mxu0 0
  %86 = vmatpush1.bf16.msra.mxu0 0
  %87 = vmatprep.mubr.bf16.mxu0 0
  %88 = vmatmul.mubr.bf16.gmra.mrb[0].mxu0 %v50
  %v89 = vpop.f32.mrb[0].mxu0
  %v90 = vadd.f32 0.0, %v89
  %v91 = vpop.f32.mrb[0].mxu0
  %v92 = vpop.f32.mrb[0].mxu0
  %v93 = vadd.f32 0.0, %v92
  %v94 = vpop.f32.mrb[0].mxu0
  %95 = vmatprep.mubr.bf16.mxu0 0
  %96 = vmatmul.mubr.bf16.gmra.mrb[0].mxu0 %v53
  %v97 = vpop.f32.mrb[0].mxu0
  %v98 = vadd.f32 0.0, %v97
  %v99 = vpop.f32.mrb[0].mxu0
  %v100 = vpop.f32.mrb[0].mxu0
  %v101 = vpop.f32.mrb[0].mxu0
  %102 = vdwg.mxu0
  %v103 = vld [vmem:[%s2] sm:$0x1]
  %v105 = vlaneseq
  %v106 = vshrl.u32 %v105, 7
  %v107 = vsub.s32 0, %v106
  %v108 = vrot.slane %v103, %v107
  %v110 = vmul.f32 %v90, %v108
  %v111 = vmul.f32 %v93, %v108
  %v112 = vmul.f32 %v98, %v108
  %v113 = vld [vmem:[%s3] sm:$0x1]
  %v115 = vlaneseq
  %v116 = vshrl.u32 %v115, 7
  %v117 = vsub.s32 0, %v116
  %v118 = vrot.slane %v113, %v117
  %v120 = vadd.f32 %v110, %v118
  %v121 = vadd.f32 %v111, %v118
  %v122 = vadd.f32 %v112, %v118
  %v123 = vld [vmem:[%s4] sm:$0xf]
  %v124 = vld [vmem:[%s4 + $0x4] sm:$0xf]
  %v125 = vld [vmem:[%s4 + $0x8] sm:$0xf]
  %v126 = vunpack.c.l.bf16 %v123
  %v127 = vunpack.c.l.bf16 %v124
  %v128 = vunpack.c.l.bf16 %v125
  %v129 = vmul.f32 %v120, 0.17
  %v130 = vmul.f32 %v121, 0.17
  %v131 = vmul.f32 %v122, 0.17
  %v132 = vadd.f32 %v126, %v129
  %v133 = vadd.f32 %v127, %v130
  %v134 = vadd.f32 %v128, %v131
  %v135 = vmax.f32 %v132, 0.0
  %v136 = vmax.f32 %v133, 0.0
  %v137 = vmax.f32 %v134, 0.0
  %v138 = vpack.c.bf16 %v136, %v135
  %v139 = vpack.c.bf16 %v137, %v137
  %v142 = vunpack.c.l.b16 %v138
  %v143 = vunpack.c.h.b16 %v138
  %v144 = vunpack.c.l.b16 %v139
  %v145 = vpack.c.b16 %v142, %v142
  %v146 = vpack.c.b16 %v143, %v143
  %v147 = vpack.c.b16 %v144, %v144
  %151 = vst [vmem:[%s5] sm:$0xf] %v145
  %152 = vst [vmem:[%s5 + $0x4] sm:$0xf] %v146
  %153 = vst [vmem:[%s5 + $0x8] sm:$0xf] %v147
  // Predicated region
  $region22: #{encoder_forward.29} parent=0 // pred_check
    _
  $region23: #{encoder_forward.29} parent=0 // pred_check_branch
    %155 = sbr.rel (0) target = $region25
  $region24: #{encoder_forward.29} parent=0 // pred_region
    _
  $region25: #{encoder_forward.29} parent=0 // pred_fallthru
    _
  // Predicated region
  $region26: #{encoder_forward.29} parent=0 // pred_check
    _
  $region27: #{encoder_forward.29} parent=0 // pred_check_branch
    %157 = sbr.rel (0) target = $region29
  $region28: #{encoder_forward.29} parent=0 // pred_region
    _
  $region29: #{encoder_forward.29} parent=0 // pred_fallthru
    _

// kernel: encoder_forward.30
$region0: #{encoder_forward.30}
  #allocation0 [shape = 'u32[]', space=smem, size = 0x4, offset = 0x4, fixed_abs, tag = 'smem constant byte address 0x4 - core index']
  #allocation1 [shape = 'u32[144,128]{1,0:T(1,128)}', space=vmem, size = 0x12000, scoped, tag = 'internal scratch']
  %s0 = inlined_call_operand.vmem [shape: bf16[2,9,64], index: 0, kind: input, shape index: {}]
  %s1 = inlined_call_operand.vmem [shape: bf16[2,64], index: 1, kind: output, shape index: {}]
  %s2 = sld [smem:[#allocation0]]
  $region14: #{encoder_forward.30} parent=0
    _
  %s4 = ssub.s32 1, %s2
  %s5 = scalar_select 0, %s4, %s2
  // Predicated region
  $region2: #{encoder_forward.30} parent=0 // pred_check
    _
  $region3: #{encoder_forward.30} parent=0 // pred_check_branch
    %7 = sbr.rel (0) target = $region5
  $region4: #{encoder_forward.30} parent=0 // pred_region
    _
  $region5: #{encoder_forward.30} parent=0 // pred_fallthru
    _
  %v8 = vld [vmem:[%s0] sm:$0xf]
  %v9 = vld [vmem:[%s0 + $0x4] sm:$0x1]
  %v10 = vld [vmem:[%s0 + $0x8] sm:$0xf]
  %v11 = vld [vmem:[%s0 + $0xc] sm:$0x1]
  %v12 = vunpack.c.l.bf16 %v8
  %v13 = vunpack.c.l.bf16 %v9
  %v14 = vunpack.c.l.bf16 %v10
  %v15 = vunpack.c.l.bf16 %v11
  %vm16 = vcmask 523264
  %v17 = vsel %vm16, %v12, 0.0
  %vm18 = vcmask 516096
  %v19 = vsel %vm18, %v13, 0.0
  %v20 = vadd.f32 %v17, %v19
  %v21 = vrot.slane %v20, 4
  %v22 = vadd.f32 %v20, %v21
  %v23 = vrot.slane %v22, 2
  %v24 = vadd.f32 %v22, %v23
  %v25 = vrot.slane %v24, 1
  %v26 = vadd.f32 %v24, %v25
  %v27 = vsel %vm16, %v14, 0.0
  %v28 = vsel %vm18, %v15, 0.0
  %v29 = vadd.f32 %v27, %v28
  %v30 = vrot.slane %v29, 4
  %v31 = vadd.f32 %v29, %v30
  %v32 = vrot.slane %v31, 2
  %v33 = vadd.f32 %v31, %v32
  %v34 = vrot.slane %v33, 1
  %v35 = vadd.f32 %v33, %v34
  %v36 = vrcp.pop 9.0
  %v37 = vmul.f32 %v26, %v36
  %v38 = vmul.f32 %v35, %v36
  %v39 = vpack.c.bf16 %v37, %v37
  %v40 = vpack.c.bf16 %v38, %v38
  %v44 = vunpack.c.l.s4 1966171168
  %v45 = vunpack.c.0.s8 %v44
  %v46 = vlaneseq
  %v47 = vshrl.u32 %v46, 7
  %v48 = vsub.s32 %v45, %v47
  %v49 = vrot.slane %v39, %v48
  %v51 = vunpack.c.l.s4 1966171168
  %v52 = vunpack.c.0.s8 %v51
  %v53 = vlaneseq
  %v54 = vshrl.u32 %v53, 7
  %v55 = vsub.s32 %v52, %v54
  %v56 = vrot.slane %v49, %v55
  %v58 = vunpack.c.l.s4 1966171168
  %v59 = vunpack.c.0.s8 %v58
  %v60 = vlaneseq
  %v61 = vshrl.u32 %v60, 7
  %v62 = vsub.s32 %v59, %v61
  %v63 = vrot.slane %v40, %v62
  %v65 = vunpack.c.l.s4 1966171168
  %v66 = vunpack.c.0.s8 %v65
  %v67 = vlaneseq
  %v68 = vshrl.u32 %v67, 7
  %v69 = vsub.s32 %v66, %v68
  %v70 = vrot.slane %v63, %v69
  %v72 = vunpack.c.l.s4 1935823168
  %v73 = vunpack.c.0.s8 %v72
  %v74 = vlaneseq
  %v75 = vshrl.u32 %v74, 7
  %v76 = vsub.s32 %v73, %v75
  %v77 = vrot.slane %v56, %v76
  %v79 = vunpack.c.l.s4 1935823168
  %v80 = vunpack.c.0.s8 %v79
  %v81 = vlaneseq
  %v82 = vshrl.u32 %v81, 7
  %v83 = vsub.s32 %v80, %v82
  %v84 = vrot.slane %v77, %v83
  %v86 = vunpack.c.l.s4 1935823168
  %v87 = vunpack.c.0.s8 %v86
  %v88 = vlaneseq
  %v89 = vshrl.u32 %v88, 7
  %v90 = vsub.s32 %v87, %v89
  %v91 = vrot.slane %v70, %v90
  %v93 = vunpack.c.l.s4 1935823168
  %v94 = vunpack.c.0.s8 %v93
  %v95 = vlaneseq
  %v96 = vshrl.u32 %v95, 7
  %v97 = vsub.s32 %v94, %v96
  %v98 = vrot.slane %v91, %v97
  %v99 = vunpack.c.l.b16 %v84
  %v100 = vunpack.c.l.b16 %v98
  %v101 = vrot.slane %v100, 7
  %vm102 = vcmask 1041409
  %v103 = vsel %vm102, %v101, %v99
  %v104 = vpack.c.b16 %v103, %v103
  %v106 = vunpack.c.l.s4 1966171168
  %v107 = vunpack.c.0.s8 %v106
  %v108 = vlaneseq
  %v109 = vshrl.u32 %v108, 7
  %v110 = vsub.s32 %v107, %v109
  %v111 = vrot.slane %v104, %v110
  %v113 = vunpack.c.l.s4 1966171168
  %v114 = vunpack.c.0.s8 %v113
  %v115 = vlaneseq
  %v116 = vshrl.u32 %v115, 7
  %v117 = vsub.s32 %v114, %v116
  %v118 = vrot.slane %v111, %v117
  %120 = vst.msk [vmem:[%s1] sm:$0x1] %vm18, %v118
  // Predicated region
  $region6: #{encoder_forward.30} parent=0 // pred_check
    _
  $region7: #{encoder_forward.30} parent=0 // pred_check_branch
    %122 = sbr.rel (0) target = $region9
  $region8: #{encoder_forward.30} parent=0 // pred_region
    _
  $region9: #{encoder_forward.30} parent=0 // pred_fallthru
    _
  // Predicated region
  $region10: #{encoder_forward.30} parent=0 // pred_check
    _
  $region11: #{encoder_forward.30} parent=0 // pred_check_branch
    %124 = sbr.rel (0) target = $region13
  $region12: #{encoder_forward.30} parent=0 // pred_region
    _
  $region13: #{encoder_forward.30} parent=0 // pred_fallthru
    _

// kernel: encoder_forward.31
$region0: #{encoder_forward.31}
  #allocation0 [shape = 'u32[]', space=smem, size = 0x4, offset = 0x4, fixed_abs, tag = 'smem constant byte address 0x4 - core index']
  #allocation1 [shape = 'u32[144,128]{1,0:T(1,128)}', space=vmem, size = 0x12000, scoped, tag = 'internal scratch']
  %s0 = inlined_call_operand.vmem [shape: bf16[8,64], index: 0, kind: input, shape index: {}]
  %s1 = inlined_call_operand.vmem [shape: bf16[64,512], index: 1, kind: input, shape index: {}]
  %s2 = inlined_call_operand.vmem [shape: f32[1,512], index: 2, kind: input, shape index: {}]
  %s3 = inlined_call_operand.vmem [shape: f32[1,512], index: 3, kind: input, shape index: {}]
  %s4 = inlined_call_operand.vmem [shape: f32[8,512], index: 4, kind: output, shape index: {}]
  %s5 = sld [smem:[#allocation0]]
  $region26: #{encoder_forward.31} parent=0
    _
  %s7 = ssub.s32 1, %s5
  %s8 = scalar_select 0, %s7, %s5
  // Predicated region
  $region2: #{encoder_forward.31} parent=0 // pred_check
    _
  $region3: #{encoder_forward.31} parent=0 // pred_check_branch
    %10 = sbr.rel (0) target = $region5
  $region4: #{encoder_forward.31} parent=0 // pred_region
    _
  $region5: #{encoder_forward.31} parent=0 // pred_fallthru
    _
  // Predicated region
  $region6: #{encoder_forward.31} parent=0 // pred_check
    _
  $region7: #{encoder_forward.31} parent=0 // pred_check_branch
    %12 = sbr.rel (0) target = $region9
  $region8: #{encoder_forward.31} parent=0 // pred_region
    _
  $region9: #{encoder_forward.31} parent=0 // pred_fallthru
    _
  // Predicated region
  $region10: #{encoder_forward.31} parent=0 // pred_check
    _
  $region11: #{encoder_forward.31} parent=0 // pred_check_branch
    %14 = sbr.rel (0) target = $region13
  $region12: #{encoder_forward.31} parent=0 // pred_region
    _
  $region13: #{encoder_forward.31} parent=0 // pred_fallthru
    _
  // Predicated region
  $region14: #{encoder_forward.31} parent=0 // pred_check
    _
  $region15: #{encoder_forward.31} parent=0 // pred_check_branch
    %16 = sbr.rel (0) target = $region17
  $region16: #{encoder_forward.31} parent=0 // pred_region
    _
  $region17: #{encoder_forward.31} parent=0 // pred_fallthru
    _
  %v18 = vld [vmem:[%s0] sm:$0xf]
  %v19 = vld [vmem:[%s1] sm:$0xff]
  %v20 = vld [vmem:[%s1 + $0x8] sm:$0xff]
  %v21 = vld [vmem:[%s1 + $0x10] sm:$0xff]
  %v22 = vld [vmem:[%s1 + $0x18] sm:$0xff]
  %v23 = vld [vmem:[%s1 + $0x20] sm:$0xff]
  %v24 = vld [vmem:[%s1 + $0x28] sm:$0xff]
  %v25 = vld [vmem:[%s1 + $0x30] sm:$0xff]
  %v26 = vld [vmem:[%s1 + $0x38] sm:$0xff]
  %v27 = vld [vmem:[%s1 + $0x40] sm:$0xff]
  %v28 = vld [vmem:[%s1 + $0x48] sm:$0xff]
  %v29 = vld [vmem:[%s1 + $0x50] sm:$0xff]
  %v30 = vld [vmem:[%s1 + $0x58] sm:$0xff]
  %v31 = vld [vmem:[%s1 + $0x60] sm:$0xff]
  %v32 = vld [vmem:[%s1 + $0x68] sm:$0xff]
  %v33 = vld [vmem:[%s1 + $0x70] sm:$0xff]
  %v34 = vld [vmem:[%s1 + $0x78] sm:$0xff]
  %v51 = vunpack.c.l.b16 %v19
  %v52 = vunpack.c.h.b16 %v19
  %v53 = vunpack.c.l.b16 %v20
  %v54 = vunpack.c.h.b16 %v20
  %v55 = vunpack.c.l.b16 %v21
  %v56 = vunpack.c.h.b16 %v21
  %v57 = vunpack.c.l.b16 %v22
  %v58 = vunpack.c.h.b16 %v22
  %v59 = vunpack.c.l.b16 %v23
  %v60 = vunpack.c.h.b16 %v23
  %v61 = vunpack.c.l.b16 %v24
  %v62 = vunpack.c.h.b16 %v24
  %v63 = vunpack.c.l.b16 %v25
  %v64 = vunpack.c.h.b16 %v25
  %v65 = vunpack.c.l.b16 %v26
  %v66 = vunpack.c.h.b16 %v26
  %v67 = vunpack.c.l.b16 %v27
  %v68 = vunpack.c.h.b16 %v27
  %v69 = vunpack.c.l.b16 %v28
  %v70 = vunpack.c.h.b16 %v28
  %v71 = vunpack.c.l.b16 %v29
  %v72 = vunpack.c.h.b16 %v29
  %v73 = vunpack.c.l.b16 %v30
  %v74 = vunpack.c.h.b16 %v30
  %v75 = vunpack.c.l.b16 %v31
  %v76 = vunpack.c.h.b16 %v31
  %v77 = vunpack.c.l.b16 %v32
  %v78 = vunpack.c.h.b16 %v32
  %v79 = vunpack.c.l.b16 %v33
  %v80 = vunpack.c.h.b16 %v33
  %v81 = vunpack.c.l.b16 %v34
  %v82 = vunpack.c.h.b16 %v34
  %v83 = vpack.c.b16 %v55, %v51
  %v84 = vpack.c.b16 %v56, %v52
  %v85 = vpack.c.b16 %v57, %v53
  %v86 = vpack.c.b16 %v58, %v54
  %v87 = vpack.c.b16 %v63, %v59
  %v88 = vpack.c.b16 %v64, %v60
  %v89 = vpack.c.b16 %v65, %v61
  %v90 = vpack.c.b16 %v66, %v62
  %v91 = vpack.c.b16 %v71, %v67
  %v92 = vpack.c.b16 %v72, %v68
  %v93 = vpack.c.b16 %v73, %v69
  %v94 = vpack.c.b16 %v74, %v70
  %v95 = vpack.c.b16 %v79, %v75
  %v96 = vpack.c.b16 %v80, %v76
  %v97 = vpack.c.b16 %v81, %v77
  %v98 = vpack.c.b16 %v82, %v78
  %vm115 = vcmask 523264
  %v117 = vsel %vm115, %v18, 0
  %119 = vmatprep.subr.bf16.mxu0 %v84
  %120 = vmatpush1.bf16.msra.mxu0 %v83
  %121 = vmatprep.subr.bf16.mxu0 %v88
  %122 = vmatpush1.bf16.msra.mxu0 %v87
  %123 = vmatprep.subr.bf16.mxu0 %v92
  %124 = vmatpush1.bf16.msra.mxu0 %v91
  %125 = vmatprep.subr.bf16.mxu0 %v96
  %126 = vmatpush1.bf16.msra.mxu0 %v95
  %127 = vmatprep.subr.bf16.mxu0 0
  %128 = vmatpush1.bf16.msra.mxu0 0
  %129 = vmatprep.subr.bf16.mxu0 0
  %130 = vmatpush1.bf16.msra.mxu0 0
  %131 = vmatprep.subr.bf16.mxu0 0
  %132 = vmatpush1.bf16.msra.mxu0 0
  %133 = vmatprep.subr.bf16.mxu0 0
  %134 = vmatpush1.bf16.msra.mxu0 0
  %135 = vmatprep.subr.bf16.mxu0 0
  %136 = vmatpush1.bf16.msra.mxu0 0
  %137 = vmatprep.subr.bf16.mxu0 0
  %138 = vmatpush1.bf16.msra.mxu0 0
  %139 = vmatprep.subr.bf16.mxu0 0
  %140 = vmatpush1.bf16.msra.mxu0 0
  %141 = vmatprep.subr.bf16.mxu0 0
  %142 = vmatpush1.bf16.msra.mxu0 0
  %143 = vmatprep.subr.bf16.mxu0 0
  %144 = vmatpush1.bf16.msra.mxu0 0
  %145 = vmatprep.subr.bf16.mxu0 0
  %146 = vmatpush1.bf16.msra.mxu0 0
  %147 = vmatprep.subr.bf16.mxu0 0
  %148 = vmatpush1.bf16.msra.mxu0 0
  %149 = vmatprep.subr.bf16.mxu0 0
  %150 = vmatpush1.bf16.msra.mxu0 0
  %151 = vmatprep.mubr.bf16.mxu0 0
  %152 = vmatmul.mubr.bf16.gmra.mrb[0].mxu0 %v117
  %v153 = vpop.f32.mrb[0].mxu0
  %v154 = vadd.f32 0.0, %v153
  %v155 = vpop.f32.mrb[0].mxu0
  %v156 = vadd.f32 0.0, %v155
  %v157 = vpop.f32.mrb[0].mxu0
  %v158 = vpop.f32.mrb[0].mxu0
  %159 = vdwg.mxu0
  %160 = vmatprep.subr.bf16.mxu0 %v86
  %161 = vmatpush1.bf16.msra.mxu0 %v85
  %162 = vmatprep.subr.bf16.mxu0 %v90
  %163 = vmatpush1.bf16.msra.mxu0 %v89
  %164 = vmatprep.subr.bf16.mxu0 %v94
  %165 = vmatpush1.bf16.msra.mxu0 %v93
  %166 = vmatprep.subr.bf16.mxu0 %v98
  %167 = vmatpush1.bf16.msra.mxu0 %v97
  %168 = vmatprep.subr.bf16.mxu0 0
  %169 = vmatpush1.bf16.msra.mxu0 0
  %170 = vmatprep.subr.bf16.mxu0 0
  %171 = vmatpush1.bf16.msra.mxu0 0
  %172 = vmatprep.subr.bf16.mxu0 0
  %173 = vmatpush1.bf16.msra.mxu0 0
  %174 = vmatprep.subr.bf16.mxu0 0
  %175 = vmatpush1.bf16.msra.mxu0 0
  %176 = vmatprep.subr.bf16.mxu0 0
  %177 = vmatpush1.bf16.msra.mxu0 0
  %178 = vmatprep.subr.bf16.mxu0 0
  %179 = vmatpush1.bf16.msra.mxu0 0
  %180 = vmatprep.subr.bf16.mxu0 0
  %181 = vmatpush1.bf16.msra.mxu0 0
  %182 = vmatprep.subr.bf16.mxu0 0
  %183 = vmatpush1.bf16.msra.mxu0 0
  %184 = vmatprep.subr.bf16.mxu0 0
  %185 = vmatpush1.bf16.msra.mxu0 0
  %186 = vmatprep.subr.bf16.mxu0 0
  %187 = vmatpush1.bf16.msra.mxu0 0
  %188 = vmatprep.subr.bf16.mxu0 0
  %189 = vmatpush1.bf16.msra.mxu0 0
  %190 = vmatprep.subr.bf16.mxu0 0
  %191 = vmatpush1.bf16.msra.mxu0 0
  %192 = vmatprep.mubr.bf16.mxu0 0
  %193 = vmatmul.mubr.bf16.gmra.mrb[0].mxu0 %v117
  %v194 = vpop.f32.mrb[0].mxu0
  %v195 = vadd.f32 0.0, %v194
  %v196 = vpop.f32.mrb[0].mxu0
  %v197 = vadd.f32 0.0, %v196
  %v198 = vpop.f32.mrb[0].mxu0
  %v199 = vpop.f32.mrb[0].mxu0
  %200 = vdwg.mxu0
  %v201 = vld [vmem:[%s2] sm:$0xf]
  %v203 = vlaneseq
  %v204 = vshrl.u32 %v203, 7
  %v205 = vsub.s32 0, %v204
  %v206 = vrot.slane %v201, %v205
  %v207 = vlaneseq
  %v208 = vshrl.u32 %v207, 7
  %v209 = vsub.s32 1, %v208
  %v210 = vrot.slane %v201, %v209
  %v211 = vlaneseq
  %v212 = vshrl.u32 %v211, 7
  %v213 = vsub.s32 2, %v212
  %v214 = vrot.slane %v201, %v213
  %v215 = vlaneseq
  %v216 = vshrl.u32 %v215, 7
  %v217 = vsub.s32 3, %v216
  %v218 = vrot.slane %v201, %v217
  %v223 = vmul.f32 %v154, %v206
  %v224 = vmul.f32 %v156, %v210
  %v225 = vmul.f32 %v195, %v214
  %v226 = vmul.f32 %v197, %v218
  %v227 = vld [vmem:[%s3] sm:$0xf]
  %v229 = vlaneseq
  %v230 = vshrl.u32 %v229, 7
  %v231 = vsub.s32 0, %v230
  %v232 = vrot.slane %v227, %v231
  %v233 = vlaneseq
  %v234 = vshrl.u32 %v233, 7
  %v235 = vsub.s32 1, %v234
  %v236 = vrot.slane %v227, %v235
  %v237 = vlaneseq
  %v238 = vshrl.u32 %v237, 7
  %v239 = vsub.s32 2, %v238
  %v240 = vrot.slane %v227, %v239
  %v241 = vlaneseq
  %v242 = vshrl.u32 %v241, 7
  %v243 = vsub.s32 3, %v242
  %v244 = vrot.slane %v227, %v243
  %v249 = vadd.f32 %v223, %v232
  %v250 = vadd.f32 %v224, %v236
  %v251 = vadd.f32 %v225, %v240
  %v252 = vadd.f32 %v226, %v244
  %v253 = vmul.f32 %v249, %v249
  %v254 = vmul.f32 %v250, %v250
  %v255 = vmul.f32 %v251, %v251
  %v256 = vmul.f32 %v252, %v252
  %v257 = vadd.f32 %v253, %v254
  %v258 = vadd.f32 %v257, %v255
  %v259 = vadd.f32 %v258, %v256
  %260 = vadd.xlane.f32.xlu0 %v259
  %v261 = vpop.xlane.xlu0 %260
  %v262 = vrsqrt.pop %v261
  %v263 = vmul.f32 %v261, %v262
  %vm264 = vcmp.eq.f32.partialorder %v261, inf
  %v265 = vsel %vm264, %v261, %v263
  %vm266 = vcmp.eq.f32.partialorder %v261, 0.0
  %v267 = vand.u32 %v261, 2147483648
  %v268 = vsel %vm266, %v267, %v265
  %v269 = vmax.f32 %v268, 1e-12
  %v270 = vrcp.pop %v269
  %v271 = vmul.f32 %v249, %v270
  %v272 = vmul.f32 %v250, %v270
  %v273 = vmul.f32 %v251, %v270
  %v274 = vmul.f32 %v252, %v270
  %275 = vst [vmem:[%s4] sm:$0xff] %v271
  %276 = vst [vmem:[%s4 + $0x8] sm:$0xff] %v272
  %277 = vst [vmem:[%s4 + $0x10] sm:$0xff] %v273
  %278 = vst [vmem:[%s4 + $0x18] sm:$0xff] %v274
  // Predicated region
  $region18: #{encoder_forward.31} parent=0 // pred_check
    _
  $region19: #{encoder_forward.31} parent=0 // pred_check_branch
    %280 = sbr.rel (0) target = $region21
  $region20: #{encoder_forward.31} parent=0 // pred_region
    _
  $region21: #{encoder_forward.31} parent=0 // pred_fallthru
    _
  // Predicated region
  $region22: #{encoder_forward.31} parent=0 // pred_check
    _
  $region23: #{encoder_forward.31} parent=0 // pred_check_branch
    %282 = sbr.rel (0) target = $region25
  $region24: #{encoder_forward.31} parent=0 // pred_region
    _
  $region25: #{encoder_forward.31} parent=0 // pred_fallthru
    _

</llo_original>
